<compile_context>
chip_gen: v7x
topology: tpu7x:2x2x1
jax: 0.10.0
libtpu: 0.0.40
codegen_flags: <defaults>
</compile_context>

<pallas_src>
import jax
import jax.numpy as jnp
import numpy as np
from jax import lax
from jax.experimental import pallas as pl
from jax.experimental.pallas import tpu as pltpu

# ---------------- config (small, shapes consistent with DocModel defaults) ----------------
VOCAB = 64
EMB_DIM = 32          # embedding_dim
MLP_DIM = 64          # mlp_layer_dims=(64,) -> WordEmbedding output dim (H)
KERNEL_NUM = 32       # kernel_num (C per conv)
KERNEL_SIZES = (3, 4, 5)
DEC_HIDDEN = 64       # decoder_hidden_dims=(64,)
OUT_DIM = 2
B, L = 2, 8

MAXK = max(KERNEL_SIZES)                     # 5
ENC_OUT = len(KERNEL_SIZES) * KERNEL_NUM     # 96
C_PAD = 128                                  # lane-dense padded encoder width (96 -> 128)
PAD = 8                                      # zero rows before/after the sequence (sublane aligned)
LPAD = PAD + L + PAD                         # 24 padded time rows
T = 16                                       # pooled time positions (>= L + MAXK + 1 = 14), mult of 8
WIN0 = PAD - MAXK                            # 3: hp row of the first shared tap at output position t=0


# --------------------------------- the fused kernel ---------------------------------------
def _docmodel_kernel(tok_ref, tmlp_ref, bmlp_ref, wstk_ref, bstk_ref,
                     wd1_ref, bd1_ref, wd2_ref, bd2_ref, o_ref):
    f32 = jnp.float32
    hi = lax.Precision.HIGHEST

    # --- WordEmbedding: gather + Linear + ReLU, folded to one_hot @ (emb_table @ Wmlp) ---
    tok = tok_ref[...]                                                   # (B, L) int32
    vocab_iota = lax.broadcasted_iota(jnp.int32, (B, L, VOCAB), 2)
    onehot = (tok[:, :, None] == vocab_iota).astype(f32)                 # (B, L, V)
    onehot2 = onehot.reshape(B * L, VOCAB)                               # (16, 64) aligned merge
    h = jnp.dot(onehot2, tmlp_ref[...], precision=hi,
                preferred_element_type=f32) + bmlp_ref[...]
    h = jnp.maximum(h, 0.0).reshape(B, L, MLP_DIM)                       # (B, L, H)

    # --- shared zero padding of the time axis (Conv1d padding=k for every k) ---
    zpad = jnp.zeros((B, PAD, MLP_DIM), f32)
    hp = jnp.concatenate([zpad, h, zpad], axis=1)                        # (B, LPAD, H), aligned pieces

    # --- stacked convs: 5 shifted-window tap matmuls into one lane-dense accumulator ---
    acc = jnp.zeros((B * T, C_PAD), f32)
    for u in range(MAXK):                                                # static unroll, 5 MXU pushes
        xs = hp[:, WIN0 + u:WIN0 + u + T, :].reshape(B * T, MLP_DIM)     # (32, 64)
        acc = acc + jnp.dot(xs, wstk_ref[u], precision=hi,
                            preferred_element_type=f32)
    acc = jnp.maximum(acc + bstk_ref[...], 0.0)                          # ReLU(conv + bias), bias once
    pooled = jnp.max(acc.reshape(B, T, C_PAD), axis=1)                   # (B, 128) max-over-time

    # --- MLPDecoder: Linear -> ReLU -> Linear (dropout = identity, dense_dim = 0) ---
    h1 = jnp.maximum(
        jnp.dot(pooled, wd1_ref[...], precision=hi,
                preferred_element_type=f32) + bd1_ref[...], 0.0)         # (B, DEC_HIDDEN)
    o_ref[...] = jnp.dot(h1, wd2_ref[...], precision=hi,
                         preferred_element_type=f32) + bd2_ref[...]      # (B, OUT_DIM)


@jax.jit
def doc_model_forward(tokens, tmlp, bmlp, wstk, bstk, wd1p, bd1, wd2, bd2):
    vmem = pl.BlockSpec(memory_space=pltpu.MemorySpace.VMEM)
    return pl.pallas_call(
        _docmodel_kernel,
        out_shape=jax.ShapeDtypeStruct((B, OUT_DIM), jnp.float32),
        in_specs=[vmem] * 9,
        out_specs=vmem,
    )(tokens, tmlp, bmlp, wstk, bstk, wd1p, bd1, wd2, bd2)


# ------------------------- one-time parameter folding / packing ---------------------------
def prepare_params(emb_table, w_mlp, b_mlp, convs, wd1, bd1, wd2, bd2):
    # Fold gather + word MLP:  emb[tok] @ W == one_hot(tok) @ (emb_table @ W)   (exact).
    tmlp = np.asarray(emb_table, np.float32) @ np.asarray(w_mlp, np.float32)     # (V, H)

    # Stack the three conv weights into one (MAXK, H, C_PAD) tap weight: conv with kernel
    # size k uses the LAST k taps of the shared 5-wide window and owns its own 32-lane
    # column slice; remaining taps / lanes stay zero (so they contribute nothing).
    wstk = np.zeros((MAXK, MLP_DIM, C_PAD), np.float32)
    bstk = np.zeros((C_PAD,), np.float32)
    for g, (k, (wk, bk)) in enumerate(zip(KERNEL_SIZES, convs)):
        wstk[MAXK - k:, :, g * KERNEL_NUM:(g + 1) * KERNEL_NUM] = np.asarray(wk)
        bstk[g * KERNEL_NUM:(g + 1) * KERNEL_NUM] = np.asarray(bk)

    # Row-pad the first decoder weight 96 -> 128 (padded pooled lanes are exactly 0).
    wd1p = np.zeros((C_PAD, DEC_HIDDEN), np.float32)
    wd1p[:ENC_OUT] = np.asarray(wd1)

    to = lambda a: jnp.asarray(a, jnp.float32)
    return (to(tmlp), to(np.asarray(b_mlp).reshape(1, -1)),
            to(wstk), to(bstk.reshape(1, -1)),
            to(wd1p), to(np.asarray(bd1).reshape(1, -1)),
            to(np.asarray(wd2)), to(np.asarray(bd2).reshape(1, -1)))


# ------------------------------- reference (plain JAX, f32) -------------------------------
def reference_forward(tokens, emb_table, w_mlp, b_mlp, convs, wd1, bd1, wd2, bd2):
    hi = lax.Precision.HIGHEST
    emb = emb_table[tokens]                                              # (B, L, E)
    h = jnp.maximum(jnp.einsum('ble,eh->blh', emb, w_mlp, precision=hi) + b_mlp, 0.0)
    pooled = []
    for k, (wk, bk) in zip(KERNEL_SIZES, convs):
        xpad = jnp.pad(h, ((0, 0), (k, k), (0, 0)))                      # Conv1d padding=k
        l_out = L + k + 1
        acc = jnp.zeros((B, l_out, KERNEL_NUM), jnp.float32)
        for j in range(k):
            acc = acc + jnp.einsum('blh,hc->blc', xpad[:, j:j + l_out, :], wk[j],
                                   precision=hi)
        acc = jnp.maximum(acc + bk[None, None, :], 0.0)
        pooled.append(jnp.max(acc, axis=1))
    feat = jnp.concatenate(pooled, axis=-1)                              # dropout = identity
    h1 = jnp.maximum(jnp.dot(feat, wd1, precision=hi) + bd1, 0.0)
    return jnp.dot(h1, wd2, precision=hi) + bd2


# ----------------------------------------- main --------------------------------------------
if __name__ == "__main__":
    key = jax.random.PRNGKey(0)
    ks = jax.random.split(key, 16)

    # Parameters (deterministic synthetic init; shapes follow DocModel.__init__).
    emb_table = 0.1 * jax.random.normal(ks[0], (VOCAB, EMB_DIM), jnp.float32)
    emb_table = emb_table.at[0].set(0.0)   # padding_idx row
    emb_table = emb_table.at[1].set(0.0)   # unk row zeroed in WordEmbedding.__init__

    w_mlp = 0.1 * jax.random.normal(ks[1], (EMB_DIM, MLP_DIM), jnp.float32)
    b_mlp = 0.1 * jax.random.normal(ks[2], (MLP_DIM,), jnp.float32)

    convs = []
    for idx, k in enumerate(KERNEL_SIZES):
        wk = 0.1 * jax.random.normal(ks[3 + 2 * idx], (k, MLP_DIM, KERNEL_NUM), jnp.float32)
        bk = 0.1 * jax.random.normal(ks[4 + 2 * idx], (KERNEL_NUM,), jnp.float32)
        convs.append((wk, bk))

    wd1 = 0.1 * jax.random.normal(ks[10], (ENC_OUT, DEC_HIDDEN), jnp.float32)
    bd1 = 0.1 * jax.random.normal(ks[11], (DEC_HIDDEN,), jnp.float32)
    wd2 = 0.1 * jax.random.normal(ks[12], (DEC_HIDDEN, OUT_DIM), jnp.float32)
    bd2 = 0.1 * jax.random.normal(ks[13], (OUT_DIM,), jnp.float32)

    # Inputs: inputs["token_ids"] of shape (B, L), int32.
    tokens = jax.random.randint(ks[14], (B, L), 0, VOCAB, dtype=jnp.int32)

    # --- fused forward pass (single pallas_call) ---
    packed = prepare_params(emb_table, w_mlp, b_mlp, convs, wd1, bd1, wd2, bd2)
    logits = doc_model_forward(tokens, *packed)
    logits = jax.block_until_ready(logits)

    # Sanity-check against pure-JAX reference (all-f32 path; tolerance leaves a small
    # margin for differences in the MXU's multi-pass f32 emulation / accumulation order).
    ref = reference_forward(tokens, emb_table, w_mlp, b_mlp, convs, wd1, bd1, wd2, bd2)
    assert logits.shape == (B, OUT_DIM)
    assert np.allclose(np.asarray(logits), np.asarray(ref), rtol=1e-3, atol=3e-4), (logits, ref)

    print("KERNEL_OK")
</pallas_src>

<mosaic_0001>
module attributes {stable_mosaic.version = 11 : i64} {
  func.func @_docmodel_kernel(%arg0: memref<2x8xi32, #tpu.memory_space<vmem>>, %arg1: memref<64x64xf32, #tpu.memory_space<vmem>>, %arg2: memref<1x64xf32, #tpu.memory_space<vmem>>, %arg3: memref<5x64x128xf32, #tpu.memory_space<vmem>>, %arg4: memref<1x128xf32, #tpu.memory_space<vmem>>, %arg5: memref<128x64xf32, #tpu.memory_space<vmem>>, %arg6: memref<1x64xf32, #tpu.memory_space<vmem>>, %arg7: memref<64x2xf32, #tpu.memory_space<vmem>>, %arg8: memref<1x2xf32, #tpu.memory_space<vmem>>, %arg9: memref<2x2xf32, #tpu.memory_space<vmem>>) attributes {dimension_semantics = [], scalar_prefetch = 0 : i64, scratch_operands = 0 : i64, tpu.core_type = #tpu.core_type<tc>} {
    %c0 = arith.constant 0 : index
    %c0_0 = arith.constant 0 : index
    %0 = vector.load %arg0[%c0, %c0_0] : memref<2x8xi32, #tpu.memory_space<vmem>>, vector<2x8xi32>
    %1 = tpu.iota {dimensions = array<i32: 2>} : vector<2x8x64xi32>
    %2 = vector.shape_cast %0 : vector<2x8xi32> to vector<2x8x1xi32>
    %3 = vector.broadcast %2 : vector<2x8x1xi32> to vector<2x8x64xi32>
    %4 = arith.cmpi eq, %3, %1 : vector<2x8x64xi32>
    %5 = arith.extui %4 : vector<2x8x64xi1> to vector<2x8x64xi32>
    %6 = arith.sitofp %5 : vector<2x8x64xi32> to vector<2x8x64xf32>
    %7 = vector.shape_cast %6 : vector<2x8x64xf32> to vector<16x64xf32>
    %c0_1 = arith.constant 0 : index
    %c0_2 = arith.constant 0 : index
    %8 = vector.load %arg1[%c0_1, %c0_2] : memref<64x64xf32, #tpu.memory_space<vmem>>, vector<64x64xf32>
    %cst = arith.constant dense<0.000000e+00> : vector<16x64xf32>
    %9 = tpu.matmul %7, %8, %cst {dimension_numbers = #tpu.dot_dimension_numbers<[1], [0], [0], [1], [0, 0, 1, 1], [], []>, precision = #tpu.contract_precision<fp32>} : vector<16x64xf32>, vector<64x64xf32>, vector<16x64xf32> -> vector<16x64xf32>
    %c0_3 = arith.constant 0 : index
    %c0_4 = arith.constant 0 : index
    %10 = vector.load %arg2[%c0_3, %c0_4] : memref<1x64xf32, #tpu.memory_space<vmem>>, vector<1x64xf32>
    %11 = vector.broadcast %10 : vector<1x64xf32> to vector<16x64xf32>
    %12 = arith.addf %9, %11 : vector<16x64xf32>
    %cst_5 = arith.constant 0.000000e+00 : f32
    %13 = vector.broadcast %cst_5 : f32 to vector<16x64xf32>
    %14 = arith.maximumf %12, %13 : vector<16x64xf32>
    %15 = vector.shape_cast %14 : vector<16x64xf32> to vector<2x8x64xf32>
    %cst_6 = arith.constant 0.000000e+00 : f32
    %16 = vector.broadcast %cst_6 : f32 to vector<2x8x64xf32>
    %17 = tpu.concatenate %16, %15, %16 in 1 : vector<2x8x64xf32>, vector<2x8x64xf32>, vector<2x8x64xf32> -> vector<2x24x64xf32>
    %cst_7 = arith.constant 0.000000e+00 : f32
    %18 = vector.broadcast %cst_7 : f32 to vector<32x128xf32>
    %19 = vector.extract_strided_slice %17 {offsets = [0, 3, 0], sizes = [2, 16, 64], strides = [1, 1, 1]} : vector<2x24x64xf32> to vector<2x16x64xf32>
    %20 = vector.shape_cast %19 : vector<2x16x64xf32> to vector<32x64xf32>
    %c0_8 = arith.constant 0 : index
    %c0_9 = arith.constant 0 : index
    %c0_10 = arith.constant 0 : index
    %21 = vector.load %arg3[%c0_8, %c0_9, %c0_10] : memref<5x64x128xf32, #tpu.memory_space<vmem>>, vector<1x64x128xf32>
    %22 = vector.shape_cast %21 : vector<1x64x128xf32> to vector<64x128xf32>
    %cst_11 = arith.constant dense<0.000000e+00> : vector<32x128xf32>
    %23 = tpu.matmul %20, %22, %cst_11 {dimension_numbers = #tpu.dot_dimension_numbers<[1], [0], [0], [1], [0, 0, 1, 1], [], []>, precision = #tpu.contract_precision<fp32>} : vector<32x64xf32>, vector<64x128xf32>, vector<32x128xf32> -> vector<32x128xf32>
    %24 = arith.addf %18, %23 : vector<32x128xf32>
    %25 = vector.extract_strided_slice %17 {offsets = [0, 4, 0], sizes = [2, 16, 64], strides = [1, 1, 1]} : vector<2x24x64xf32> to vector<2x16x64xf32>
    %26 = vector.shape_cast %25 : vector<2x16x64xf32> to vector<32x64xf32>
    %c1 = arith.constant 1 : index
    %c0_12 = arith.constant 0 : index
    %c0_13 = arith.constant 0 : index
    %27 = vector.load %arg3[%c1, %c0_12, %c0_13] : memref<5x64x128xf32, #tpu.memory_space<vmem>>, vector<1x64x128xf32>
    %28 = vector.shape_cast %27 : vector<1x64x128xf32> to vector<64x128xf32>
    %cst_14 = arith.constant dense<0.000000e+00> : vector<32x128xf32>
    %29 = tpu.matmul %26, %28, %cst_14 {dimension_numbers = #tpu.dot_dimension_numbers<[1], [0], [0], [1], [0, 0, 1, 1], [], []>, precision = #tpu.contract_precision<fp32>} : vector<32x64xf32>, vector<64x128xf32>, vector<32x128xf32> -> vector<32x128xf32>
    %30 = arith.addf %24, %29 : vector<32x128xf32>
    %31 = vector.extract_strided_slice %17 {offsets = [0, 5, 0], sizes = [2, 16, 64], strides = [1, 1, 1]} : vector<2x24x64xf32> to vector<2x16x64xf32>
    %32 = vector.shape_cast %31 : vector<2x16x64xf32> to vector<32x64xf32>
    %c2 = arith.constant 2 : index
    %c0_15 = arith.constant 0 : index
    %c0_16 = arith.constant 0 : index
    %33 = vector.load %arg3[%c2, %c0_15, %c0_16] : memref<5x64x128xf32, #tpu.memory_space<vmem>>, vector<1x64x128xf32>
    %34 = vector.shape_cast %33 : vector<1x64x128xf32> to vector<64x128xf32>
    %cst_17 = arith.constant dense<0.000000e+00> : vector<32x128xf32>
    %35 = tpu.matmul %32, %34, %cst_17 {dimension_numbers = #tpu.dot_dimension_numbers<[1], [0], [0], [1], [0, 0, 1, 1], [], []>, precision = #tpu.contract_precision<fp32>} : vector<32x64xf32>, vector<64x128xf32>, vector<32x128xf32> -> vector<32x128xf32>
    %36 = arith.addf %30, %35 : vector<32x128xf32>
    %37 = vector.extract_strided_slice %17 {offsets = [0, 6, 0], sizes = [2, 16, 64], strides = [1, 1, 1]} : vector<2x24x64xf32> to vector<2x16x64xf32>
    %38 = vector.shape_cast %37 : vector<2x16x64xf32> to vector<32x64xf32>
    %c3 = arith.constant 3 : index
    %c0_18 = arith.constant 0 : index
    %c0_19 = arith.constant 0 : index
    %39 = vector.load %arg3[%c3, %c0_18, %c0_19] : memref<5x64x128xf32, #tpu.memory_space<vmem>>, vector<1x64x128xf32>
    %40 = vector.shape_cast %39 : vector<1x64x128xf32> to vector<64x128xf32>
    %cst_20 = arith.constant dense<0.000000e+00> : vector<32x128xf32>
    %41 = tpu.matmul %38, %40, %cst_20 {dimension_numbers = #tpu.dot_dimension_numbers<[1], [0], [0], [1], [0, 0, 1, 1], [], []>, precision = #tpu.contract_precision<fp32>} : vector<32x64xf32>, vector<64x128xf32>, vector<32x128xf32> -> vector<32x128xf32>
    %42 = arith.addf %36, %41 : vector<32x128xf32>
    %43 = vector.extract_strided_slice %17 {offsets = [0, 7, 0], sizes = [2, 16, 64], strides = [1, 1, 1]} : vector<2x24x64xf32> to vector<2x16x64xf32>
    %44 = vector.shape_cast %43 : vector<2x16x64xf32> to vector<32x64xf32>
    %c4 = arith.constant 4 : index
    %c0_21 = arith.constant 0 : index
    %c0_22 = arith.constant 0 : index
    %45 = vector.load %arg3[%c4, %c0_21, %c0_22] : memref<5x64x128xf32, #tpu.memory_space<vmem>>, vector<1x64x128xf32>
    %46 = vector.shape_cast %45 : vector<1x64x128xf32> to vector<64x128xf32>
    %cst_23 = arith.constant dense<0.000000e+00> : vector<32x128xf32>
    %47 = tpu.matmul %44, %46, %cst_23 {dimension_numbers = #tpu.dot_dimension_numbers<[1], [0], [0], [1], [0, 0, 1, 1], [], []>, precision = #tpu.contract_precision<fp32>} : vector<32x64xf32>, vector<64x128xf32>, vector<32x128xf32> -> vector<32x128xf32>
    %48 = arith.addf %42, %47 : vector<32x128xf32>
    %c0_24 = arith.constant 0 : index
    %c0_25 = arith.constant 0 : index
    %49 = vector.load %arg4[%c0_24, %c0_25] : memref<1x128xf32, #tpu.memory_space<vmem>>, vector<1x128xf32>
    %50 = vector.broadcast %49 : vector<1x128xf32> to vector<32x128xf32>
    %51 = arith.addf %48, %50 : vector<32x128xf32>
    %cst_26 = arith.constant 0.000000e+00 : f32
    %52 = vector.broadcast %cst_26 : f32 to vector<32x128xf32>
    %53 = arith.maximumf %51, %52 : vector<32x128xf32>
    %54 = vector.shape_cast %53 : vector<32x128xf32> to vector<2x16x128xf32>
    %cst_27 = arith.constant dense<0xFF800000> : vector<2x128xf32>
    %55 = vector.multi_reduction <maximumf>, %54, %cst_27 [1] : vector<2x16x128xf32> to vector<2x128xf32>
    %c0_28 = arith.constant 0 : index
    %c0_29 = arith.constant 0 : index
    %56 = vector.load %arg5[%c0_28, %c0_29] : memref<128x64xf32, #tpu.memory_space<vmem>>, vector<128x64xf32>
    %cst_30 = arith.constant dense<0.000000e+00> : vector<2x64xf32>
    %57 = tpu.matmul %55, %56, %cst_30 {dimension_numbers = #tpu.dot_dimension_numbers<[1], [0], [0], [1], [0, 0, 1, 1], [], []>, precision = #tpu.contract_precision<fp32>} : vector<2x128xf32>, vector<128x64xf32>, vector<2x64xf32> -> vector<2x64xf32>
    %c0_31 = arith.constant 0 : index
    %c0_32 = arith.constant 0 : index
    %58 = vector.load %arg6[%c0_31, %c0_32] : memref<1x64xf32, #tpu.memory_space<vmem>>, vector<1x64xf32>
    %59 = vector.broadcast %58 : vector<1x64xf32> to vector<2x64xf32>
    %60 = arith.addf %57, %59 : vector<2x64xf32>
    %cst_33 = arith.constant 0.000000e+00 : f32
    %61 = vector.broadcast %cst_33 : f32 to vector<2x64xf32>
    %62 = arith.maximumf %60, %61 : vector<2x64xf32>
    %c0_34 = arith.constant 0 : index
    %c0_35 = arith.constant 0 : index
    %63 = vector.load %arg7[%c0_34, %c0_35] : memref<64x2xf32, #tpu.memory_space<vmem>>, vector<64x2xf32>
    %cst_36 = arith.constant dense<0.000000e+00> : vector<2x2xf32>
    %64 = tpu.matmul %62, %63, %cst_36 {dimension_numbers = #tpu.dot_dimension_numbers<[1], [0], [0], [1], [0, 0, 1, 1], [], []>, precision = #tpu.contract_precision<fp32>} : vector<2x64xf32>, vector<64x2xf32>, vector<2x2xf32> -> vector<2x2xf32>
    %c0_37 = arith.constant 0 : index
    %c0_38 = arith.constant 0 : index
    %65 = vector.load %arg8[%c0_37, %c0_38] : memref<1x2xf32, #tpu.memory_space<vmem>>, vector<1x2xf32>
    %66 = vector.broadcast %65 : vector<1x2xf32> to vector<2x2xf32>
    %67 = arith.addf %64, %66 : vector<2x2xf32>
    %c0_39 = arith.constant 0 : index
    %c0_40 = arith.constant 0 : index
    %68 = vector.load %arg9[%c0_39, %c0_40] : memref<2x2xf32, #tpu.memory_space<vmem>>, vector<2x2xf32>
    tpu.vector_store %arg9[%c0_39, %c0_40], %67 {strides = array<i32>} : memref<2x2xf32, #tpu.memory_space<vmem>>, vector<2x2xf32>,
    return
  }
}

</mosaic_0001>

<llo_original>
// kernel: doc_model_forward.1
$region0: #{doc_model_forward.1}
  #allocation0 [shape = 'u32[]', space=smem, size = 0x4, offset = 0x4, fixed_abs, tag = 'smem constant byte address 0x4 - core index']
  #allocation1 [shape = 'u32[144,128]{1,0:T(1,128)}', space=vmem, size = 0x12000, scoped, tag = 'internal scratch']
  %s0 = inlined_call_operand.vmem [shape: s32[2,8], index: 0, kind: input, shape index: {}]
  %s1 = inlined_call_operand.vmem [shape: f32[64,64], index: 1, kind: input, shape index: {}]
  %s2 = inlined_call_operand.vmem [shape: f32[1,64], index: 2, kind: input, shape index: {}]
  %s3 = inlined_call_operand.hbm [shape: f32[5,64,128], index: 3, kind: input, shape index: {}]
  %s4 = inlined_call_operand.vmem [shape: f32[1,128], index: 4, kind: input, shape index: {}]
  %s5 = inlined_call_operand.vmem [shape: f32[128,64], index: 5, kind: input, shape index: {}]
  %s6 = inlined_call_operand.vmem [shape: f32[1,64], index: 6, kind: input, shape index: {}]
  %s7 = inlined_call_operand.vmem [shape: f32[64,2], index: 7, kind: input, shape index: {}]
  %s8 = inlined_call_operand.vmem [shape: f32[1,2], index: 8, kind: input, shape index: {}]
  %s9 = inlined_call_operand.hbm [shape: f32[2,2], index: 9, kind: output, shape index: {}]
  %s10 = sld [smem:[#allocation0]]
  $region50: #{doc_model_forward.1} parent=0
    _
  %s12 = ssub.s32 1, %s10
  %s13 = scalar_select 0, %s12, %s10
  $region1: #{doc_model_forward.1} parent=0
    #allocation2 [shape = 'u8[163840]{0}', space=vmem, size = 0x28000, scoped, tag = 'input window, operand 3, single buffered']
    #allocation3 [shape = 's32[1]{0}', space=sflag, size = 0x4, scoped, tag = 'scoped memory for doc_model_forward.1']
    #allocation4 [shape = 's32[1]{0}', space=sflag, size = 0x4, scoped, tag = 'scoped memory for doc_model_forward.1']
    #allocation5 [shape = 'u8[1024]{0}', space=vmem, size = 0x400, scoped, tag = 'output window, operand 0, single buffered']
    %14 = vsyncpa [#allocation3], 0
    %15 = vsyncpa [#allocation4], 0
    // Predicated region
    $region2: #{doc_model_forward.1} parent=1 // pred_check
      _
    $region3: #{doc_model_forward.1} parent=1 // pred_check_branch
      %17 = sbr.rel (0) target = $region5
    $region4: #{doc_model_forward.1} parent=1 // pred_region
      _
    $region5: #{doc_model_forward.1} parent=1 // pred_fallthru
      _
    // Predicated region
    $region6: #{doc_model_forward.1} parent=1 // pred_check
      _
    $region7: #{doc_model_forward.1} parent=1 // pred_check_branch
      %19 = sbr.rel (0) target = $region9
    $region8: #{doc_model_forward.1} parent=1 // pred_region
      _
    $region9: #{doc_model_forward.1} parent=1 // pred_fallthru
      _
    // Predicated region
    $region10: #{doc_model_forward.1} parent=1 // pred_check
      _
    $region11: #{doc_model_forward.1} parent=1 // pred_check_branch
      %21 = sbr.rel (0) target = $region13
    $region12: #{doc_model_forward.1} parent=1 // pred_region
      _
    $region13: #{doc_model_forward.1} parent=1 // pred_fallthru
      _
    // Predicated region
    $region14: #{doc_model_forward.1} parent=1 // pred_check
      _
    $region15: #{doc_model_forward.1} parent=1 // pred_check_branch
      %23 = sbr.rel (0) target = $region17
    $region16: #{doc_model_forward.1} parent=1 // pred_region
      %s25 = ssub.s32 5120, 5120
      %26 = vsyncadd [#allocation3], %s25
      %s27 = sshll.u32 [#allocation2], 4
      %s28 = int_to_ptr.vmem [resolvable:$true] %s27
      %33 = dma.hbm_to_vmem [thread:$0]  %s3, 5120, %s28, [#allocation3], 128, 128, 8
    $region17: #{doc_model_forward.1} parent=1 // pred_fallthru
      _
    // Predicated region
    $region18: #{doc_model_forward.1} parent=1 // pred_check
      _
    $region19: #{doc_model_forward.1} parent=1 // pred_check_branch
      %35 = sbr.rel (0) target = $region21
    $region20: #{doc_model_forward.1} parent=1 // pred_region
      _
    $region21: #{doc_model_forward.1} parent=1 // pred_fallthru
      _
    // Predicated region
    $region22: #{doc_model_forward.1} parent=1 // pred_check
      _
    $region23: #{doc_model_forward.1} parent=1 // pred_check_branch
      %37 = sbr.rel (0) target = $region25
    $region24: #{doc_model_forward.1} parent=1 // pred_region
      _
    $region25: #{doc_model_forward.1} parent=1 // pred_fallthru
      _
    // Predicated region
    $region26: #{doc_model_forward.1} parent=1 // pred_check
      _
    $region27: #{doc_model_forward.1} parent=1 // pred_check_branch
      %39 = sbr.rel (0) target = $region29
    $region28: #{doc_model_forward.1} parent=1 // pred_region
      _
    $region29: #{doc_model_forward.1} parent=1 // pred_fallthru
      _
    // Predicated region
    $region30: #{doc_model_forward.1} parent=1 // pred_check
      _
    $region31: #{doc_model_forward.1} parent=1 // pred_check_branch
      %41 = sbr.rel (0) target = $region33
    $region32: #{doc_model_forward.1} parent=1 // pred_region
      _
    $region33: #{doc_model_forward.1} parent=1 // pred_fallthru
      _
    // Predicated region
    $region34: #{doc_model_forward.1} parent=1 // pred_check
      _
    $region35: #{doc_model_forward.1} parent=1 // pred_check_branch
      %43 = sbr.rel (0) target = $region37
    $region36: #{doc_model_forward.1} parent=1 // pred_region
      _
    $region37: #{doc_model_forward.1} parent=1 // pred_fallthru
      _
    // Predicated region
    $region38: #{doc_model_forward.1} parent=1 // pred_check
      _
    $region39: #{doc_model_forward.1} parent=1 // pred_check_branch
      %45 = sbr.rel (0) target = $region41
    $region40: #{doc_model_forward.1} parent=1 // pred_region
      %46 = dma.done [#allocation3], 5120
    $region41: #{doc_model_forward.1} parent=1 // pred_fallthru
      _
    %v47 = vld [vmem:[%s0] sm:$0x3]
    %v48 = vlaneseq
    %v49 = vand.u32 %v48, 127
    %v50 = vlaneseq
    %v51 = vshrl.u32 %v50, 7
    %v52 = vsub.s32 0, %v51
    %v53 = vrot.slane %v47, %v52
    %55 = vbcast.lane.b32.xlu0 %v53, 256
    %v56 = vpop.permute.xlu0 %55
    %v57 = vlaneseq
    %v58 = vshrl.u32 %v57, 7
    %v59 = vsub.s32 1, %v58
    %v60 = vrot.slane %v47, %v59
    %62 = vbcast.lane.b32.xlu0 %v60, 256
    %v63 = vpop.permute.xlu0 %62
    %vm64 = vcmp.eq.s32.totalorder %v56, %v49
    %vm65 = vcmp.eq.s32.totalorder %v63, %v49
    %v66 = vsel %vm64, 1, 0
    %v67 = vsel %vm65, 1, 0
    %v68 = vcvt.s32.f32 %v66
    %v69 = vcvt.s32.f32 %v67
    %v70 = vld [vmem:[%s1] sm:$0xff]
    %v71 = vld [vmem:[%s1 + $0x8] sm:$0xff]
    %v72 = vld [vmem:[%s1 + $0x10] sm:$0xff]
    %v73 = vld [vmem:[%s1 + $0x18] sm:$0xff]
    %v74 = vld [vmem:[%s1 + $0x20] sm:$0xff]
    %v75 = vld [vmem:[%s1 + $0x28] sm:$0xff]
    %v76 = vld [vmem:[%s1 + $0x30] sm:$0xff]
    %v77 = vld [vmem:[%s1 + $0x38] sm:$0xff]
    %v78 = vld [vmem:[%s2] sm:$0x1]
    %v80 = vlaneseq
    %v81 = vshrl.u32 %v80, 7
    %v82 = vsub.s32 0, %v81
    %v83 = vrot.slane %v78, %v82
    %vm85 = vcmask 523264
    %v87 = vsel %vm85, %v68, 0
    %v90 = vsel %vm85, %v69, 0
    %92 = vmatprep.subr.mxu0 0.0
    %v93 = vand.u32 %v70, 4294901760
    %94 = vmatpush1.msra.mxu0 %v93
    %95 = vmatprep.subr.mxu0 0.0
    %v96 = vand.u32 %v71, 4294901760
    %97 = vmatpush1.msra.mxu0 %v96
    %98 = vmatprep.subr.mxu0 0.0
    %v99 = vand.u32 %v72, 4294901760
    %100 = vmatpush1.msra.mxu0 %v99
    %101 = vmatprep.subr.mxu0 0.0
    %v102 = vand.u32 %v73, 4294901760
    %103 = vmatpush1.msra.mxu0 %v102
    %104 = vmatprep.subr.mxu0 0.0
    %v105 = vand.u32 %v74, 4294901760
    %106 = vmatpush1.msra.mxu0 %v105
    %107 = vmatprep.subr.mxu0 0.0
    %v108 = vand.u32 %v75, 4294901760
    %109 = vmatpush1.msra.mxu0 %v108
    %110 = vmatprep.subr.mxu0 0.0
    %v111 = vand.u32 %v76, 4294901760
    %112 = vmatpush1.msra.mxu0 %v111
    %113 = vmatprep.subr.mxu0 0.0
    %v114 = vand.u32 %v77, 4294901760
    %115 = vmatpush1.msra.mxu0 %v114
    %116 = vmatprep.subr.mxu0 0.0
    %117 = vmatpush1.msra.mxu0 0.0
    %118 = vmatprep.subr.mxu0 0.0
    %119 = vmatpush1.msra.mxu0 0.0
    %120 = vmatprep.subr.mxu0 0.0
    %121 = vmatpush1.msra.mxu0 0.0
    %122 = vmatprep.subr.mxu0 0.0
    %123 = vmatpush1.msra.mxu0 0.0
    %124 = vmatprep.subr.mxu0 0.0
    %125 = vmatpush1.msra.mxu0 0.0
    %126 = vmatprep.subr.mxu0 0.0
    %127 = vmatpush1.msra.mxu0 0.0
    %128 = vmatprep.subr.mxu0 0.0
    %129 = vmatpush1.msra.mxu0 0.0
    %130 = vmatprep.subr.mxu0 0.0
    %131 = vmatpush1.msra.mxu0 0.0
    %132 = vmatprep.subr.mxu0 0.0
    %133 = vmatpush1.msra.mxu0 0.0
    %134 = vmatprep.subr.mxu0 0.0
    %135 = vmatpush1.msra.mxu0 0.0
    %136 = vmatprep.subr.mxu0 0.0
    %137 = vmatpush1.msra.mxu0 0.0
    %138 = vmatprep.subr.mxu0 0.0
    %139 = vmatpush1.msra.mxu0 0.0
    %140 = vmatprep.subr.mxu0 0.0
    %141 = vmatpush1.msra.mxu0 0.0
    %142 = vmatprep.subr.mxu0 0.0
    %143 = vmatpush1.msra.mxu0 0.0
    %144 = vmatprep.subr.mxu0 0.0
    %145 = vmatpush1.msra.mxu0 0.0
    %146 = vmatprep.subr.mxu0 0.0
    %147 = vmatpush1.msra.mxu0 0.0
    %148 = vmatprep.subr.mxu0 0.0
    %149 = vmatpush1.msra.mxu0 0.0
    %150 = vmatprep.subr.mxu0 0.0
    %151 = vmatpush1.msra.mxu0 0.0
    %152 = vmatprep.subr.mxu0 0.0
    %153 = vmatpush1.msra.mxu0 0.0
    %154 = vmatprep.subr.mxu0 0.0
    %155 = vmatpush1.msra.mxu0 0.0
    %156 = vmatprep.subr.mxu0 0.0
    %157 = vmatpush1.msra.mxu0 0.0
    %158 = vmatprep.subr.mxu0 0.0
    %159 = vmatpush1.msra.mxu0 0.0
    %160 = vmatprep.subr.mxu0 0.0
    %161 = vmatpush1.msra.mxu0 0.0
    %162 = vmatprep.subr.mxu0 0.0
    %163 = vmatpush1.msra.mxu0 0.0
    %164 = vmatprep.mubr.f32.mxu0 0.0
    %v165 = vand.u32 %v87, 4294901760
    %v166 = vsub.f32 %v87, %v165
    %v167 = vand.u32 %v166, 4294901760
    %v168 = vsub.f32 %v166, %v167
    %v169 = vand.u32 %v168, 4294901760
    %170 = vmatmul.mubr.f32.gmra.mrb[0].mxu0 %v169
    %v171 = vpop.f32.mrb[0].mxu0
    %v172 = vadd.f32 %v83, %v171
    %v173 = vpop.f32.mrb[0].mxu0
    %174 = vmatprep.mubr.f32.mxu0 0.0
    %v175 = vand.u32 %v90, 4294901760
    %v176 = vsub.f32 %v90, %v175
    %v177 = vand.u32 %v176, 4294901760
    %v178 = vsub.f32 %v176, %v177
    %v179 = vand.u32 %v178, 4294901760
    %180 = vmatmul.mubr.f32.gmra.mrb[0].mxu0 %v179
    %v181 = vpop.f32.mrb[0].mxu0
    %v182 = vadd.f32 %v83, %v181
    %v183 = vpop.f32.mrb[0].mxu0
    %184 = vdwg.mxu0
    %185 = vmatprep.subr.mxu0 0.0
    %v186 = vand.u32 %v70, 4294901760
    %v187 = vsub.f32 %v70, %v186
    %v188 = vand.u32 %v187, 4294901760
    %v189 = vsub.f32 %v187, %v188
    %v190 = vand.u32 %v189, 4294901760
    %191 = vmatpush1.msra.mxu0 %v190
    %192 = vmatprep.subr.mxu0 0.0
    %v193 = vand.u32 %v71, 4294901760
    %v194 = vsub.f32 %v71, %v193
    %v195 = vand.u32 %v194, 4294901760
    %v196 = vsub.f32 %v194, %v195
    %v197 = vand.u32 %v196, 4294901760
    %198 = vmatpush1.msra.mxu0 %v197
    %199 = vmatprep.subr.mxu0 0.0
    %v200 = vand.u32 %v72, 4294901760
    %v201 = vsub.f32 %v72, %v200
    %v202 = vand.u32 %v201, 4294901760
    %v203 = vsub.f32 %v201, %v202
    %v204 = vand.u32 %v203, 4294901760
    %205 = vmatpush1.msra.mxu0 %v204
    %206 = vmatprep.subr.mxu0 0.0
    %v207 = vand.u32 %v73, 4294901760
    %v208 = vsub.f32 %v73, %v207
    %v209 = vand.u32 %v208, 4294901760
    %v210 = vsub.f32 %v208, %v209
    %v211 = vand.u32 %v210, 4294901760
    %212 = vmatpush1.msra.mxu0 %v211
    %213 = vmatprep.subr.mxu0 0.0
    %v214 = vand.u32 %v74, 4294901760
    %v215 = vsub.f32 %v74, %v214
    %v216 = vand.u32 %v215, 4294901760
    %v217 = vsub.f32 %v215, %v216
    %v218 = vand.u32 %v217, 4294901760
    %219 = vmatpush1.msra.mxu0 %v218
    %220 = vmatprep.subr.mxu0 0.0
    %v221 = vand.u32 %v75, 4294901760
    %v222 = vsub.f32 %v75, %v221
    %v223 = vand.u32 %v222, 4294901760
    %v224 = vsub.f32 %v222, %v223
    %v225 = vand.u32 %v224, 4294901760
    %226 = vmatpush1.msra.mxu0 %v225
    %227 = vmatprep.subr.mxu0 0.0
    %v228 = vand.u32 %v76, 4294901760
    %v229 = vsub.f32 %v76, %v228
    %v230 = vand.u32 %v229, 4294901760
    %v231 = vsub.f32 %v229, %v230
    %v232 = vand.u32 %v231, 4294901760
    %233 = vmatpush1.msra.mxu0 %v232
    %234 = vmatprep.subr.mxu0 0.0
    %v235 = vand.u32 %v77, 4294901760
    %v236 = vsub.f32 %v77, %v235
    %v237 = vand.u32 %v236, 4294901760
    %v238 = vsub.f32 %v236, %v237
    %v239 = vand.u32 %v238, 4294901760
    %240 = vmatpush1.msra.mxu0 %v239
    %241 = vmatprep.subr.mxu0 0.0
    %242 = vmatpush1.msra.mxu0 0.0
    %243 = vmatprep.subr.mxu0 0.0
    %244 = vmatpush1.msra.mxu0 0.0
    %245 = vmatprep.subr.mxu0 0.0
    %246 = vmatpush1.msra.mxu0 0.0
    %247 = vmatprep.subr.mxu0 0.0
    %248 = vmatpush1.msra.mxu0 0.0
    %249 = vmatprep.subr.mxu0 0.0
    %250 = vmatpush1.msra.mxu0 0.0
    %251 = vmatprep.subr.mxu0 0.0
    %252 = vmatpush1.msra.mxu0 0.0
    %253 = vmatprep.subr.mxu0 0.0
    %254 = vmatpush1.msra.mxu0 0.0
    %255 = vmatprep.subr.mxu0 0.0
    %256 = vmatpush1.msra.mxu0 0.0
    %257 = vmatprep.subr.mxu0 0.0
    %258 = vmatpush1.msra.mxu0 0.0
    %259 = vmatprep.subr.mxu0 0.0
    %260 = vmatpush1.msra.mxu0 0.0
    %261 = vmatprep.subr.mxu0 0.0
    %262 = vmatpush1.msra.mxu0 0.0
    %263 = vmatprep.subr.mxu0 0.0
    %264 = vmatpush1.msra.mxu0 0.0
    %265 = vmatprep.subr.mxu0 0.0
    %266 = vmatpush1.msra.mxu0 0.0
    %267 = vmatprep.subr.mxu0 0.0
    %268 = vmatpush1.msra.mxu0 0.0
    %269 = vmatprep.subr.mxu0 0.0
    %270 = vmatpush1.msra.mxu0 0.0
    %271 = vmatprep.subr.mxu0 0.0
    %272 = vmatpush1.msra.mxu0 0.0
    %273 = vmatprep.subr.mxu0 0.0
    %274 = vmatpush1.msra.mxu0 0.0
    %275 = vmatprep.subr.mxu0 0.0
    %276 = vmatpush1.msra.mxu0 0.0
    %277 = vmatprep.subr.mxu0 0.0
    %278 = vmatpush1.msra.mxu0 0.0
    %279 = vmatprep.subr.mxu0 0.0
    %280 = vmatpush1.msra.mxu0 0.0
    %281 = vmatprep.subr.mxu0 0.0
    %282 = vmatpush1.msra.mxu0 0.0
    %283 = vmatprep.subr.mxu0 0.0
    %284 = vmatpush1.msra.mxu0 0.0
    %285 = vmatprep.subr.mxu0 0.0
    %286 = vmatpush1.msra.mxu0 0.0
    %287 = vmatprep.subr.mxu0 0.0
    %288 = vmatpush1.msra.mxu0 0.0
    %289 = vmatprep.mubr.f32.mxu0 0.0
    %v290 = vand.u32 %v87, 4294901760
    %291 = vmatmul.mubr.f32.gmra.mrb[0].mxu0 %v290
    %v292 = vpop.f32.mrb[0].mxu0
    %v293 = vadd.f32 %v172, %v292
    %v294 = vpop.f32.mrb[0].mxu0
    %295 = vmatprep.mubr.f32.mxu0 0.0
    %v296 = vand.u32 %v90, 4294901760
    %297 = vmatmul.mubr.f32.gmra.mrb[0].mxu0 %v296
    %v298 = vpop.f32.mrb[0].mxu0
    %v299 = vadd.f32 %v182, %v298
    %v300 = vpop.f32.mrb[0].mxu0
    %301 = vdwg.mxu0
    %302 = vmatprep.subr.mxu0 0.0
    %v303 = vand.u32 %v70, 4294901760
    %v304 = vsub.f32 %v70, %v303
    %305 = vmatpush1.msra.mxu0 %v304
    %306 = vmatprep.subr.mxu0 0.0
    %v307 = vand.u32 %v71, 4294901760
    %v308 = vsub.f32 %v71, %v307
    %309 = vmatpush1.msra.mxu0 %v308
    %310 = vmatprep.subr.mxu0 0.0
    %v311 = vand.u32 %v72, 4294901760
    %v312 = vsub.f32 %v72, %v311
    %313 = vmatpush1.msra.mxu0 %v312
    %314 = vmatprep.subr.mxu0 0.0
    %v315 = vand.u32 %v73, 4294901760
    %v316 = vsub.f32 %v73, %v315
    %317 = vmatpush1.msra.mxu0 %v316
    %318 = vmatprep.subr.mxu0 0.0
    %v319 = vand.u32 %v74, 4294901760
    %v320 = vsub.f32 %v74, %v319
    %321 = vmatpush1.msra.mxu0 %v320
    %322 = vmatprep.subr.mxu0 0.0
    %v323 = vand.u32 %v75, 4294901760
    %v324 = vsub.f32 %v75, %v323
    %325 = vmatpush1.msra.mxu0 %v324
    %326 = vmatprep.subr.mxu0 0.0
    %v327 = vand.u32 %v76, 4294901760
    %v328 = vsub.f32 %v76, %v327
    %329 = vmatpush1.msra.mxu0 %v328
    %330 = vmatprep.subr.mxu0 0.0
    %v331 = vand.u32 %v77, 4294901760
    %v332 = vsub.f32 %v77, %v331
    %333 = vmatpush1.msra.mxu0 %v332
    %334 = vmatprep.subr.mxu0 0.0
    %335 = vmatpush1.msra.mxu0 0.0
    %336 = vmatprep.subr.mxu0 0.0
    %337 = vmatpush1.msra.mxu0 0.0
    %338 = vmatprep.subr.mxu0 0.0
    %339 = vmatpush1.msra.mxu0 0.0
    %340 = vmatprep.subr.mxu0 0.0
    %341 = vmatpush1.msra.mxu0 0.0
    %342 = vmatprep.subr.mxu0 0.0
    %343 = vmatpush1.msra.mxu0 0.0
    %344 = vmatprep.subr.mxu0 0.0
    %345 = vmatpush1.msra.mxu0 0.0
    %346 = vmatprep.subr.mxu0 0.0
    %347 = vmatpush1.msra.mxu0 0.0
    %348 = vmatprep.subr.mxu0 0.0
    %349 = vmatpush1.msra.mxu0 0.0
    %350 = vmatprep.subr.mxu0 0.0
    %351 = vmatpush1.msra.mxu0 0.0
    %352 = vmatprep.subr.mxu0 0.0
    %353 = vmatpush1.msra.mxu0 0.0
    %354 = vmatprep.subr.mxu0 0.0
    %355 = vmatpush1.msra.mxu0 0.0
    %356 = vmatprep.subr.mxu0 0.0
    %357 = vmatpush1.msra.mxu0 0.0
    %358 = vmatprep.subr.mxu0 0.0
    %359 = vmatpush1.msra.mxu0 0.0
    %360 = vmatprep.subr.mxu0 0.0
    %361 = vmatpush1.msra.mxu0 0.0
    %362 = vmatprep.subr.mxu0 0.0
    %363 = vmatpush1.msra.mxu0 0.0
    %364 = vmatprep.subr.mxu0 0.0
    %365 = vmatpush1.msra.mxu0 0.0
    %366 = vmatprep.subr.mxu0 0.0
    %367 = vmatpush1.msra.mxu0 0.0
    %368 = vmatprep.subr.mxu0 0.0
    %369 = vmatpush1.msra.mxu0 0.0
    %370 = vmatprep.subr.mxu0 0.0
    %371 = vmatpush1.msra.mxu0 0.0
    %372 = vmatprep.subr.mxu0 0.0
    %373 = vmatpush1.msra.mxu0 0.0
    %374 = vmatprep.subr.mxu0 0.0
    %375 = vmatpush1.msra.mxu0 0.0
    %376 = vmatprep.subr.mxu0 0.0
    %377 = vmatpush1.msra.mxu0 0.0
    %378 = vmatprep.subr.mxu0 0.0
    %379 = vmatpush1.msra.mxu0 0.0
    %380 = vmatprep.subr.mxu0 0.0
    %381 = vmatpush1.msra.mxu0 0.0
    %382 = vmatprep.mubr.f32.mxu0 0.0
    %v383 = vand.u32 %v87, 4294901760
    %v384 = vsub.f32 %v87, %v383
    %385 = vmatmul.mubr.f32.gmra.mrb[0].mxu0 %v384
    %v386 = vpop.f32.mrb[0].mxu0
    %v387 = vadd.f32 %v293, %v386
    %v388 = vpop.f32.mrb[0].mxu0
    %389 = vmatprep.mubr.f32.mxu0 0.0
    %v390 = vand.u32 %v90, 4294901760
    %v391 = vsub.f32 %v90, %v390
    %392 = vmatmul.mubr.f32.gmra.mrb[0].mxu0 %v391
    %v393 = vpop.f32.mrb[0].mxu0
    %v394 = vadd.f32 %v299, %v393
    %v395 = vpop.f32.mrb[0].mxu0
    %396 = vdwg.mxu0
    %397 = vmatprep.subr.mxu0 0.0
    %v398 = vand.u32 %v70, 4294901760
    %399 = vmatpush1.msra.mxu0 %v398
    %400 = vmatprep.subr.mxu0 0.0
    %v401 = vand.u32 %v71, 4294901760
    %402 = vmatpush1.msra.mxu0 %v401
    %403 = vmatprep.subr.mxu0 0.0
    %v404 = vand.u32 %v72, 4294901760
    %405 = vmatpush1.msra.mxu0 %v404
    %406 = vmatprep.subr.mxu0 0.0
    %v407 = vand.u32 %v73, 4294901760
    %408 = vmatpush1.msra.mxu0 %v407
    %409 = vmatprep.subr.mxu0 0.0
    %v410 = vand.u32 %v74, 4294901760
    %411 = vmatpush1.msra.mxu0 %v410
    %412 = vmatprep.subr.mxu0 0.0
    %v413 = vand.u32 %v75, 4294901760
    %414 = vmatpush1.msra.mxu0 %v413
    %415 = vmatprep.subr.mxu0 0.0
    %v416 = vand.u32 %v76, 4294901760
    %417 = vmatpush1.msra.mxu0 %v416
    %418 = vmatprep.subr.mxu0 0.0
    %v419 = vand.u32 %v77, 4294901760
    %420 = vmatpush1.msra.mxu0 %v419
    %421 = vmatprep.subr.mxu0 0.0
    %422 = vmatpush1.msra.mxu0 0.0
    %423 = vmatprep.subr.mxu0 0.0
    %424 = vmatpush1.msra.mxu0 0.0
    %425 = vmatprep.subr.mxu0 0.0
    %426 = vmatpush1.msra.mxu0 0.0
    %427 = vmatprep.subr.mxu0 0.0
    %428 = vmatpush1.msra.mxu0 0.0
    %429 = vmatprep.subr.mxu0 0.0
    %430 = vmatpush1.msra.mxu0 0.0
    %431 = vmatprep.subr.mxu0 0.0
    %432 = vmatpush1.msra.mxu0 0.0
    %433 = vmatprep.subr.mxu0 0.0
    %434 = vmatpush1.msra.mxu0 0.0
    %435 = vmatprep.subr.mxu0 0.0
    %436 = vmatpush1.msra.mxu0 0.0
    %437 = vmatprep.subr.mxu0 0.0
    %438 = vmatpush1.msra.mxu0 0.0
    %439 = vmatprep.subr.mxu0 0.0
    %440 = vmatpush1.msra.mxu0 0.0
    %441 = vmatprep.subr.mxu0 0.0
    %442 = vmatpush1.msra.mxu0 0.0
    %443 = vmatprep.subr.mxu0 0.0
    %444 = vmatpush1.msra.mxu0 0.0
    %445 = vmatprep.subr.mxu0 0.0
    %446 = vmatpush1.msra.mxu0 0.0
    %447 = vmatprep.subr.mxu0 0.0
    %448 = vmatpush1.msra.mxu0 0.0
    %449 = vmatprep.subr.mxu0 0.0
    %450 = vmatpush1.msra.mxu0 0.0
    %451 = vmatprep.subr.mxu0 0.0
    %452 = vmatpush1.msra.mxu0 0.0
    %453 = vmatprep.subr.mxu0 0.0
    %454 = vmatpush1.msra.mxu0 0.0
    %455 = vmatprep.subr.mxu0 0.0
    %456 = vmatpush1.msra.mxu0 0.0
    %457 = vmatprep.subr.mxu0 0.0
    %458 = vmatpush1.msra.mxu0 0.0
    %459 = vmatprep.subr.mxu0 0.0
    %460 = vmatpush1.msra.mxu0 0.0
    %461 = vmatprep.subr.mxu0 0.0
    %462 = vmatpush1.msra.mxu0 0.0
    %463 = vmatprep.subr.mxu0 0.0
    %464 = vmatpush1.msra.mxu0 0.0
    %465 = vmatprep.subr.mxu0 0.0
    %466 = vmatpush1.msra.mxu0 0.0
    %467 = vmatprep.subr.mxu0 0.0
    %468 = vmatpush1.msra.mxu0 0.0
    %469 = vmatprep.mubr.f32.mxu0 0.0
    %v470 = vand.u32 %v87, 4294901760
    %v471 = vsub.f32 %v87, %v470
    %v472 = vand.u32 %v471, 4294901760
    %473 = vmatmul.mubr.f32.gmra.mrb[0].mxu0 %v472
    %v474 = vpop.f32.mrb[0].mxu0
    %v475 = vadd.f32 %v387, %v474
    %v476 = vpop.f32.mrb[0].mxu0
    %477 = vmatprep.mubr.f32.mxu0 0.0
    %v478 = vand.u32 %v90, 4294901760
    %v479 = vsub.f32 %v90, %v478
    %v480 = vand.u32 %v479, 4294901760
    %481 = vmatmul.mubr.f32.gmra.mrb[0].mxu0 %v480
    %v482 = vpop.f32.mrb[0].mxu0
    %v483 = vadd.f32 %v394, %v482
    %v484 = vpop.f32.mrb[0].mxu0
    %485 = vdwg.mxu0
    %486 = vmatprep.subr.mxu0 0.0
    %v487 = vand.u32 %v70, 4294901760
    %v488 = vsub.f32 %v70, %v487
    %v489 = vand.u32 %v488, 4294901760
    %490 = vmatpush1.msra.mxu0 %v489
    %491 = vmatprep.subr.mxu0 0.0
    %v492 = vand.u32 %v71, 4294901760
    %v493 = vsub.f32 %v71, %v492
    %v494 = vand.u32 %v493, 4294901760
    %495 = vmatpush1.msra.mxu0 %v494
    %496 = vmatprep.subr.mxu0 0.0
    %v497 = vand.u32 %v72, 4294901760
    %v498 = vsub.f32 %v72, %v497
    %v499 = vand.u32 %v498, 4294901760
    %500 = vmatpush1.msra.mxu0 %v499
    %501 = vmatprep.subr.mxu0 0.0
    %v502 = vand.u32 %v73, 4294901760
    %v503 = vsub.f32 %v73, %v502
    %v504 = vand.u32 %v503, 4294901760
    %505 = vmatpush1.msra.mxu0 %v504
    %506 = vmatprep.subr.mxu0 0.0
    %v507 = vand.u32 %v74, 4294901760
    %v508 = vsub.f32 %v74, %v507
    %v509 = vand.u32 %v508, 4294901760
    %510 = vmatpush1.msra.mxu0 %v509
    %511 = vmatprep.subr.mxu0 0.0
    %v512 = vand.u32 %v75, 4294901760
    %v513 = vsub.f32 %v75, %v512
    %v514 = vand.u32 %v513, 4294901760
    %515 = vmatpush1.msra.mxu0 %v514
    %516 = vmatprep.subr.mxu0 0.0
    %v517 = vand.u32 %v76, 4294901760
    %v518 = vsub.f32 %v76, %v517
    %v519 = vand.u32 %v518, 4294901760
    %520 = vmatpush1.msra.mxu0 %v519
    %521 = vmatprep.subr.mxu0 0.0
    %v522 = vand.u32 %v77, 4294901760
    %v523 = vsub.f32 %v77, %v522
    %v524 = vand.u32 %v523, 4294901760
    %525 = vmatpush1.msra.mxu0 %v524
    %526 = vmatprep.subr.mxu0 0.0
    %527 = vmatpush1.msra.mxu0 0.0
    %528 = vmatprep.subr.mxu0 0.0
    %529 = vmatpush1.msra.mxu0 0.0
    %530 = vmatprep.subr.mxu0 0.0
    %531 = vmatpush1.msra.mxu0 0.0
    %532 = vmatprep.subr.mxu0 0.0
    %533 = vmatpush1.msra.mxu0 0.0
    %534 = vmatprep.subr.mxu0 0.0
    %535 = vmatpush1.msra.mxu0 0.0
    %536 = vmatprep.subr.mxu0 0.0
    %537 = vmatpush1.msra.mxu0 0.0
    %538 = vmatprep.subr.mxu0 0.0
    %539 = vmatpush1.msra.mxu0 0.0
    %540 = vmatprep.subr.mxu0 0.0
    %541 = vmatpush1.msra.mxu0 0.0
    %542 = vmatprep.subr.mxu0 0.0
    %543 = vmatpush1.msra.mxu0 0.0
    %544 = vmatprep.subr.mxu0 0.0
    %545 = vmatpush1.msra.mxu0 0.0
    %546 = vmatprep.subr.mxu0 0.0
    %547 = vmatpush1.msra.mxu0 0.0
    %548 = vmatprep.subr.mxu0 0.0
    %549 = vmatpush1.msra.mxu0 0.0
    %550 = vmatprep.subr.mxu0 0.0
    %551 = vmatpush1.msra.mxu0 0.0
    %552 = vmatprep.subr.mxu0 0.0
    %553 = vmatpush1.msra.mxu0 0.0
    %554 = vmatprep.subr.mxu0 0.0
    %555 = vmatpush1.msra.mxu0 0.0
    %556 = vmatprep.subr.mxu0 0.0
    %557 = vmatpush1.msra.mxu0 0.0
    %558 = vmatprep.subr.mxu0 0.0
    %559 = vmatpush1.msra.mxu0 0.0
    %560 = vmatprep.subr.mxu0 0.0
    %561 = vmatpush1.msra.mxu0 0.0
    %562 = vmatprep.subr.mxu0 0.0
    %563 = vmatpush1.msra.mxu0 0.0
    %564 = vmatprep.subr.mxu0 0.0
    %565 = vmatpush1.msra.mxu0 0.0
    %566 = vmatprep.subr.mxu0 0.0
    %567 = vmatpush1.msra.mxu0 0.0
    %568 = vmatprep.subr.mxu0 0.0
    %569 = vmatpush1.msra.mxu0 0.0
    %570 = vmatprep.subr.mxu0 0.0
    %571 = vmatpush1.msra.mxu0 0.0
    %572 = vmatprep.subr.mxu0 0.0
    %573 = vmatpush1.msra.mxu0 0.0
    %574 = vmatprep.mubr.f32.mxu0 0.0
    %v575 = vand.u32 %v87, 4294901760
    %576 = vmatmul.mubr.f32.gmra.mrb[0].mxu0 %v575
    %v577 = vpop.f32.mrb[0].mxu0
    %v578 = vadd.f32 %v475, %v577
    %v579 = vpop.f32.mrb[0].mxu0
    %580 = vmatprep.mubr.f32.mxu0 0.0
    %v581 = vand.u32 %v90, 4294901760
    %582 = vmatmul.mubr.f32.gmra.mrb[0].mxu0 %v581
    %v583 = vpop.f32.mrb[0].mxu0
    %v584 = vadd.f32 %v483, %v583
    %v585 = vpop.f32.mrb[0].mxu0
    %586 = vdwg.mxu0
    %587 = vmatprep.subr.mxu0 0.0
    %v588 = vand.u32 %v70, 4294901760
    %589 = vmatpush1.msra.mxu0 %v588
    %590 = vmatprep.subr.mxu0 0.0
    %v591 = vand.u32 %v71, 4294901760
    %592 = vmatpush1.msra.mxu0 %v591
    %593 = vmatprep.subr.mxu0 0.0
    %v594 = vand.u32 %v72, 4294901760
    %595 = vmatpush1.msra.mxu0 %v594
    %596 = vmatprep.subr.mxu0 0.0
    %v597 = vand.u32 %v73, 4294901760
    %598 = vmatpush1.msra.mxu0 %v597
    %599 = vmatprep.subr.mxu0 0.0
    %v600 = vand.u32 %v74, 4294901760
    %601 = vmatpush1.msra.mxu0 %v600
    %602 = vmatprep.subr.mxu0 0.0
    %v603 = vand.u32 %v75, 4294901760
    %604 = vmatpush1.msra.mxu0 %v603
    %605 = vmatprep.subr.mxu0 0.0
    %v606 = vand.u32 %v76, 4294901760
    %607 = vmatpush1.msra.mxu0 %v606
    %608 = vmatprep.subr.mxu0 0.0
    %v609 = vand.u32 %v77, 4294901760
    %610 = vmatpush1.msra.mxu0 %v609
    %611 = vmatprep.subr.mxu0 0.0
    %612 = vmatpush1.msra.mxu0 0.0
    %613 = vmatprep.subr.mxu0 0.0
    %614 = vmatpush1.msra.mxu0 0.0
    %615 = vmatprep.subr.mxu0 0.0
    %616 = vmatpush1.msra.mxu0 0.0
    %617 = vmatprep.subr.mxu0 0.0
    %618 = vmatpush1.msra.mxu0 0.0
    %619 = vmatprep.subr.mxu0 0.0
    %620 = vmatpush1.msra.mxu0 0.0
    %621 = vmatprep.subr.mxu0 0.0
    %622 = vmatpush1.msra.mxu0 0.0
    %623 = vmatprep.subr.mxu0 0.0
    %624 = vmatpush1.msra.mxu0 0.0
    %625 = vmatprep.subr.mxu0 0.0
    %626 = vmatpush1.msra.mxu0 0.0
    %627 = vmatprep.subr.mxu0 0.0
    %628 = vmatpush1.msra.mxu0 0.0
    %629 = vmatprep.subr.mxu0 0.0
    %630 = vmatpush1.msra.mxu0 0.0
    %631 = vmatprep.subr.mxu0 0.0
    %632 = vmatpush1.msra.mxu0 0.0
    %633 = vmatprep.subr.mxu0 0.0
    %634 = vmatpush1.msra.mxu0 0.0
    %635 = vmatprep.subr.mxu0 0.0
    %636 = vmatpush1.msra.mxu0 0.0
    %637 = vmatprep.subr.mxu0 0.0
    %638 = vmatpush1.msra.mxu0 0.0
    %639 = vmatprep.subr.mxu0 0.0
    %640 = vmatpush1.msra.mxu0 0.0
    %641 = vmatprep.subr.mxu0 0.0
    %642 = vmatpush1.msra.mxu0 0.0
    %643 = vmatprep.subr.mxu0 0.0
    %644 = vmatpush1.msra.mxu0 0.0
    %645 = vmatprep.subr.mxu0 0.0
    %646 = vmatpush1.msra.mxu0 0.0
    %647 = vmatprep.subr.mxu0 0.0
    %648 = vmatpush1.msra.mxu0 0.0
    %649 = vmatprep.subr.mxu0 0.0
    %650 = vmatpush1.msra.mxu0 0.0
    %651 = vmatprep.subr.mxu0 0.0
    %652 = vmatpush1.msra.mxu0 0.0
    %653 = vmatprep.subr.mxu0 0.0
    %654 = vmatpush1.msra.mxu0 0.0
    %655 = vmatprep.subr.mxu0 0.0
    %656 = vmatpush1.msra.mxu0 0.0
    %657 = vmatprep.subr.mxu0 0.0
    %658 = vmatpush1.msra.mxu0 0.0
    %659 = vmatprep.mubr.f32.mxu0 0.0
    %v660 = vand.u32 %v87, 4294901760
    %661 = vmatmul.mubr.f32.gmra.mrb[0].mxu0 %v660
    %v662 = vpop.f32.mrb[0].mxu0
    %v663 = vadd.f32 %v578, %v662
    %v664 = vpop.f32.mrb[0].mxu0
    %665 = vmatprep.mubr.f32.mxu0 0.0
    %v666 = vand.u32 %v90, 4294901760
    %667 = vmatmul.mubr.f32.gmra.mrb[0].mxu0 %v666
    %v668 = vpop.f32.mrb[0].mxu0
    %v669 = vadd.f32 %v584, %v668
    %v670 = vpop.f32.mrb[0].mxu0
    %671 = vdwg.mxu0
    %v672 = vmax.f32 %v663, 0.0
    %v673 = vmax.f32 %v669, 0.0
    %vm677 = vcmask 1044480
    %v678 = vrot.slane 0.0, 3
    %v679 = vrot.slane %v672, 3
    %v680 = vsel %vm677, %v678, %v679
    %v681 = vsel %vm677, %v679, %v678
    %v682 = vrot.slane %v673, 3
    %v683 = vsel %vm677, %v678, %v682
    %v684 = vsel %vm677, %v682, %v678
    %v685 = vld [vmem:[#allocation2] sm:$0xff]
    %v686 = vld [vmem:[#allocation2 + $0x8] sm:$0xff]
    %v687 = vld [vmem:[#allocation2 + $0x10] sm:$0xff]
    %v688 = vld [vmem:[#allocation2 + $0x18] sm:$0xff]
    %v689 = vld [vmem:[#allocation2 + $0x20] sm:$0xff]
    %v690 = vld [vmem:[#allocation2 + $0x28] sm:$0xff]
    %v691 = vld [vmem:[#allocation2 + $0x30] sm:$0xff]
    %v692 = vld [vmem:[#allocation2 + $0x38] sm:$0xff]
    %vm693 = vcmask 1043456
    %v694 = vrot.slane 0.0, 4
    %v695 = vrot.slane %v672, 4
    %v696 = vsel %vm693, %v694, %v695
    %v697 = vsel %vm693, %v695, %v694
    %v698 = vrot.slane %v673, 4
    %v699 = vsel %vm693, %v694, %v698
    %v700 = vsel %vm693, %v698, %v694
    %s701 = scalar_lea.vmem [#allocation2], 64
    %v702 = vld [vmem:[%s701] sm:$0xff]
    %v703 = vld [vmem:[%s701 + $0x8] sm:$0xff]
    %v704 = vld [vmem:[%s701 + $0x10] sm:$0xff]
    %v705 = vld [vmem:[%s701 + $0x18] sm:$0xff]
    %v706 = vld [vmem:[%s701 + $0x20] sm:$0xff]
    %v707 = vld [vmem:[%s701 + $0x28] sm:$0xff]
    %v708 = vld [vmem:[%s701 + $0x30] sm:$0xff]
    %v709 = vld [vmem:[%s701 + $0x38] sm:$0xff]
    %v710 = vsel %vm85, %v696, 0
    %v712 = vsel %vm85, %v697, 0
    %v714 = vsel %vm85, %v699, 0
    %v716 = vsel %vm85, %v700, 0
    %718 = vmatprep.subr.mxu0 0.0
    %v719 = vand.u32 %v702, 4294901760
    %720 = vmatpush1.msra.mxu0 %v719
    %721 = vmatprep.subr.mxu0 0.0
    %v722 = vand.u32 %v703, 4294901760
    %723 = vmatpush1.msra.mxu0 %v722
    %724 = vmatprep.subr.mxu0 0.0
    %v725 = vand.u32 %v704, 4294901760
    %726 = vmatpush1.msra.mxu0 %v725
    %727 = vmatprep.subr.mxu0 0.0
    %v728 = vand.u32 %v705, 4294901760
    %729 = vmatpush1.msra.mxu0 %v728
    %730 = vmatprep.subr.mxu0 0.0
    %v731 = vand.u32 %v706, 4294901760
    %732 = vmatpush1.msra.mxu0 %v731
    %733 = vmatprep.subr.mxu0 0.0
    %v734 = vand.u32 %v707, 4294901760
    %735 = vmatpush1.msra.mxu0 %v734
    %736 = vmatprep.subr.mxu0 0.0
    %v737 = vand.u32 %v708, 4294901760
    %738 = vmatpush1.msra.mxu0 %v737
    %739 = vmatprep.subr.mxu0 0.0
    %v740 = vand.u32 %v709, 4294901760
    %741 = vmatpush1.msra.mxu0 %v740
    %742 = vmatprep.subr.mxu0 0.0
    %743 = vmatpush1.msra.mxu0 0.0
    %744 = vmatprep.subr.mxu0 0.0
    %745 = vmatpush1.msra.mxu0 0.0
    %746 = vmatprep.subr.mxu0 0.0
    %747 = vmatpush1.msra.mxu0 0.0
    %748 = vmatprep.subr.mxu0 0.0
    %749 = vmatpush1.msra.mxu0 0.0
    %750 = vmatprep.subr.mxu0 0.0
    %751 = vmatpush1.msra.mxu0 0.0
    %752 = vmatprep.subr.mxu0 0.0
    %753 = vmatpush1.msra.mxu0 0.0
    %754 = vmatprep.subr.mxu0 0.0
    %755 = vmatpush1.msra.mxu0 0.0
    %756 = vmatprep.subr.mxu0 0.0
    %757 = vmatpush1.msra.mxu0 0.0
    %758 = vmatprep.subr.mxu0 0.0
    %759 = vmatpush1.msra.mxu0 0.0
    %760 = vmatprep.subr.mxu0 0.0
    %761 = vmatpush1.msra.mxu0 0.0
    %762 = vmatprep.subr.mxu0 0.0
    %763 = vmatpush1.msra.mxu0 0.0
    %764 = vmatprep.subr.mxu0 0.0
    %765 = vmatpush1.msra.mxu0 0.0
    %766 = vmatprep.subr.mxu0 0.0
    %767 = vmatpush1.msra.mxu0 0.0
    %768 = vmatprep.subr.mxu0 0.0
    %769 = vmatpush1.msra.mxu0 0.0
    %770 = vmatprep.subr.mxu0 0.0
    %771 = vmatpush1.msra.mxu0 0.0
    %772 = vmatprep.subr.mxu0 0.0
    %773 = vmatpush1.msra.mxu0 0.0
    %774 = vmatprep.subr.mxu0 0.0
    %775 = vmatpush1.msra.mxu0 0.0
    %776 = vmatprep.subr.mxu0 0.0
    %777 = vmatpush1.msra.mxu0 0.0
    %778 = vmatprep.subr.mxu0 0.0
    %779 = vmatpush1.msra.mxu0 0.0
    %780 = vmatprep.subr.mxu0 0.0
    %781 = vmatpush1.msra.mxu0 0.0
    %782 = vmatprep.subr.mxu0 0.0
    %783 = vmatpush1.msra.mxu0 0.0
    %784 = vmatprep.subr.mxu0 0.0
    %785 = vmatpush1.msra.mxu0 0.0
    %786 = vmatprep.subr.mxu0 0.0
    %787 = vmatpush1.msra.mxu0 0.0
    %788 = vmatprep.subr.mxu0 0.0
    %789 = vmatpush1.msra.mxu0 0.0
    %790 = vmatprep.mubr.f32.mxu0 0.0
    %v791 = vand.u32 %v710, 4294901760
    %v792 = vsub.f32 %v710, %v791
    %v793 = vand.u32 %v792, 4294901760
    %v794 = vsub.f32 %v792, %v793
    %v795 = vand.u32 %v794, 4294901760
    %796 = vmatmul.mubr.f32.gmra.mrb[0].mxu0 %v795
    %v797 = vpop.f32.mrb[0].mxu0
    %v798 = vadd.f32 0.0, %v797
    %v799 = vpop.f32.mrb[0].mxu0
    %800 = vmatprep.mubr.f32.mxu0 0.0
    %v801 = vand.u32 %v712, 4294901760
    %v802 = vsub.f32 %v712, %v801
    %v803 = vand.u32 %v802, 4294901760
    %v804 = vsub.f32 %v802, %v803
    %v805 = vand.u32 %v804, 4294901760
    %806 = vmatmul.mubr.f32.gmra.mrb[0].mxu0 %v805
    %v807 = vpop.f32.mrb[0].mxu0
    %v808 = vadd.f32 0.0, %v807
    %v809 = vpop.f32.mrb[0].mxu0
    %810 = vmatprep.mubr.f32.mxu0 0.0
    %v811 = vand.u32 %v714, 4294901760
    %v812 = vsub.f32 %v714, %v811
    %v813 = vand.u32 %v812, 4294901760
    %v814 = vsub.f32 %v812, %v813
    %v815 = vand.u32 %v814, 4294901760
    %816 = vmatmul.mubr.f32.gmra.mrb[0].mxu0 %v815
    %v817 = vpop.f32.mrb[0].mxu0
    %v818 = vadd.f32 0.0, %v817
    %v819 = vpop.f32.mrb[0].mxu0
    %820 = vmatprep.mubr.f32.mxu0 0.0
    %v821 = vand.u32 %v716, 4294901760
    %v822 = vsub.f32 %v716, %v821
    %v823 = vand.u32 %v822, 4294901760
    %v824 = vsub.f32 %v822, %v823
    %v825 = vand.u32 %v824, 4294901760
    %826 = vmatmul.mubr.f32.gmra.mrb[0].mxu0 %v825
    %v827 = vpop.f32.mrb[0].mxu0
    %v828 = vadd.f32 0.0, %v827
    %v829 = vpop.f32.mrb[0].mxu0
    %830 = vdwg.mxu0
    %831 = vmatprep.subr.mxu0 0.0
    %v832 = vand.u32 %v702, 4294901760
    %v833 = vsub.f32 %v702, %v832
    %v834 = vand.u32 %v833, 4294901760
    %v835 = vsub.f32 %v833, %v834
    %v836 = vand.u32 %v835, 4294901760
    %837 = vmatpush1.msra.mxu0 %v836
    %838 = vmatprep.subr.mxu0 0.0
    %v839 = vand.u32 %v703, 4294901760
    %v840 = vsub.f32 %v703, %v839
    %v841 = vand.u32 %v840, 4294901760
    %v842 = vsub.f32 %v840, %v841
    %v843 = vand.u32 %v842, 4294901760
    %844 = vmatpush1.msra.mxu0 %v843
    %845 = vmatprep.subr.mxu0 0.0
    %v846 = vand.u32 %v704, 4294901760
    %v847 = vsub.f32 %v704, %v846
    %v848 = vand.u32 %v847, 4294901760
    %v849 = vsub.f32 %v847, %v848
    %v850 = vand.u32 %v849, 4294901760
    %851 = vmatpush1.msra.mxu0 %v850
    %852 = vmatprep.subr.mxu0 0.0
    %v853 = vand.u32 %v705, 4294901760
    %v854 = vsub.f32 %v705, %v853
    %v855 = vand.u32 %v854, 4294901760
    %v856 = vsub.f32 %v854, %v855
    %v857 = vand.u32 %v856, 4294901760
    %858 = vmatpush1.msra.mxu0 %v857
    %859 = vmatprep.subr.mxu0 0.0
    %v860 = vand.u32 %v706, 4294901760
    %v861 = vsub.f32 %v706, %v860
    %v862 = vand.u32 %v861, 4294901760
    %v863 = vsub.f32 %v861, %v862
    %v864 = vand.u32 %v863, 4294901760
    %865 = vmatpush1.msra.mxu0 %v864
    %866 = vmatprep.subr.mxu0 0.0
    %v867 = vand.u32 %v707, 4294901760
    %v868 = vsub.f32 %v707, %v867
    %v869 = vand.u32 %v868, 4294901760
    %v870 = vsub.f32 %v868, %v869
    %v871 = vand.u32 %v870, 4294901760
    %872 = vmatpush1.msra.mxu0 %v871
    %873 = vmatprep.subr.mxu0 0.0
    %v874 = vand.u32 %v708, 4294901760
    %v875 = vsub.f32 %v708, %v874
    %v876 = vand.u32 %v875, 4294901760
    %v877 = vsub.f32 %v875, %v876
    %v878 = vand.u32 %v877, 4294901760
    %879 = vmatpush1.msra.mxu0 %v878
    %880 = vmatprep.subr.mxu0 0.0
    %v881 = vand.u32 %v709, 4294901760
    %v882 = vsub.f32 %v709, %v881
    %v883 = vand.u32 %v882, 4294901760
    %v884 = vsub.f32 %v882, %v883
    %v885 = vand.u32 %v884, 4294901760
    %886 = vmatpush1.msra.mxu0 %v885
    %887 = vmatprep.subr.mxu0 0.0
    %888 = vmatpush1.msra.mxu0 0.0
    %889 = vmatprep.subr.mxu0 0.0
    %890 = vmatpush1.msra.mxu0 0.0
    %891 = vmatprep.subr.mxu0 0.0
    %892 = vmatpush1.msra.mxu0 0.0
    %893 = vmatprep.subr.mxu0 0.0
    %894 = vmatpush1.msra.mxu0 0.0
    %895 = vmatprep.subr.mxu0 0.0
    %896 = vmatpush1.msra.mxu0 0.0
    %897 = vmatprep.subr.mxu0 0.0
    %898 = vmatpush1.msra.mxu0 0.0
    %899 = vmatprep.subr.mxu0 0.0
    %900 = vmatpush1.msra.mxu0 0.0
    %901 = vmatprep.subr.mxu0 0.0
    %902 = vmatpush1.msra.mxu0 0.0
    %903 = vmatprep.subr.mxu0 0.0
    %904 = vmatpush1.msra.mxu0 0.0
    %905 = vmatprep.subr.mxu0 0.0
    %906 = vmatpush1.msra.mxu0 0.0
    %907 = vmatprep.subr.mxu0 0.0
    %908 = vmatpush1.msra.mxu0 0.0
    %909 = vmatprep.subr.mxu0 0.0
    %910 = vmatpush1.msra.mxu0 0.0
    %911 = vmatprep.subr.mxu0 0.0
    %912 = vmatpush1.msra.mxu0 0.0
    %913 = vmatprep.subr.mxu0 0.0
    %914 = vmatpush1.msra.mxu0 0.0
    %915 = vmatprep.subr.mxu0 0.0
    %916 = vmatpush1.msra.mxu0 0.0
    %917 = vmatprep.subr.mxu0 0.0
    %918 = vmatpush1.msra.mxu0 0.0
    %919 = vmatprep.subr.mxu0 0.0
    %920 = vmatpush1.msra.mxu0 0.0
    %921 = vmatprep.subr.mxu0 0.0
    %922 = vmatpush1.msra.mxu0 0.0
    %923 = vmatprep.subr.mxu0 0.0
    %924 = vmatpush1.msra.mxu0 0.0
    %925 = vmatprep.subr.mxu0 0.0
    %926 = vmatpush1.msra.mxu0 0.0
    %927 = vmatprep.subr.mxu0 0.0
    %928 = vmatpush1.msra.mxu0 0.0
    %929 = vmatprep.subr.mxu0 0.0
    %930 = vmatpush1.msra.mxu0 0.0
    %931 = vmatprep.subr.mxu0 0.0
    %932 = vmatpush1.msra.mxu0 0.0
    %933 = vmatprep.subr.mxu0 0.0
    %934 = vmatpush1.msra.mxu0 0.0
    %935 = vmatprep.mubr.f32.mxu0 0.0
    %v936 = vand.u32 %v710, 4294901760
    %937 = vmatmul.mubr.f32.gmra.mrb[0].mxu0 %v936
    %v938 = vpop.f32.mrb[0].mxu0
    %v939 = vadd.f32 %v798, %v938
    %v940 = vpop.f32.mrb[0].mxu0
    %941 = vmatprep.mubr.f32.mxu0 0.0
    %v942 = vand.u32 %v712, 4294901760
    %943 = vmatmul.mubr.f32.gmra.mrb[0].mxu0 %v942
    %v944 = vpop.f32.mrb[0].mxu0
    %v945 = vadd.f32 %v808, %v944
    %v946 = vpop.f32.mrb[0].mxu0
    %947 = vmatprep.mubr.f32.mxu0 0.0
    %v948 = vand.u32 %v714, 4294901760
    %949 = vmatmul.mubr.f32.gmra.mrb[0].mxu0 %v948
    %v950 = vpop.f32.mrb[0].mxu0
    %v951 = vadd.f32 %v818, %v950
    %v952 = vpop.f32.mrb[0].mxu0
    %953 = vmatprep.mubr.f32.mxu0 0.0
    %v954 = vand.u32 %v716, 4294901760
    %955 = vmatmul.mubr.f32.gmra.mrb[0].mxu0 %v954
    %v956 = vpop.f32.mrb[0].mxu0
    %v957 = vadd.f32 %v828, %v956
    %v958 = vpop.f32.mrb[0].mxu0
    %959 = vdwg.mxu0
    %960 = vmatprep.subr.mxu0 0.0
    %v961 = vand.u32 %v702, 4294901760
    %v962 = vsub.f32 %v702, %v961
    %963 = vmatpush1.msra.mxu0 %v962
    %964 = vmatprep.subr.mxu0 0.0
    %v965 = vand.u32 %v703, 4294901760
    %v966 = vsub.f32 %v703, %v965
    %967 = vmatpush1.msra.mxu0 %v966
    %968 = vmatprep.subr.mxu0 0.0
    %v969 = vand.u32 %v704, 4294901760
    %v970 = vsub.f32 %v704, %v969
    %971 = vmatpush1.msra.mxu0 %v970
    %972 = vmatprep.subr.mxu0 0.0
    %v973 = vand.u32 %v705, 4294901760
    %v974 = vsub.f32 %v705, %v973
    %975 = vmatpush1.msra.mxu0 %v974
    %976 = vmatprep.subr.mxu0 0.0
    %v977 = vand.u32 %v706, 4294901760
    %v978 = vsub.f32 %v706, %v977
    %979 = vmatpush1.msra.mxu0 %v978
    %980 = vmatprep.subr.mxu0 0.0
    %v981 = vand.u32 %v707, 4294901760
    %v982 = vsub.f32 %v707, %v981
    %983 = vmatpush1.msra.mxu0 %v982
    %984 = vmatprep.subr.mxu0 0.0
    %v985 = vand.u32 %v708, 4294901760
    %v986 = vsub.f32 %v708, %v985
    %987 = vmatpush1.msra.mxu0 %v986
    %988 = vmatprep.subr.mxu0 0.0
    %v989 = vand.u32 %v709, 4294901760
    %v990 = vsub.f32 %v709, %v989
    %991 = vmatpush1.msra.mxu0 %v990
    %992 = vmatprep.subr.mxu0 0.0
    %993 = vmatpush1.msra.mxu0 0.0
    %994 = vmatprep.subr.mxu0 0.0
    %995 = vmatpush1.msra.mxu0 0.0
    %996 = vmatprep.subr.mxu0 0.0
    %997 = vmatpush1.msra.mxu0 0.0
    %998 = vmatprep.subr.mxu0 0.0
    %999 = vmatpush1.msra.mxu0 0.0
    %1000 = vmatprep.subr.mxu0 0.0
    %1001 = vmatpush1.msra.mxu0 0.0
    %1002 = vmatprep.subr.mxu0 0.0
    %1003 = vmatpush1.msra.mxu0 0.0
    %1004 = vmatprep.subr.mxu0 0.0
    %1005 = vmatpush1.msra.mxu0 0.0
    %1006 = vmatprep.subr.mxu0 0.0
    %1007 = vmatpush1.msra.mxu0 0.0
    %1008 = vmatprep.subr.mxu0 0.0
    %1009 = vmatpush1.msra.mxu0 0.0
    %1010 = vmatprep.subr.mxu0 0.0
    %1011 = vmatpush1.msra.mxu0 0.0
    %1012 = vmatprep.subr.mxu0 0.0
    %1013 = vmatpush1.msra.mxu0 0.0
    %1014 = vmatprep.subr.mxu0 0.0
    %1015 = vmatpush1.msra.mxu0 0.0
    %1016 = vmatprep.subr.mxu0 0.0
    %1017 = vmatpush1.msra.mxu0 0.0
    %1018 = vmatprep.subr.mxu0 0.0
    %1019 = vmatpush1.msra.mxu0 0.0
    %1020 = vmatprep.subr.mxu0 0.0
    %1021 = vmatpush1.msra.mxu0 0.0
    %1022 = vmatprep.subr.mxu0 0.0
    %1023 = vmatpush1.msra.mxu0 0.0
    %1024 = vmatprep.subr.mxu0 0.0
    %1025 = vmatpush1.msra.mxu0 0.0
    %1026 = vmatprep.subr.mxu0 0.0
    %1027 = vmatpush1.msra.mxu0 0.0
    %1028 = vmatprep.subr.mxu0 0.0
    %1029 = vmatpush1.msra.mxu0 0.0
    %1030 = vmatprep.subr.mxu0 0.0
    %1031 = vmatpush1.msra.mxu0 0.0
    %1032 = vmatprep.subr.mxu0 0.0
    %1033 = vmatpush1.msra.mxu0 0.0
    %1034 = vmatprep.subr.mxu0 0.0
    %1035 = vmatpush1.msra.mxu0 0.0
    %1036 = vmatprep.subr.mxu0 0.0
    %1037 = vmatpush1.msra.mxu0 0.0
    %1038 = vmatprep.subr.mxu0 0.0
    %1039 = vmatpush1.msra.mxu0 0.0
    %1040 = vmatprep.mubr.f32.mxu0 0.0
    %v1041 = vand.u32 %v710, 4294901760
    %v1042 = vsub.f32 %v710, %v1041
    %1043 = vmatmul.mubr.f32.gmra.mrb[0].mxu0 %v1042
    %v1044 = vpop.f32.mrb[0].mxu0
    %v1045 = vadd.f32 %v939, %v1044
    %v1046 = vpop.f32.mrb[0].mxu0
    %1047 = vmatprep.mubr.f32.mxu0 0.0
    %v1048 = vand.u32 %v712, 4294901760
    %v1049 = vsub.f32 %v712, %v1048
    %1050 = vmatmul.mubr.f32.gmra.mrb[0].mxu0 %v1049
    %v1051 = vpop.f32.mrb[0].mxu0
    %v1052 = vadd.f32 %v945, %v1051
    %v1053 = vpop.f32.mrb[0].mxu0
    %1054 = vmatprep.mubr.f32.mxu0 0.0
    %v1055 = vand.u32 %v714, 4294901760
    %v1056 = vsub.f32 %v714, %v1055
    %1057 = vmatmul.mubr.f32.gmra.mrb[0].mxu0 %v1056
    %v1058 = vpop.f32.mrb[0].mxu0
    %v1059 = vadd.f32 %v951, %v1058
    %v1060 = vpop.f32.mrb[0].mxu0
    %1061 = vmatprep.mubr.f32.mxu0 0.0
    %v1062 = vand.u32 %v716, 4294901760
    %v1063 = vsub.f32 %v716, %v1062
    %1064 = vmatmul.mubr.f32.gmra.mrb[0].mxu0 %v1063
    %v1065 = vpop.f32.mrb[0].mxu0
    %v1066 = vadd.f32 %v957, %v1065
    %v1067 = vpop.f32.mrb[0].mxu0
    %1068 = vdwg.mxu0
    %1069 = vmatprep.subr.mxu0 0.0
    %v1070 = vand.u32 %v702, 4294901760
    %1071 = vmatpush1.msra.mxu0 %v1070
    %1072 = vmatprep.subr.mxu0 0.0
    %v1073 = vand.u32 %v703, 4294901760
    %1074 = vmatpush1.msra.mxu0 %v1073
    %1075 = vmatprep.subr.mxu0 0.0
    %v1076 = vand.u32 %v704, 4294901760
    %1077 = vmatpush1.msra.mxu0 %v1076
    %1078 = vmatprep.subr.mxu0 0.0
    %v1079 = vand.u32 %v705, 4294901760
    %1080 = vmatpush1.msra.mxu0 %v1079
    %1081 = vmatprep.subr.mxu0 0.0
    %v1082 = vand.u32 %v706, 4294901760
    %1083 = vmatpush1.msra.mxu0 %v1082
    %1084 = vmatprep.subr.mxu0 0.0
    %v1085 = vand.u32 %v707, 4294901760
    %1086 = vmatpush1.msra.mxu0 %v1085
    %1087 = vmatprep.subr.mxu0 0.0
    %v1088 = vand.u32 %v708, 4294901760
    %1089 = vmatpush1.msra.mxu0 %v1088
    %1090 = vmatprep.subr.mxu0 0.0
    %v1091 = vand.u32 %v709, 4294901760
    %1092 = vmatpush1.msra.mxu0 %v1091
    %1093 = vmatprep.subr.mxu0 0.0
    %1094 = vmatpush1.msra.mxu0 0.0
    %1095 = vmatprep.subr.mxu0 0.0
    %1096 = vmatpush1.msra.mxu0 0.0
    %1097 = vmatprep.subr.mxu0 0.0
    %1098 = vmatpush1.msra.mxu0 0.0
    %1099 = vmatprep.subr.mxu0 0.0
    %1100 = vmatpush1.msra.mxu0 0.0
    %1101 = vmatprep.subr.mxu0 0.0
    %1102 = vmatpush1.msra.mxu0 0.0
    %1103 = vmatprep.subr.mxu0 0.0
    %1104 = vmatpush1.msra.mxu0 0.0
    %1105 = vmatprep.subr.mxu0 0.0
    %1106 = vmatpush1.msra.mxu0 0.0
    %1107 = vmatprep.subr.mxu0 0.0
    %1108 = vmatpush1.msra.mxu0 0.0
    %1109 = vmatprep.subr.mxu0 0.0
    %1110 = vmatpush1.msra.mxu0 0.0
    %1111 = vmatprep.subr.mxu0 0.0
    %1112 = vmatpush1.msra.mxu0 0.0
    %1113 = vmatprep.subr.mxu0 0.0
    %1114 = vmatpush1.msra.mxu0 0.0
    %1115 = vmatprep.subr.mxu0 0.0
    %1116 = vmatpush1.msra.mxu0 0.0
    %1117 = vmatprep.subr.mxu0 0.0
    %1118 = vmatpush1.msra.mxu0 0.0
    %1119 = vmatprep.subr.mxu0 0.0
    %1120 = vmatpush1.msra.mxu0 0.0
    %1121 = vmatprep.subr.mxu0 0.0
    %1122 = vmatpush1.msra.mxu0 0.0
    %1123 = vmatprep.subr.mxu0 0.0
    %1124 = vmatpush1.msra.mxu0 0.0
    %1125 = vmatprep.subr.mxu0 0.0
    %1126 = vmatpush1.msra.mxu0 0.0
    %1127 = vmatprep.subr.mxu0 0.0
    %1128 = vmatpush1.msra.mxu0 0.0
    %1129 = vmatprep.subr.mxu0 0.0
    %1130 = vmatpush1.msra.mxu0 0.0
    %1131 = vmatprep.subr.mxu0 0.0
    %1132 = vmatpush1.msra.mxu0 0.0
    %1133 = vmatprep.subr.mxu0 0.0
    %1134 = vmatpush1.msra.mxu0 0.0
    %1135 = vmatprep.subr.mxu0 0.0
    %1136 = vmatpush1.msra.mxu0 0.0
    %1137 = vmatprep.subr.mxu0 0.0
    %1138 = vmatpush1.msra.mxu0 0.0
    %1139 = vmatprep.subr.mxu0 0.0
    %1140 = vmatpush1.msra.mxu0 0.0
    %1141 = vmatprep.mubr.f32.mxu0 0.0
    %v1142 = vand.u32 %v710, 4294901760
    %v1143 = vsub.f32 %v710, %v1142
    %v1144 = vand.u32 %v1143, 4294901760
    %1145 = vmatmul.mubr.f32.gmra.mrb[0].mxu0 %v1144
    %v1146 = vpop.f32.mrb[0].mxu0
    %v1147 = vadd.f32 %v1045, %v1146
    %v1148 = vpop.f32.mrb[0].mxu0
    %1149 = vmatprep.mubr.f32.mxu0 0.0
    %v1150 = vand.u32 %v712, 4294901760
    %v1151 = vsub.f32 %v712, %v1150
    %v1152 = vand.u32 %v1151, 4294901760
    %1153 = vmatmul.mubr.f32.gmra.mrb[0].mxu0 %v1152
    %v1154 = vpop.f32.mrb[0].mxu0
    %v1155 = vadd.f32 %v1052, %v1154
    %v1156 = vpop.f32.mrb[0].mxu0
    %1157 = vmatprep.mubr.f32.mxu0 0.0
    %v1158 = vand.u32 %v714, 4294901760
    %v1159 = vsub.f32 %v714, %v1158
    %v1160 = vand.u32 %v1159, 4294901760
    %1161 = vmatmul.mubr.f32.gmra.mrb[0].mxu0 %v1160
    %v1162 = vpop.f32.mrb[0].mxu0
    %v1163 = vadd.f32 %v1059, %v1162
    %v1164 = vpop.f32.mrb[0].mxu0
    %1165 = vmatprep.mubr.f32.mxu0 0.0
    %v1166 = vand.u32 %v716, 4294901760
    %v1167 = vsub.f32 %v716, %v1166
    %v1168 = vand.u32 %v1167, 4294901760
    %1169 = vmatmul.mubr.f32.gmra.mrb[0].mxu0 %v1168
    %v1170 = vpop.f32.mrb[0].mxu0
    %v1171 = vadd.f32 %v1066, %v1170
    %v1172 = vpop.f32.mrb[0].mxu0
    %1173 = vdwg.mxu0
    %1174 = vmatprep.subr.mxu0 0.0
    %v1175 = vand.u32 %v702, 4294901760
    %v1176 = vsub.f32 %v702, %v1175
    %v1177 = vand.u32 %v1176, 4294901760
    %1178 = vmatpush1.msra.mxu0 %v1177
    %1179 = vmatprep.subr.mxu0 0.0
    %v1180 = vand.u32 %v703, 4294901760
    %v1181 = vsub.f32 %v703, %v1180
    %v1182 = vand.u32 %v1181, 4294901760
    %1183 = vmatpush1.msra.mxu0 %v1182
    %1184 = vmatprep.subr.mxu0 0.0
    %v1185 = vand.u32 %v704, 4294901760
    %v1186 = vsub.f32 %v704, %v1185
    %v1187 = vand.u32 %v1186, 4294901760
    %1188 = vmatpush1.msra.mxu0 %v1187
    %1189 = vmatprep.subr.mxu0 0.0
    %v1190 = vand.u32 %v705, 4294901760
    %v1191 = vsub.f32 %v705, %v1190
    %v1192 = vand.u32 %v1191, 4294901760
    %1193 = vmatpush1.msra.mxu0 %v1192
    %1194 = vmatprep.subr.mxu0 0.0
    %v1195 = vand.u32 %v706, 4294901760
    %v1196 = vsub.f32 %v706, %v1195
    %v1197 = vand.u32 %v1196, 4294901760
    %1198 = vmatpush1.msra.mxu0 %v1197
    %1199 = vmatprep.subr.mxu0 0.0
    %v1200 = vand.u32 %v707, 4294901760
    %v1201 = vsub.f32 %v707, %v1200
    %v1202 = vand.u32 %v1201, 4294901760
    %1203 = vmatpush1.msra.mxu0 %v1202
    %1204 = vmatprep.subr.mxu0 0.0
    %v1205 = vand.u32 %v708, 4294901760
    %v1206 = vsub.f32 %v708, %v1205
    %v1207 = vand.u32 %v1206, 4294901760
    %1208 = vmatpush1.msra.mxu0 %v1207
    %1209 = vmatprep.subr.mxu0 0.0
    %v1210 = vand.u32 %v709, 4294901760
    %v1211 = vsub.f32 %v709, %v1210
    %v1212 = vand.u32 %v1211, 4294901760
    %1213 = vmatpush1.msra.mxu0 %v1212
    %1214 = vmatprep.subr.mxu0 0.0
    %1215 = vmatpush1.msra.mxu0 0.0
    %1216 = vmatprep.subr.mxu0 0.0
    %1217 = vmatpush1.msra.mxu0 0.0
    %1218 = vmatprep.subr.mxu0 0.0
    %1219 = vmatpush1.msra.mxu0 0.0
    %1220 = vmatprep.subr.mxu0 0.0
    %1221 = vmatpush1.msra.mxu0 0.0
    %1222 = vmatprep.subr.mxu0 0.0
    %1223 = vmatpush1.msra.mxu0 0.0
    %1224 = vmatprep.subr.mxu0 0.0
    %1225 = vmatpush1.msra.mxu0 0.0
    %1226 = vmatprep.subr.mxu0 0.0
    %1227 = vmatpush1.msra.mxu0 0.0
    %1228 = vmatprep.subr.mxu0 0.0
    %1229 = vmatpush1.msra.mxu0 0.0
    %1230 = vmatprep.subr.mxu0 0.0
    %1231 = vmatpush1.msra.mxu0 0.0
    %1232 = vmatprep.subr.mxu0 0.0
    %1233 = vmatpush1.msra.mxu0 0.0
    %1234 = vmatprep.subr.mxu0 0.0
    %1235 = vmatpush1.msra.mxu0 0.0
    %1236 = vmatprep.subr.mxu0 0.0
    %1237 = vmatpush1.msra.mxu0 0.0
    %1238 = vmatprep.subr.mxu0 0.0
    %1239 = vmatpush1.msra.mxu0 0.0
    %1240 = vmatprep.subr.mxu0 0.0
    %1241 = vmatpush1.msra.mxu0 0.0
    %1242 = vmatprep.subr.mxu0 0.0
    %1243 = vmatpush1.msra.mxu0 0.0
    %1244 = vmatprep.subr.mxu0 0.0
    %1245 = vmatpush1.msra.mxu0 0.0
    %1246 = vmatprep.subr.mxu0 0.0
    %1247 = vmatpush1.msra.mxu0 0.0
    %1248 = vmatprep.subr.mxu0 0.0
    %1249 = vmatpush1.msra.mxu0 0.0
    %1250 = vmatprep.subr.mxu0 0.0
    %1251 = vmatpush1.msra.mxu0 0.0
    %1252 = vmatprep.subr.mxu0 0.0
    %1253 = vmatpush1.msra.mxu0 0.0
    %1254 = vmatprep.subr.mxu0 0.0
    %1255 = vmatpush1.msra.mxu0 0.0
    %1256 = vmatprep.subr.mxu0 0.0
    %1257 = vmatpush1.msra.mxu0 0.0
    %1258 = vmatprep.subr.mxu0 0.0
    %1259 = vmatpush1.msra.mxu0 0.0
    %1260 = vmatprep.subr.mxu0 0.0
    %1261 = vmatpush1.msra.mxu0 0.0
    %1262 = vmatprep.mubr.f32.mxu0 0.0
    %v1263 = vand.u32 %v710, 4294901760
    %1264 = vmatmul.mubr.f32.gmra.mrb[0].mxu0 %v1263
    %v1265 = vpop.f32.mrb[0].mxu0
    %v1266 = vadd.f32 %v1147, %v1265
    %v1267 = vpop.f32.mrb[0].mxu0
    %1268 = vmatprep.mubr.f32.mxu0 0.0
    %v1269 = vand.u32 %v712, 4294901760
    %1270 = vmatmul.mubr.f32.gmra.mrb[0].mxu0 %v1269
    %v1271 = vpop.f32.mrb[0].mxu0
    %v1272 = vadd.f32 %v1155, %v1271
    %v1273 = vpop.f32.mrb[0].mxu0
    %1274 = vmatprep.mubr.f32.mxu0 0.0
    %v1275 = vand.u32 %v714, 4294901760
    %1276 = vmatmul.mubr.f32.gmra.mrb[0].mxu0 %v1275
    %v1277 = vpop.f32.mrb[0].mxu0
    %v1278 = vadd.f32 %v1163, %v1277
    %v1279 = vpop.f32.mrb[0].mxu0
    %1280 = vmatprep.mubr.f32.mxu0 0.0
    %v1281 = vand.u32 %v716, 4294901760
    %1282 = vmatmul.mubr.f32.gmra.mrb[0].mxu0 %v1281
    %v1283 = vpop.f32.mrb[0].mxu0
    %v1284 = vadd.f32 %v1171, %v1283
    %v1285 = vpop.f32.mrb[0].mxu0
    %1286 = vdwg.mxu0
    %1287 = vmatprep.subr.mxu0 0.0
    %v1288 = vand.u32 %v702, 4294901760
    %1289 = vmatpush1.msra.mxu0 %v1288
    %1290 = vmatprep.subr.mxu0 0.0
    %v1291 = vand.u32 %v703, 4294901760
    %1292 = vmatpush1.msra.mxu0 %v1291
    %1293 = vmatprep.subr.mxu0 0.0
    %v1294 = vand.u32 %v704, 4294901760
    %1295 = vmatpush1.msra.mxu0 %v1294
    %1296 = vmatprep.subr.mxu0 0.0
    %v1297 = vand.u32 %v705, 4294901760
    %1298 = vmatpush1.msra.mxu0 %v1297
    %1299 = vmatprep.subr.mxu0 0.0
    %v1300 = vand.u32 %v706, 4294901760
    %1301 = vmatpush1.msra.mxu0 %v1300
    %1302 = vmatprep.subr.mxu0 0.0
    %v1303 = vand.u32 %v707, 4294901760
    %1304 = vmatpush1.msra.mxu0 %v1303
    %1305 = vmatprep.subr.mxu0 0.0
    %v1306 = vand.u32 %v708, 4294901760
    %1307 = vmatpush1.msra.mxu0 %v1306
    %1308 = vmatprep.subr.mxu0 0.0
    %v1309 = vand.u32 %v709, 4294901760
    %1310 = vmatpush1.msra.mxu0 %v1309
    %1311 = vmatprep.subr.mxu0 0.0
    %1312 = vmatpush1.msra.mxu0 0.0
    %1313 = vmatprep.subr.mxu0 0.0
    %1314 = vmatpush1.msra.mxu0 0.0
    %1315 = vmatprep.subr.mxu0 0.0
    %1316 = vmatpush1.msra.mxu0 0.0
    %1317 = vmatprep.subr.mxu0 0.0
    %1318 = vmatpush1.msra.mxu0 0.0
    %1319 = vmatprep.subr.mxu0 0.0
    %1320 = vmatpush1.msra.mxu0 0.0
    %1321 = vmatprep.subr.mxu0 0.0
    %1322 = vmatpush1.msra.mxu0 0.0
    %1323 = vmatprep.subr.mxu0 0.0
    %1324 = vmatpush1.msra.mxu0 0.0
    %1325 = vmatprep.subr.mxu0 0.0
    %1326 = vmatpush1.msra.mxu0 0.0
    %1327 = vmatprep.subr.mxu0 0.0
    %1328 = vmatpush1.msra.mxu0 0.0
    %1329 = vmatprep.subr.mxu0 0.0
    %1330 = vmatpush1.msra.mxu0 0.0
    %1331 = vmatprep.subr.mxu0 0.0
    %1332 = vmatpush1.msra.mxu0 0.0
    %1333 = vmatprep.subr.mxu0 0.0
    %1334 = vmatpush1.msra.mxu0 0.0
    %1335 = vmatprep.subr.mxu0 0.0
    %1336 = vmatpush1.msra.mxu0 0.0
    %1337 = vmatprep.subr.mxu0 0.0
    %1338 = vmatpush1.msra.mxu0 0.0
    %1339 = vmatprep.subr.mxu0 0.0
    %1340 = vmatpush1.msra.mxu0 0.0
    %1341 = vmatprep.subr.mxu0 0.0
    %1342 = vmatpush1.msra.mxu0 0.0
    %1343 = vmatprep.subr.mxu0 0.0
    %1344 = vmatpush1.msra.mxu0 0.0
    %1345 = vmatprep.subr.mxu0 0.0
    %1346 = vmatpush1.msra.mxu0 0.0
    %1347 = vmatprep.subr.mxu0 0.0
    %1348 = vmatpush1.msra.mxu0 0.0
    %1349 = vmatprep.subr.mxu0 0.0
    %1350 = vmatpush1.msra.mxu0 0.0
    %1351 = vmatprep.subr.mxu0 0.0
    %1352 = vmatpush1.msra.mxu0 0.0
    %1353 = vmatprep.subr.mxu0 0.0
    %1354 = vmatpush1.msra.mxu0 0.0
    %1355 = vmatprep.subr.mxu0 0.0
    %1356 = vmatpush1.msra.mxu0 0.0
    %1357 = vmatprep.subr.mxu0 0.0
    %1358 = vmatpush1.msra.mxu0 0.0
    %1359 = vmatprep.mubr.f32.mxu0 0.0
    %v1360 = vand.u32 %v710, 4294901760
    %1361 = vmatmul.mubr.f32.gmra.mrb[0].mxu0 %v1360
    %v1362 = vpop.f32.mrb[0].mxu0
    %v1363 = vadd.f32 %v1266, %v1362
    %v1364 = vpop.f32.mrb[0].mxu0
    %1365 = vmatprep.mubr.f32.mxu0 0.0
    %v1366 = vand.u32 %v712, 4294901760
    %1367 = vmatmul.mubr.f32.gmra.mrb[0].mxu0 %v1366
    %v1368 = vpop.f32.mrb[0].mxu0
    %v1369 = vadd.f32 %v1272, %v1368
    %v1370 = vpop.f32.mrb[0].mxu0
    %1371 = vmatprep.mubr.f32.mxu0 0.0
    %v1372 = vand.u32 %v714, 4294901760
    %1373 = vmatmul.mubr.f32.gmra.mrb[0].mxu0 %v1372
    %v1374 = vpop.f32.mrb[0].mxu0
    %v1375 = vadd.f32 %v1278, %v1374
    %v1376 = vpop.f32.mrb[0].mxu0
    %1377 = vmatprep.mubr.f32.mxu0 0.0
    %v1378 = vand.u32 %v716, 4294901760
    %1379 = vmatmul.mubr.f32.gmra.mrb[0].mxu0 %v1378
    %v1380 = vpop.f32.mrb[0].mxu0
    %v1381 = vadd.f32 %v1284, %v1380
    %v1382 = vpop.f32.mrb[0].mxu0
    %1383 = vdwg.mxu0
    %v1384 = vsel %vm85, %v680, 0
    %v1386 = vsel %vm85, %v681, 0
    %v1388 = vsel %vm85, %v683, 0
    %v1390 = vsel %vm85, %v684, 0
    %1392 = vmatprep.subr.mxu0 0.0
    %v1393 = vand.u32 %v685, 4294901760
    %1394 = vmatpush1.msra.mxu0 %v1393
    %1395 = vmatprep.subr.mxu0 0.0
    %v1396 = vand.u32 %v686, 4294901760
    %1397 = vmatpush1.msra.mxu0 %v1396
    %1398 = vmatprep.subr.mxu0 0.0
    %v1399 = vand.u32 %v687, 4294901760
    %1400 = vmatpush1.msra.mxu0 %v1399
    %1401 = vmatprep.subr.mxu0 0.0
    %v1402 = vand.u32 %v688, 4294901760
    %1403 = vmatpush1.msra.mxu0 %v1402
    %1404 = vmatprep.subr.mxu0 0.0
    %v1405 = vand.u32 %v689, 4294901760
    %1406 = vmatpush1.msra.mxu0 %v1405
    %1407 = vmatprep.subr.mxu0 0.0
    %v1408 = vand.u32 %v690, 4294901760
    %1409 = vmatpush1.msra.mxu0 %v1408
    %1410 = vmatprep.subr.mxu0 0.0
    %v1411 = vand.u32 %v691, 4294901760
    %1412 = vmatpush1.msra.mxu0 %v1411
    %1413 = vmatprep.subr.mxu0 0.0
    %v1414 = vand.u32 %v692, 4294901760
    %1415 = vmatpush1.msra.mxu0 %v1414
    %1416 = vmatprep.subr.mxu0 0.0
    %1417 = vmatpush1.msra.mxu0 0.0
    %1418 = vmatprep.subr.mxu0 0.0
    %1419 = vmatpush1.msra.mxu0 0.0
    %1420 = vmatprep.subr.mxu0 0.0
    %1421 = vmatpush1.msra.mxu0 0.0
    %1422 = vmatprep.subr.mxu0 0.0
    %1423 = vmatpush1.msra.mxu0 0.0
    %1424 = vmatprep.subr.mxu0 0.0
    %1425 = vmatpush1.msra.mxu0 0.0
    %1426 = vmatprep.subr.mxu0 0.0
    %1427 = vmatpush1.msra.mxu0 0.0
    %1428 = vmatprep.subr.mxu0 0.0
    %1429 = vmatpush1.msra.mxu0 0.0
    %1430 = vmatprep.subr.mxu0 0.0
    %1431 = vmatpush1.msra.mxu0 0.0
    %1432 = vmatprep.subr.mxu0 0.0
    %1433 = vmatpush1.msra.mxu0 0.0
    %1434 = vmatprep.subr.mxu0 0.0
    %1435 = vmatpush1.msra.mxu0 0.0
    %1436 = vmatprep.subr.mxu0 0.0
    %1437 = vmatpush1.msra.mxu0 0.0
    %1438 = vmatprep.subr.mxu0 0.0
    %1439 = vmatpush1.msra.mxu0 0.0
    %1440 = vmatprep.subr.mxu0 0.0
    %1441 = vmatpush1.msra.mxu0 0.0
    %1442 = vmatprep.subr.mxu0 0.0
    %1443 = vmatpush1.msra.mxu0 0.0
    %1444 = vmatprep.subr.mxu0 0.0
    %1445 = vmatpush1.msra.mxu0 0.0
    %1446 = vmatprep.subr.mxu0 0.0
    %1447 = vmatpush1.msra.mxu0 0.0
    %1448 = vmatprep.subr.mxu0 0.0
    %1449 = vmatpush1.msra.mxu0 0.0
    %1450 = vmatprep.subr.mxu0 0.0
    %1451 = vmatpush1.msra.mxu0 0.0
    %1452 = vmatprep.subr.mxu0 0.0
    %1453 = vmatpush1.msra.mxu0 0.0
    %1454 = vmatprep.subr.mxu0 0.0
    %1455 = vmatpush1.msra.mxu0 0.0
    %1456 = vmatprep.subr.mxu0 0.0
    %1457 = vmatpush1.msra.mxu0 0.0
    %1458 = vmatprep.subr.mxu0 0.0
    %1459 = vmatpush1.msra.mxu0 0.0
    %1460 = vmatprep.subr.mxu0 0.0
    %1461 = vmatpush1.msra.mxu0 0.0
    %1462 = vmatprep.subr.mxu0 0.0
    %1463 = vmatpush1.msra.mxu0 0.0
    %1464 = vmatprep.mubr.f32.mxu0 0.0
    %v1465 = vand.u32 %v1384, 4294901760
    %v1466 = vsub.f32 %v1384, %v1465
    %v1467 = vand.u32 %v1466, 4294901760
    %v1468 = vsub.f32 %v1466, %v1467
    %v1469 = vand.u32 %v1468, 4294901760
    %1470 = vmatmul.mubr.f32.gmra.mrb[0].mxu0 %v1469
    %v1471 = vpop.f32.mrb[0].mxu0
    %v1472 = vadd.f32 %v1363, %v1471
    %v1473 = vpop.f32.mrb[0].mxu0
    %1474 = vmatprep.mubr.f32.mxu0 0.0
    %v1475 = vand.u32 %v1386, 4294901760
    %v1476 = vsub.f32 %v1386, %v1475
    %v1477 = vand.u32 %v1476, 4294901760
    %v1478 = vsub.f32 %v1476, %v1477
    %v1479 = vand.u32 %v1478, 4294901760
    %1480 = vmatmul.mubr.f32.gmra.mrb[0].mxu0 %v1479
    %v1481 = vpop.f32.mrb[0].mxu0
    %v1482 = vadd.f32 %v1369, %v1481
    %v1483 = vpop.f32.mrb[0].mxu0
    %1484 = vmatprep.mubr.f32.mxu0 0.0
    %v1485 = vand.u32 %v1388, 4294901760
    %v1486 = vsub.f32 %v1388, %v1485
    %v1487 = vand.u32 %v1486, 4294901760
    %v1488 = vsub.f32 %v1486, %v1487
    %v1489 = vand.u32 %v1488, 4294901760
    %1490 = vmatmul.mubr.f32.gmra.mrb[0].mxu0 %v1489
    %v1491 = vpop.f32.mrb[0].mxu0
    %v1492 = vadd.f32 %v1375, %v1491
    %v1493 = vpop.f32.mrb[0].mxu0
    %1494 = vmatprep.mubr.f32.mxu0 0.0
    %v1495 = vand.u32 %v1390, 4294901760
    %v1496 = vsub.f32 %v1390, %v1495
    %v1497 = vand.u32 %v1496, 4294901760
    %v1498 = vsub.f32 %v1496, %v1497
    %v1499 = vand.u32 %v1498, 4294901760
    %1500 = vmatmul.mubr.f32.gmra.mrb[0].mxu0 %v1499
    %v1501 = vpop.f32.mrb[0].mxu0
    %v1502 = vadd.f32 %v1381, %v1501
    %v1503 = vpop.f32.mrb[0].mxu0
    %1504 = vdwg.mxu0
    %1505 = vmatprep.subr.mxu0 0.0
    %v1506 = vand.u32 %v685, 4294901760
    %v1507 = vsub.f32 %v685, %v1506
    %v1508 = vand.u32 %v1507, 4294901760
    %v1509 = vsub.f32 %v1507, %v1508
    %v1510 = vand.u32 %v1509, 4294901760
    %1511 = vmatpush1.msra.mxu0 %v1510
    %1512 = vmatprep.subr.mxu0 0.0
    %v1513 = vand.u32 %v686, 4294901760
    %v1514 = vsub.f32 %v686, %v1513
    %v1515 = vand.u32 %v1514, 4294901760
    %v1516 = vsub.f32 %v1514, %v1515
    %v1517 = vand.u32 %v1516, 4294901760
    %1518 = vmatpush1.msra.mxu0 %v1517
    %1519 = vmatprep.subr.mxu0 0.0
    %v1520 = vand.u32 %v687, 4294901760
    %v1521 = vsub.f32 %v687, %v1520
    %v1522 = vand.u32 %v1521, 4294901760
    %v1523 = vsub.f32 %v1521, %v1522
    %v1524 = vand.u32 %v1523, 4294901760
    %1525 = vmatpush1.msra.mxu0 %v1524
    %1526 = vmatprep.subr.mxu0 0.0
    %v1527 = vand.u32 %v688, 4294901760
    %v1528 = vsub.f32 %v688, %v1527
    %v1529 = vand.u32 %v1528, 4294901760
    %v1530 = vsub.f32 %v1528, %v1529
    %v1531 = vand.u32 %v1530, 4294901760
    %1532 = vmatpush1.msra.mxu0 %v1531
    %1533 = vmatprep.subr.mxu0 0.0
    %v1534 = vand.u32 %v689, 4294901760
    %v1535 = vsub.f32 %v689, %v1534
    %v1536 = vand.u32 %v1535, 4294901760
    %v1537 = vsub.f32 %v1535, %v1536
    %v1538 = vand.u32 %v1537, 4294901760
    %1539 = vmatpush1.msra.mxu0 %v1538
    %1540 = vmatprep.subr.mxu0 0.0
    %v1541 = vand.u32 %v690, 4294901760
    %v1542 = vsub.f32 %v690, %v1541
    %v1543 = vand.u32 %v1542, 4294901760
    %v1544 = vsub.f32 %v1542, %v1543
    %v1545 = vand.u32 %v1544, 4294901760
    %1546 = vmatpush1.msra.mxu0 %v1545
    %1547 = vmatprep.subr.mxu0 0.0
    %v1548 = vand.u32 %v691, 4294901760
    %v1549 = vsub.f32 %v691, %v1548
    %v1550 = vand.u32 %v1549, 4294901760
    %v1551 = vsub.f32 %v1549, %v1550
    %v1552 = vand.u32 %v1551, 4294901760
    %1553 = vmatpush1.msra.mxu0 %v1552
    %1554 = vmatprep.subr.mxu0 0.0
    %v1555 = vand.u32 %v692, 4294901760
    %v1556 = vsub.f32 %v692, %v1555
    %v1557 = vand.u32 %v1556, 4294901760
    %v1558 = vsub.f32 %v1556, %v1557
    %v1559 = vand.u32 %v1558, 4294901760
    %1560 = vmatpush1.msra.mxu0 %v1559
    %1561 = vmatprep.subr.mxu0 0.0
    %1562 = vmatpush1.msra.mxu0 0.0
    %1563 = vmatprep.subr.mxu0 0.0
    %1564 = vmatpush1.msra.mxu0 0.0
    %1565 = vmatprep.subr.mxu0 0.0
    %1566 = vmatpush1.msra.mxu0 0.0
    %1567 = vmatprep.subr.mxu0 0.0
    %1568 = vmatpush1.msra.mxu0 0.0
    %1569 = vmatprep.subr.mxu0 0.0
    %1570 = vmatpush1.msra.mxu0 0.0
    %1571 = vmatprep.subr.mxu0 0.0
    %1572 = vmatpush1.msra.mxu0 0.0
    %1573 = vmatprep.subr.mxu0 0.0
    %1574 = vmatpush1.msra.mxu0 0.0
    %1575 = vmatprep.subr.mxu0 0.0
    %1576 = vmatpush1.msra.mxu0 0.0
    %1577 = vmatprep.subr.mxu0 0.0
    %1578 = vmatpush1.msra.mxu0 0.0
    %1579 = vmatprep.subr.mxu0 0.0
    %1580 = vmatpush1.msra.mxu0 0.0
    %1581 = vmatprep.subr.mxu0 0.0
    %1582 = vmatpush1.msra.mxu0 0.0
    %1583 = vmatprep.subr.mxu0 0.0
    %1584 = vmatpush1.msra.mxu0 0.0
    %1585 = vmatprep.subr.mxu0 0.0
    %1586 = vmatpush1.msra.mxu0 0.0
    %1587 = vmatprep.subr.mxu0 0.0
    %1588 = vmatpush1.msra.mxu0 0.0
    %1589 = vmatprep.subr.mxu0 0.0
    %1590 = vmatpush1.msra.mxu0 0.0
    %1591 = vmatprep.subr.mxu0 0.0
    %1592 = vmatpush1.msra.mxu0 0.0
    %1593 = vmatprep.subr.mxu0 0.0
    %1594 = vmatpush1.msra.mxu0 0.0
    %1595 = vmatprep.subr.mxu0 0.0
    %1596 = vmatpush1.msra.mxu0 0.0
    %1597 = vmatprep.subr.mxu0 0.0
    %1598 = vmatpush1.msra.mxu0 0.0
    %1599 = vmatprep.subr.mxu0 0.0
    %1600 = vmatpush1.msra.mxu0 0.0
    %1601 = vmatprep.subr.mxu0 0.0
    %1602 = vmatpush1.msra.mxu0 0.0
    %1603 = vmatprep.subr.mxu0 0.0
    %1604 = vmatpush1.msra.mxu0 0.0
    %1605 = vmatprep.subr.mxu0 0.0
    %1606 = vmatpush1.msra.mxu0 0.0
    %1607 = vmatprep.subr.mxu0 0.0
    %1608 = vmatpush1.msra.mxu0 0.0
    %1609 = vmatprep.mubr.f32.mxu0 0.0
    %v1610 = vand.u32 %v1384, 4294901760
    %1611 = vmatmul.mubr.f32.gmra.mrb[0].mxu0 %v1610
    %v1612 = vpop.f32.mrb[0].mxu0
    %v1613 = vadd.f32 %v1472, %v1612
    %v1614 = vpop.f32.mrb[0].mxu0
    %1615 = vmatprep.mubr.f32.mxu0 0.0
    %v1616 = vand.u32 %v1386, 4294901760
    %1617 = vmatmul.mubr.f32.gmra.mrb[0].mxu0 %v1616
    %v1618 = vpop.f32.mrb[0].mxu0
    %v1619 = vadd.f32 %v1482, %v1618
    %v1620 = vpop.f32.mrb[0].mxu0
    %1621 = vmatprep.mubr.f32.mxu0 0.0
    %v1622 = vand.u32 %v1388, 4294901760
    %1623 = vmatmul.mubr.f32.gmra.mrb[0].mxu0 %v1622
    %v1624 = vpop.f32.mrb[0].mxu0
    %v1625 = vadd.f32 %v1492, %v1624
    %v1626 = vpop.f32.mrb[0].mxu0
    %1627 = vmatprep.mubr.f32.mxu0 0.0
    %v1628 = vand.u32 %v1390, 4294901760
    %1629 = vmatmul.mubr.f32.gmra.mrb[0].mxu0 %v1628
    %v1630 = vpop.f32.mrb[0].mxu0
    %v1631 = vadd.f32 %v1502, %v1630
    %v1632 = vpop.f32.mrb[0].mxu0
    %1633 = vdwg.mxu0
    %1634 = vmatprep.subr.mxu0 0.0
    %v1635 = vand.u32 %v685, 4294901760
    %v1636 = vsub.f32 %v685, %v1635
    %1637 = vmatpush1.msra.mxu0 %v1636
    %1638 = vmatprep.subr.mxu0 0.0
    %v1639 = vand.u32 %v686, 4294901760
    %v1640 = vsub.f32 %v686, %v1639
    %1641 = vmatpush1.msra.mxu0 %v1640
    %1642 = vmatprep.subr.mxu0 0.0
    %v1643 = vand.u32 %v687, 4294901760
    %v1644 = vsub.f32 %v687, %v1643
    %1645 = vmatpush1.msra.mxu0 %v1644
    %1646 = vmatprep.subr.mxu0 0.0
    %v1647 = vand.u32 %v688, 4294901760
    %v1648 = vsub.f32 %v688, %v1647
    %1649 = vmatpush1.msra.mxu0 %v1648
    %1650 = vmatprep.subr.mxu0 0.0
    %v1651 = vand.u32 %v689, 4294901760
    %v1652 = vsub.f32 %v689, %v1651
    %1653 = vmatpush1.msra.mxu0 %v1652
    %1654 = vmatprep.subr.mxu0 0.0
    %v1655 = vand.u32 %v690, 4294901760
    %v1656 = vsub.f32 %v690, %v1655
    %1657 = vmatpush1.msra.mxu0 %v1656
    %1658 = vmatprep.subr.mxu0 0.0
    %v1659 = vand.u32 %v691, 4294901760
    %v1660 = vsub.f32 %v691, %v1659
    %1661 = vmatpush1.msra.mxu0 %v1660
    %1662 = vmatprep.subr.mxu0 0.0
    %v1663 = vand.u32 %v692, 4294901760
    %v1664 = vsub.f32 %v692, %v1663
    %1665 = vmatpush1.msra.mxu0 %v1664
    %1666 = vmatprep.subr.mxu0 0.0
    %1667 = vmatpush1.msra.mxu0 0.0
    %1668 = vmatprep.subr.mxu0 0.0
    %1669 = vmatpush1.msra.mxu0 0.0
    %1670 = vmatprep.subr.mxu0 0.0
    %1671 = vmatpush1.msra.mxu0 0.0
    %1672 = vmatprep.subr.mxu0 0.0
    %1673 = vmatpush1.msra.mxu0 0.0
    %1674 = vmatprep.subr.mxu0 0.0
    %1675 = vmatpush1.msra.mxu0 0.0
    %1676 = vmatprep.subr.mxu0 0.0
    %1677 = vmatpush1.msra.mxu0 0.0
    %1678 = vmatprep.subr.mxu0 0.0
    %1679 = vmatpush1.msra.mxu0 0.0
    %1680 = vmatprep.subr.mxu0 0.0
    %1681 = vmatpush1.msra.mxu0 0.0
    %1682 = vmatprep.subr.mxu0 0.0
    %1683 = vmatpush1.msra.mxu0 0.0
    %1684 = vmatprep.subr.mxu0 0.0
    %1685 = vmatpush1.msra.mxu0 0.0
    %1686 = vmatprep.subr.mxu0 0.0
    %1687 = vmatpush1.msra.mxu0 0.0
    %1688 = vmatprep.subr.mxu0 0.0
    %1689 = vmatpush1.msra.mxu0 0.0
    %1690 = vmatprep.subr.mxu0 0.0
    %1691 = vmatpush1.msra.mxu0 0.0
    %1692 = vmatprep.subr.mxu0 0.0
    %1693 = vmatpush1.msra.mxu0 0.0
    %1694 = vmatprep.subr.mxu0 0.0
    %1695 = vmatpush1.msra.mxu0 0.0
    %1696 = vmatprep.subr.mxu0 0.0
    %1697 = vmatpush1.msra.mxu0 0.0
    %1698 = vmatprep.subr.mxu0 0.0
    %1699 = vmatpush1.msra.mxu0 0.0
    %1700 = vmatprep.subr.mxu0 0.0
    %1701 = vmatpush1.msra.mxu0 0.0
    %1702 = vmatprep.subr.mxu0 0.0
    %1703 = vmatpush1.msra.mxu0 0.0
    %1704 = vmatprep.subr.mxu0 0.0
    %1705 = vmatpush1.msra.mxu0 0.0
    %1706 = vmatprep.subr.mxu0 0.0
    %1707 = vmatpush1.msra.mxu0 0.0
    %1708 = vmatprep.subr.mxu0 0.0
    %1709 = vmatpush1.msra.mxu0 0.0
    %1710 = vmatprep.subr.mxu0 0.0
    %1711 = vmatpush1.msra.mxu0 0.0
    %1712 = vmatprep.subr.mxu0 0.0
    %1713 = vmatpush1.msra.mxu0 0.0
    %1714 = vmatprep.mubr.f32.mxu0 0.0
    %v1715 = vand.u32 %v1384, 4294901760
    %v1716 = vsub.f32 %v1384, %v1715
    %1717 = vmatmul.mubr.f32.gmra.mrb[0].mxu0 %v1716
    %v1718 = vpop.f32.mrb[0].mxu0
    %v1719 = vadd.f32 %v1613, %v1718
    %v1720 = vpop.f32.mrb[0].mxu0
    %1721 = vmatprep.mubr.f32.mxu0 0.0
    %v1722 = vand.u32 %v1386, 4294901760
    %v1723 = vsub.f32 %v1386, %v1722
    %1724 = vmatmul.mubr.f32.gmra.mrb[0].mxu0 %v1723
    %v1725 = vpop.f32.mrb[0].mxu0
    %v1726 = vadd.f32 %v1619, %v1725
    %v1727 = vpop.f32.mrb[0].mxu0
    %1728 = vmatprep.mubr.f32.mxu0 0.0
    %v1729 = vand.u32 %v1388, 4294901760
    %v1730 = vsub.f32 %v1388, %v1729
    %1731 = vmatmul.mubr.f32.gmra.mrb[0].mxu0 %v1730
    %v1732 = vpop.f32.mrb[0].mxu0
    %v1733 = vadd.f32 %v1625, %v1732
    %v1734 = vpop.f32.mrb[0].mxu0
    %1735 = vmatprep.mubr.f32.mxu0 0.0
    %v1736 = vand.u32 %v1390, 4294901760
    %v1737 = vsub.f32 %v1390, %v1736
    %1738 = vmatmul.mubr.f32.gmra.mrb[0].mxu0 %v1737
    %v1739 = vpop.f32.mrb[0].mxu0
    %v1740 = vadd.f32 %v1631, %v1739
    %v1741 = vpop.f32.mrb[0].mxu0
    %1742 = vdwg.mxu0
    %1743 = vmatprep.subr.mxu0 0.0
    %v1744 = vand.u32 %v685, 4294901760
    %1745 = vmatpush1.msra.mxu0 %v1744
    %1746 = vmatprep.subr.mxu0 0.0
    %v1747 = vand.u32 %v686, 4294901760
    %1748 = vmatpush1.msra.mxu0 %v1747
    %1749 = vmatprep.subr.mxu0 0.0
    %v1750 = vand.u32 %v687, 4294901760
    %1751 = vmatpush1.msra.mxu0 %v1750
    %1752 = vmatprep.subr.mxu0 0.0
    %v1753 = vand.u32 %v688, 4294901760
    %1754 = vmatpush1.msra.mxu0 %v1753
    %1755 = vmatprep.subr.mxu0 0.0
    %v1756 = vand.u32 %v689, 4294901760
    %1757 = vmatpush1.msra.mxu0 %v1756
    %1758 = vmatprep.subr.mxu0 0.0
    %v1759 = vand.u32 %v690, 4294901760
    %1760 = vmatpush1.msra.mxu0 %v1759
    %1761 = vmatprep.subr.mxu0 0.0
    %v1762 = vand.u32 %v691, 4294901760
    %1763 = vmatpush1.msra.mxu0 %v1762
    %1764 = vmatprep.subr.mxu0 0.0
    %v1765 = vand.u32 %v692, 4294901760
    %1766 = vmatpush1.msra.mxu0 %v1765
    %1767 = vmatprep.subr.mxu0 0.0
    %1768 = vmatpush1.msra.mxu0 0.0
    %1769 = vmatprep.subr.mxu0 0.0
    %1770 = vmatpush1.msra.mxu0 0.0
    %1771 = vmatprep.subr.mxu0 0.0
    %1772 = vmatpush1.msra.mxu0 0.0
    %1773 = vmatprep.subr.mxu0 0.0
    %1774 = vmatpush1.msra.mxu0 0.0
    %1775 = vmatprep.subr.mxu0 0.0
    %1776 = vmatpush1.msra.mxu0 0.0
    %1777 = vmatprep.subr.mxu0 0.0
    %1778 = vmatpush1.msra.mxu0 0.0
    %1779 = vmatprep.subr.mxu0 0.0
    %1780 = vmatpush1.msra.mxu0 0.0
    %1781 = vmatprep.subr.mxu0 0.0
    %1782 = vmatpush1.msra.mxu0 0.0
    %1783 = vmatprep.subr.mxu0 0.0
    %1784 = vmatpush1.msra.mxu0 0.0
    %1785 = vmatprep.subr.mxu0 0.0
    %1786 = vmatpush1.msra.mxu0 0.0
    %1787 = vmatprep.subr.mxu0 0.0
    %1788 = vmatpush1.msra.mxu0 0.0
    %1789 = vmatprep.subr.mxu0 0.0
    %1790 = vmatpush1.msra.mxu0 0.0
    %1791 = vmatprep.subr.mxu0 0.0
    %1792 = vmatpush1.msra.mxu0 0.0
    %1793 = vmatprep.subr.mxu0 0.0
    %1794 = vmatpush1.msra.mxu0 0.0
    %1795 = vmatprep.subr.mxu0 0.0
    %1796 = vmatpush1.msra.mxu0 0.0
    %1797 = vmatprep.subr.mxu0 0.0
    %1798 = vmatpush1.msra.mxu0 0.0
    %1799 = vmatprep.subr.mxu0 0.0
    %1800 = vmatpush1.msra.mxu0 0.0
    %1801 = vmatprep.subr.mxu0 0.0
    %1802 = vmatpush1.msra.mxu0 0.0
    %1803 = vmatprep.subr.mxu0 0.0
    %1804 = vmatpush1.msra.mxu0 0.0
    %1805 = vmatprep.subr.mxu0 0.0
    %1806 = vmatpush1.msra.mxu0 0.0
    %1807 = vmatprep.subr.mxu0 0.0
    %1808 = vmatpush1.msra.mxu0 0.0
    %1809 = vmatprep.subr.mxu0 0.0
    %1810 = vmatpush1.msra.mxu0 0.0
    %1811 = vmatprep.subr.mxu0 0.0
    %1812 = vmatpush1.msra.mxu0 0.0
    %1813 = vmatprep.subr.mxu0 0.0
    %1814 = vmatpush1.msra.mxu0 0.0
    %1815 = vmatprep.mubr.f32.mxu0 0.0
    %v1816 = vand.u32 %v1384, 4294901760
    %v1817 = vsub.f32 %v1384, %v1816
    %v1818 = vand.u32 %v1817, 4294901760
    %1819 = vmatmul.mubr.f32.gmra.mrb[0].mxu0 %v1818
    %v1820 = vpop.f32.mrb[0].mxu0
    %v1821 = vadd.f32 %v1719, %v1820
    %v1822 = vpop.f32.mrb[0].mxu0
    %1823 = vmatprep.mubr.f32.mxu0 0.0
    %v1824 = vand.u32 %v1386, 4294901760
    %v1825 = vsub.f32 %v1386, %v1824
    %v1826 = vand.u32 %v1825, 4294901760
    %1827 = vmatmul.mubr.f32.gmra.mrb[0].mxu0 %v1826
    %v1828 = vpop.f32.mrb[0].mxu0
    %v1829 = vadd.f32 %v1726, %v1828
    %v1830 = vpop.f32.mrb[0].mxu0
    %1831 = vmatprep.mubr.f32.mxu0 0.0
    %v1832 = vand.u32 %v1388, 4294901760
    %v1833 = vsub.f32 %v1388, %v1832
    %v1834 = vand.u32 %v1833, 4294901760
    %1835 = vmatmul.mubr.f32.gmra.mrb[0].mxu0 %v1834
    %v1836 = vpop.f32.mrb[0].mxu0
    %v1837 = vadd.f32 %v1733, %v1836
    %v1838 = vpop.f32.mrb[0].mxu0
    %1839 = vmatprep.mubr.f32.mxu0 0.0
    %v1840 = vand.u32 %v1390, 4294901760
    %v1841 = vsub.f32 %v1390, %v1840
    %v1842 = vand.u32 %v1841, 4294901760
    %1843 = vmatmul.mubr.f32.gmra.mrb[0].mxu0 %v1842
    %v1844 = vpop.f32.mrb[0].mxu0
    %v1845 = vadd.f32 %v1740, %v1844
    %v1846 = vpop.f32.mrb[0].mxu0
    %1847 = vdwg.mxu0
    %1848 = vmatprep.subr.mxu0 0.0
    %v1849 = vand.u32 %v685, 4294901760
    %v1850 = vsub.f32 %v685, %v1849
    %v1851 = vand.u32 %v1850, 4294901760
    %1852 = vmatpush1.msra.mxu0 %v1851
    %1853 = vmatprep.subr.mxu0 0.0
    %v1854 = vand.u32 %v686, 4294901760
    %v1855 = vsub.f32 %v686, %v1854
    %v1856 = vand.u32 %v1855, 4294901760
    %1857 = vmatpush1.msra.mxu0 %v1856
    %1858 = vmatprep.subr.mxu0 0.0
    %v1859 = vand.u32 %v687, 4294901760
    %v1860 = vsub.f32 %v687, %v1859
    %v1861 = vand.u32 %v1860, 4294901760
    %1862 = vmatpush1.msra.mxu0 %v1861
    %1863 = vmatprep.subr.mxu0 0.0
    %v1864 = vand.u32 %v688, 4294901760
    %v1865 = vsub.f32 %v688, %v1864
    %v1866 = vand.u32 %v1865, 4294901760
    %1867 = vmatpush1.msra.mxu0 %v1866
    %1868 = vmatprep.subr.mxu0 0.0
    %v1869 = vand.u32 %v689, 4294901760
    %v1870 = vsub.f32 %v689, %v1869
    %v1871 = vand.u32 %v1870, 4294901760
    %1872 = vmatpush1.msra.mxu0 %v1871
    %1873 = vmatprep.subr.mxu0 0.0
    %v1874 = vand.u32 %v690, 4294901760
    %v1875 = vsub.f32 %v690, %v1874
    %v1876 = vand.u32 %v1875, 4294901760
    %1877 = vmatpush1.msra.mxu0 %v1876
    %1878 = vmatprep.subr.mxu0 0.0
    %v1879 = vand.u32 %v691, 4294901760
    %v1880 = vsub.f32 %v691, %v1879
    %v1881 = vand.u32 %v1880, 4294901760
    %1882 = vmatpush1.msra.mxu0 %v1881
    %1883 = vmatprep.subr.mxu0 0.0
    %v1884 = vand.u32 %v692, 4294901760
    %v1885 = vsub.f32 %v692, %v1884
    %v1886 = vand.u32 %v1885, 4294901760
    %1887 = vmatpush1.msra.mxu0 %v1886
    %1888 = vmatprep.subr.mxu0 0.0
    %1889 = vmatpush1.msra.mxu0 0.0
    %1890 = vmatprep.subr.mxu0 0.0
    %1891 = vmatpush1.msra.mxu0 0.0
    %1892 = vmatprep.subr.mxu0 0.0
    %1893 = vmatpush1.msra.mxu0 0.0
    %1894 = vmatprep.subr.mxu0 0.0
    %1895 = vmatpush1.msra.mxu0 0.0
    %1896 = vmatprep.subr.mxu0 0.0
    %1897 = vmatpush1.msra.mxu0 0.0
    %1898 = vmatprep.subr.mxu0 0.0
    %1899 = vmatpush1.msra.mxu0 0.0
    %1900 = vmatprep.subr.mxu0 0.0
    %1901 = vmatpush1.msra.mxu0 0.0
    %1902 = vmatprep.subr.mxu0 0.0
    %1903 = vmatpush1.msra.mxu0 0.0
    %1904 = vmatprep.subr.mxu0 0.0
    %1905 = vmatpush1.msra.mxu0 0.0
    %1906 = vmatprep.subr.mxu0 0.0
    %1907 = vmatpush1.msra.mxu0 0.0
    %1908 = vmatprep.subr.mxu0 0.0
    %1909 = vmatpush1.msra.mxu0 0.0
    %1910 = vmatprep.subr.mxu0 0.0
    %1911 = vmatpush1.msra.mxu0 0.0
    %1912 = vmatprep.subr.mxu0 0.0
    %1913 = vmatpush1.msra.mxu0 0.0
    %1914 = vmatprep.subr.mxu0 0.0
    %1915 = vmatpush1.msra.mxu0 0.0
    %1916 = vmatprep.subr.mxu0 0.0
    %1917 = vmatpush1.msra.mxu0 0.0
    %1918 = vmatprep.subr.mxu0 0.0
    %1919 = vmatpush1.msra.mxu0 0.0
    %1920 = vmatprep.subr.mxu0 0.0
    %1921 = vmatpush1.msra.mxu0 0.0
    %1922 = vmatprep.subr.mxu0 0.0
    %1923 = vmatpush1.msra.mxu0 0.0
    %1924 = vmatprep.subr.mxu0 0.0
    %1925 = vmatpush1.msra.mxu0 0.0
    %1926 = vmatprep.subr.mxu0 0.0
    %1927 = vmatpush1.msra.mxu0 0.0
    %1928 = vmatprep.subr.mxu0 0.0
    %1929 = vmatpush1.msra.mxu0 0.0
    %1930 = vmatprep.subr.mxu0 0.0
    %1931 = vmatpush1.msra.mxu0 0.0
    %1932 = vmatprep.subr.mxu0 0.0
    %1933 = vmatpush1.msra.mxu0 0.0
    %1934 = vmatprep.subr.mxu0 0.0
    %1935 = vmatpush1.msra.mxu0 0.0
    %1936 = vmatprep.mubr.f32.mxu0 0.0
    %v1937 = vand.u32 %v1384, 4294901760
    %1938 = vmatmul.mubr.f32.gmra.mrb[0].mxu0 %v1937
    %v1939 = vpop.f32.mrb[0].mxu0
    %v1940 = vadd.f32 %v1821, %v1939
    %v1941 = vpop.f32.mrb[0].mxu0
    %1942 = vmatprep.mubr.f32.mxu0 0.0
    %v1943 = vand.u32 %v1386, 4294901760
    %1944 = vmatmul.mubr.f32.gmra.mrb[0].mxu0 %v1943
    %v1945 = vpop.f32.mrb[0].mxu0
    %v1946 = vadd.f32 %v1829, %v1945
    %v1947 = vpop.f32.mrb[0].mxu0
    %1948 = vmatprep.mubr.f32.mxu0 0.0
    %v1949 = vand.u32 %v1388, 4294901760
    %1950 = vmatmul.mubr.f32.gmra.mrb[0].mxu0 %v1949
    %v1951 = vpop.f32.mrb[0].mxu0
    %v1952 = vadd.f32 %v1837, %v1951
    %v1953 = vpop.f32.mrb[0].mxu0
    %1954 = vmatprep.mubr.f32.mxu0 0.0
    %v1955 = vand.u32 %v1390, 4294901760
    %1956 = vmatmul.mubr.f32.gmra.mrb[0].mxu0 %v1955
    %v1957 = vpop.f32.mrb[0].mxu0
    %v1958 = vadd.f32 %v1845, %v1957
    %v1959 = vpop.f32.mrb[0].mxu0
    %1960 = vdwg.mxu0
    %1961 = vmatprep.subr.mxu0 0.0
    %v1962 = vand.u32 %v685, 4294901760
    %1963 = vmatpush1.msra.mxu0 %v1962
    %1964 = vmatprep.subr.mxu0 0.0
    %v1965 = vand.u32 %v686, 4294901760
    %1966 = vmatpush1.msra.mxu0 %v1965
    %1967 = vmatprep.subr.mxu0 0.0
    %v1968 = vand.u32 %v687, 4294901760
    %1969 = vmatpush1.msra.mxu0 %v1968
    %1970 = vmatprep.subr.mxu0 0.0
    %v1971 = vand.u32 %v688, 4294901760
    %1972 = vmatpush1.msra.mxu0 %v1971
    %1973 = vmatprep.subr.mxu0 0.0
    %v1974 = vand.u32 %v689, 4294901760
    %1975 = vmatpush1.msra.mxu0 %v1974
    %1976 = vmatprep.subr.mxu0 0.0
    %v1977 = vand.u32 %v690, 4294901760
    %1978 = vmatpush1.msra.mxu0 %v1977
    %1979 = vmatprep.subr.mxu0 0.0
    %v1980 = vand.u32 %v691, 4294901760
    %1981 = vmatpush1.msra.mxu0 %v1980
    %1982 = vmatprep.subr.mxu0 0.0
    %v1983 = vand.u32 %v692, 4294901760
    %1984 = vmatpush1.msra.mxu0 %v1983
    %1985 = vmatprep.subr.mxu0 0.0
    %1986 = vmatpush1.msra.mxu0 0.0
    %1987 = vmatprep.subr.mxu0 0.0
    %1988 = vmatpush1.msra.mxu0 0.0
    %1989 = vmatprep.subr.mxu0 0.0
    %1990 = vmatpush1.msra.mxu0 0.0
    %1991 = vmatprep.subr.mxu0 0.0
    %1992 = vmatpush1.msra.mxu0 0.0
    %1993 = vmatprep.subr.mxu0 0.0
    %1994 = vmatpush1.msra.mxu0 0.0
    %1995 = vmatprep.subr.mxu0 0.0
    %1996 = vmatpush1.msra.mxu0 0.0
    %1997 = vmatprep.subr.mxu0 0.0
    %1998 = vmatpush1.msra.mxu0 0.0
    %1999 = vmatprep.subr.mxu0 0.0
    %2000 = vmatpush1.msra.mxu0 0.0
    %2001 = vmatprep.subr.mxu0 0.0
    %2002 = vmatpush1.msra.mxu0 0.0
    %2003 = vmatprep.subr.mxu0 0.0
    %2004 = vmatpush1.msra.mxu0 0.0
    %2005 = vmatprep.subr.mxu0 0.0
    %2006 = vmatpush1.msra.mxu0 0.0
    %2007 = vmatprep.subr.mxu0 0.0
    %2008 = vmatpush1.msra.mxu0 0.0
    %2009 = vmatprep.subr.mxu0 0.0
    %2010 = vmatpush1.msra.mxu0 0.0
    %2011 = vmatprep.subr.mxu0 0.0
    %2012 = vmatpush1.msra.mxu0 0.0
    %2013 = vmatprep.subr.mxu0 0.0
    %2014 = vmatpush1.msra.mxu0 0.0
    %2015 = vmatprep.subr.mxu0 0.0
    %2016 = vmatpush1.msra.mxu0 0.0
    %2017 = vmatprep.subr.mxu0 0.0
    %2018 = vmatpush1.msra.mxu0 0.0
    %2019 = vmatprep.subr.mxu0 0.0
    %2020 = vmatpush1.msra.mxu0 0.0
    %2021 = vmatprep.subr.mxu0 0.0
    %2022 = vmatpush1.msra.mxu0 0.0
    %2023 = vmatprep.subr.mxu0 0.0
    %2024 = vmatpush1.msra.mxu0 0.0
    %2025 = vmatprep.subr.mxu0 0.0
    %2026 = vmatpush1.msra.mxu0 0.0
    %2027 = vmatprep.subr.mxu0 0.0
    %2028 = vmatpush1.msra.mxu0 0.0
    %2029 = vmatprep.subr.mxu0 0.0
    %2030 = vmatpush1.msra.mxu0 0.0
    %2031 = vmatprep.subr.mxu0 0.0
    %2032 = vmatpush1.msra.mxu0 0.0
    %2033 = vmatprep.mubr.f32.mxu0 0.0
    %v2034 = vand.u32 %v1384, 4294901760
    %2035 = vmatmul.mubr.f32.gmra.mrb[0].mxu0 %v2034
    %v2036 = vpop.f32.mrb[0].mxu0
    %v2037 = vadd.f32 %v1940, %v2036
    %v2038 = vpop.f32.mrb[0].mxu0
    %2039 = vmatprep.mubr.f32.mxu0 0.0
    %v2040 = vand.u32 %v1386, 4294901760
    %2041 = vmatmul.mubr.f32.gmra.mrb[0].mxu0 %v2040
    %v2042 = vpop.f32.mrb[0].mxu0
    %v2043 = vadd.f32 %v1946, %v2042
    %v2044 = vpop.f32.mrb[0].mxu0
    %2045 = vmatprep.mubr.f32.mxu0 0.0
    %v2046 = vand.u32 %v1388, 4294901760
    %2047 = vmatmul.mubr.f32.gmra.mrb[0].mxu0 %v2046
    %v2048 = vpop.f32.mrb[0].mxu0
    %v2049 = vadd.f32 %v1952, %v2048
    %v2050 = vpop.f32.mrb[0].mxu0
    %2051 = vmatprep.mubr.f32.mxu0 0.0
    %v2052 = vand.u32 %v1390, 4294901760
    %2053 = vmatmul.mubr.f32.gmra.mrb[0].mxu0 %v2052
    %v2054 = vpop.f32.mrb[0].mxu0
    %v2055 = vadd.f32 %v1958, %v2054
    %v2056 = vpop.f32.mrb[0].mxu0
    %2057 = vdwg.mxu0
    %vm2058 = vcmask 1042432
    %v2059 = vrot.slane 0.0, 5
    %v2060 = vrot.slane %v672, 5
    %v2061 = vsel %vm2058, %v2059, %v2060
    %v2062 = vsel %vm2058, %v2060, %v2059
    %v2063 = vrot.slane %v673, 5
    %v2064 = vsel %vm2058, %v2059, %v2063
    %v2065 = vsel %vm2058, %v2063, %v2059
    %s2066 = scalar_lea.vmem [#allocation2], 128
    %v2067 = vld [vmem:[%s2066] sm:$0xff]
    %v2068 = vld [vmem:[%s2066 + $0x8] sm:$0xff]
    %v2069 = vld [vmem:[%s2066 + $0x10] sm:$0xff]
    %v2070 = vld [vmem:[%s2066 + $0x18] sm:$0xff]
    %v2071 = vld [vmem:[%s2066 + $0x20] sm:$0xff]
    %v2072 = vld [vmem:[%s2066 + $0x28] sm:$0xff]
    %v2073 = vld [vmem:[%s2066 + $0x30] sm:$0xff]
    %v2074 = vld [vmem:[%s2066 + $0x38] sm:$0xff]
    %v2075 = vsel %vm85, %v2061, 0
    %v2077 = vsel %vm85, %v2062, 0
    %v2079 = vsel %vm85, %v2064, 0
    %v2081 = vsel %vm85, %v2065, 0
    %2083 = vmatprep.subr.mxu0 0.0
    %v2084 = vand.u32 %v2067, 4294901760
    %2085 = vmatpush1.msra.mxu0 %v2084
    %2086 = vmatprep.subr.mxu0 0.0
    %v2087 = vand.u32 %v2068, 4294901760
    %2088 = vmatpush1.msra.mxu0 %v2087
    %2089 = vmatprep.subr.mxu0 0.0
    %v2090 = vand.u32 %v2069, 4294901760
    %2091 = vmatpush1.msra.mxu0 %v2090
    %2092 = vmatprep.subr.mxu0 0.0
    %v2093 = vand.u32 %v2070, 4294901760
    %2094 = vmatpush1.msra.mxu0 %v2093
    %2095 = vmatprep.subr.mxu0 0.0
    %v2096 = vand.u32 %v2071, 4294901760
    %2097 = vmatpush1.msra.mxu0 %v2096
    %2098 = vmatprep.subr.mxu0 0.0
    %v2099 = vand.u32 %v2072, 4294901760
    %2100 = vmatpush1.msra.mxu0 %v2099
    %2101 = vmatprep.subr.mxu0 0.0
    %v2102 = vand.u32 %v2073, 4294901760
    %2103 = vmatpush1.msra.mxu0 %v2102
    %2104 = vmatprep.subr.mxu0 0.0
    %v2105 = vand.u32 %v2074, 4294901760
    %2106 = vmatpush1.msra.mxu0 %v2105
    %2107 = vmatprep.subr.mxu0 0.0
    %2108 = vmatpush1.msra.mxu0 0.0
    %2109 = vmatprep.subr.mxu0 0.0
    %2110 = vmatpush1.msra.mxu0 0.0
    %2111 = vmatprep.subr.mxu0 0.0
    %2112 = vmatpush1.msra.mxu0 0.0
    %2113 = vmatprep.subr.mxu0 0.0
    %2114 = vmatpush1.msra.mxu0 0.0
    %2115 = vmatprep.subr.mxu0 0.0
    %2116 = vmatpush1.msra.mxu0 0.0
    %2117 = vmatprep.subr.mxu0 0.0
    %2118 = vmatpush1.msra.mxu0 0.0
    %2119 = vmatprep.subr.mxu0 0.0
    %2120 = vmatpush1.msra.mxu0 0.0
    %2121 = vmatprep.subr.mxu0 0.0
    %2122 = vmatpush1.msra.mxu0 0.0
    %2123 = vmatprep.subr.mxu0 0.0
    %2124 = vmatpush1.msra.mxu0 0.0
    %2125 = vmatprep.subr.mxu0 0.0
    %2126 = vmatpush1.msra.mxu0 0.0
    %2127 = vmatprep.subr.mxu0 0.0
    %2128 = vmatpush1.msra.mxu0 0.0
    %2129 = vmatprep.subr.mxu0 0.0
    %2130 = vmatpush1.msra.mxu0 0.0
    %2131 = vmatprep.subr.mxu0 0.0
    %2132 = vmatpush1.msra.mxu0 0.0
    %2133 = vmatprep.subr.mxu0 0.0
    %2134 = vmatpush1.msra.mxu0 0.0
    %2135 = vmatprep.subr.mxu0 0.0
    %2136 = vmatpush1.msra.mxu0 0.0
    %2137 = vmatprep.subr.mxu0 0.0
    %2138 = vmatpush1.msra.mxu0 0.0
    %2139 = vmatprep.subr.mxu0 0.0
    %2140 = vmatpush1.msra.mxu0 0.0
    %2141 = vmatprep.subr.mxu0 0.0
    %2142 = vmatpush1.msra.mxu0 0.0
    %2143 = vmatprep.subr.mxu0 0.0
    %2144 = vmatpush1.msra.mxu0 0.0
    %2145 = vmatprep.subr.mxu0 0.0
    %2146 = vmatpush1.msra.mxu0 0.0
    %2147 = vmatprep.subr.mxu0 0.0
    %2148 = vmatpush1.msra.mxu0 0.0
    %2149 = vmatprep.subr.mxu0 0.0
    %2150 = vmatpush1.msra.mxu0 0.0
    %2151 = vmatprep.subr.mxu0 0.0
    %2152 = vmatpush1.msra.mxu0 0.0
    %2153 = vmatprep.subr.mxu0 0.0
    %2154 = vmatpush1.msra.mxu0 0.0
    %2155 = vmatprep.mubr.f32.mxu0 0.0
    %v2156 = vand.u32 %v2075, 4294901760
    %v2157 = vsub.f32 %v2075, %v2156
    %v2158 = vand.u32 %v2157, 4294901760
    %v2159 = vsub.f32 %v2157, %v2158
    %v2160 = vand.u32 %v2159, 4294901760
    %2161 = vmatmul.mubr.f32.gmra.mrb[0].mxu0 %v2160
    %v2162 = vpop.f32.mrb[0].mxu0
    %v2163 = vadd.f32 0.0, %v2162
    %v2164 = vpop.f32.mrb[0].mxu0
    %2165 = vmatprep.mubr.f32.mxu0 0.0
    %v2166 = vand.u32 %v2077, 4294901760
    %v2167 = vsub.f32 %v2077, %v2166
    %v2168 = vand.u32 %v2167, 4294901760
    %v2169 = vsub.f32 %v2167, %v2168
    %v2170 = vand.u32 %v2169, 4294901760
    %2171 = vmatmul.mubr.f32.gmra.mrb[0].mxu0 %v2170
    %v2172 = vpop.f32.mrb[0].mxu0
    %v2173 = vadd.f32 0.0, %v2172
    %v2174 = vpop.f32.mrb[0].mxu0
    %2175 = vmatprep.mubr.f32.mxu0 0.0
    %v2176 = vand.u32 %v2079, 4294901760
    %v2177 = vsub.f32 %v2079, %v2176
    %v2178 = vand.u32 %v2177, 4294901760
    %v2179 = vsub.f32 %v2177, %v2178
    %v2180 = vand.u32 %v2179, 4294901760
    %2181 = vmatmul.mubr.f32.gmra.mrb[0].mxu0 %v2180
    %v2182 = vpop.f32.mrb[0].mxu0
    %v2183 = vadd.f32 0.0, %v2182
    %v2184 = vpop.f32.mrb[0].mxu0
    %2185 = vmatprep.mubr.f32.mxu0 0.0
    %v2186 = vand.u32 %v2081, 4294901760
    %v2187 = vsub.f32 %v2081, %v2186
    %v2188 = vand.u32 %v2187, 4294901760
    %v2189 = vsub.f32 %v2187, %v2188
    %v2190 = vand.u32 %v2189, 4294901760
    %2191 = vmatmul.mubr.f32.gmra.mrb[0].mxu0 %v2190
    %v2192 = vpop.f32.mrb[0].mxu0
    %v2193 = vadd.f32 0.0, %v2192
    %v2194 = vpop.f32.mrb[0].mxu0
    %2195 = vdwg.mxu0
    %2196 = vmatprep.subr.mxu0 0.0
    %v2197 = vand.u32 %v2067, 4294901760
    %v2198 = vsub.f32 %v2067, %v2197
    %v2199 = vand.u32 %v2198, 4294901760
    %v2200 = vsub.f32 %v2198, %v2199
    %v2201 = vand.u32 %v2200, 4294901760
    %2202 = vmatpush1.msra.mxu0 %v2201
    %2203 = vmatprep.subr.mxu0 0.0
    %v2204 = vand.u32 %v2068, 4294901760
    %v2205 = vsub.f32 %v2068, %v2204
    %v2206 = vand.u32 %v2205, 4294901760
    %v2207 = vsub.f32 %v2205, %v2206
    %v2208 = vand.u32 %v2207, 4294901760
    %2209 = vmatpush1.msra.mxu0 %v2208
    %2210 = vmatprep.subr.mxu0 0.0
    %v2211 = vand.u32 %v2069, 4294901760
    %v2212 = vsub.f32 %v2069, %v2211
    %v2213 = vand.u32 %v2212, 4294901760
    %v2214 = vsub.f32 %v2212, %v2213
    %v2215 = vand.u32 %v2214, 4294901760
    %2216 = vmatpush1.msra.mxu0 %v2215
    %2217 = vmatprep.subr.mxu0 0.0
    %v2218 = vand.u32 %v2070, 4294901760
    %v2219 = vsub.f32 %v2070, %v2218
    %v2220 = vand.u32 %v2219, 4294901760
    %v2221 = vsub.f32 %v2219, %v2220
    %v2222 = vand.u32 %v2221, 4294901760
    %2223 = vmatpush1.msra.mxu0 %v2222
    %2224 = vmatprep.subr.mxu0 0.0
    %v2225 = vand.u32 %v2071, 4294901760
    %v2226 = vsub.f32 %v2071, %v2225
    %v2227 = vand.u32 %v2226, 4294901760
    %v2228 = vsub.f32 %v2226, %v2227
    %v2229 = vand.u32 %v2228, 4294901760
    %2230 = vmatpush1.msra.mxu0 %v2229
    %2231 = vmatprep.subr.mxu0 0.0
    %v2232 = vand.u32 %v2072, 4294901760
    %v2233 = vsub.f32 %v2072, %v2232
    %v2234 = vand.u32 %v2233, 4294901760
    %v2235 = vsub.f32 %v2233, %v2234
    %v2236 = vand.u32 %v2235, 4294901760
    %2237 = vmatpush1.msra.mxu0 %v2236
    %2238 = vmatprep.subr.mxu0 0.0
    %v2239 = vand.u32 %v2073, 4294901760
    %v2240 = vsub.f32 %v2073, %v2239
    %v2241 = vand.u32 %v2240, 4294901760
    %v2242 = vsub.f32 %v2240, %v2241
    %v2243 = vand.u32 %v2242, 4294901760
    %2244 = vmatpush1.msra.mxu0 %v2243
    %2245 = vmatprep.subr.mxu0 0.0
    %v2246 = vand.u32 %v2074, 4294901760
    %v2247 = vsub.f32 %v2074, %v2246
    %v2248 = vand.u32 %v2247, 4294901760
    %v2249 = vsub.f32 %v2247, %v2248
    %v2250 = vand.u32 %v2249, 4294901760
    %2251 = vmatpush1.msra.mxu0 %v2250
    %2252 = vmatprep.subr.mxu0 0.0
    %2253 = vmatpush1.msra.mxu0 0.0
    %2254 = vmatprep.subr.mxu0 0.0
    %2255 = vmatpush1.msra.mxu0 0.0
    %2256 = vmatprep.subr.mxu0 0.0
    %2257 = vmatpush1.msra.mxu0 0.0
    %2258 = vmatprep.subr.mxu0 0.0
    %2259 = vmatpush1.msra.mxu0 0.0
    %2260 = vmatprep.subr.mxu0 0.0
    %2261 = vmatpush1.msra.mxu0 0.0
    %2262 = vmatprep.subr.mxu0 0.0
    %2263 = vmatpush1.msra.mxu0 0.0
    %2264 = vmatprep.subr.mxu0 0.0
    %2265 = vmatpush1.msra.mxu0 0.0
    %2266 = vmatprep.subr.mxu0 0.0
    %2267 = vmatpush1.msra.mxu0 0.0
    %2268 = vmatprep.subr.mxu0 0.0
    %2269 = vmatpush1.msra.mxu0 0.0
    %2270 = vmatprep.subr.mxu0 0.0
    %2271 = vmatpush1.msra.mxu0 0.0
    %2272 = vmatprep.subr.mxu0 0.0
    %2273 = vmatpush1.msra.mxu0 0.0
    %2274 = vmatprep.subr.mxu0 0.0
    %2275 = vmatpush1.msra.mxu0 0.0
    %2276 = vmatprep.subr.mxu0 0.0
    %2277 = vmatpush1.msra.mxu0 0.0
    %2278 = vmatprep.subr.mxu0 0.0
    %2279 = vmatpush1.msra.mxu0 0.0
    %2280 = vmatprep.subr.mxu0 0.0
    %2281 = vmatpush1.msra.mxu0 0.0
    %2282 = vmatprep.subr.mxu0 0.0
    %2283 = vmatpush1.msra.mxu0 0.0
    %2284 = vmatprep.subr.mxu0 0.0
    %2285 = vmatpush1.msra.mxu0 0.0
    %2286 = vmatprep.subr.mxu0 0.0
    %2287 = vmatpush1.msra.mxu0 0.0
    %2288 = vmatprep.subr.mxu0 0.0
    %2289 = vmatpush1.msra.mxu0 0.0
    %2290 = vmatprep.subr.mxu0 0.0
    %2291 = vmatpush1.msra.mxu0 0.0
    %2292 = vmatprep.subr.mxu0 0.0
    %2293 = vmatpush1.msra.mxu0 0.0
    %2294 = vmatprep.subr.mxu0 0.0
    %2295 = vmatpush1.msra.mxu0 0.0
    %2296 = vmatprep.subr.mxu0 0.0
    %2297 = vmatpush1.msra.mxu0 0.0
    %2298 = vmatprep.subr.mxu0 0.0
    %2299 = vmatpush1.msra.mxu0 0.0
    %2300 = vmatprep.mubr.f32.mxu0 0.0
    %v2301 = vand.u32 %v2075, 4294901760
    %2302 = vmatmul.mubr.f32.gmra.mrb[0].mxu0 %v2301
    %v2303 = vpop.f32.mrb[0].mxu0
    %v2304 = vadd.f32 %v2163, %v2303
    %v2305 = vpop.f32.mrb[0].mxu0
    %2306 = vmatprep.mubr.f32.mxu0 0.0
    %v2307 = vand.u32 %v2077, 4294901760
    %2308 = vmatmul.mubr.f32.gmra.mrb[0].mxu0 %v2307
    %v2309 = vpop.f32.mrb[0].mxu0
    %v2310 = vadd.f32 %v2173, %v2309
    %v2311 = vpop.f32.mrb[0].mxu0
    %2312 = vmatprep.mubr.f32.mxu0 0.0
    %v2313 = vand.u32 %v2079, 4294901760
    %2314 = vmatmul.mubr.f32.gmra.mrb[0].mxu0 %v2313
    %v2315 = vpop.f32.mrb[0].mxu0
    %v2316 = vadd.f32 %v2183, %v2315
    %v2317 = vpop.f32.mrb[0].mxu0
    %2318 = vmatprep.mubr.f32.mxu0 0.0
    %v2319 = vand.u32 %v2081, 4294901760
    %2320 = vmatmul.mubr.f32.gmra.mrb[0].mxu0 %v2319
    %v2321 = vpop.f32.mrb[0].mxu0
    %v2322 = vadd.f32 %v2193, %v2321
    %v2323 = vpop.f32.mrb[0].mxu0
    %2324 = vdwg.mxu0
    %2325 = vmatprep.subr.mxu0 0.0
    %v2326 = vand.u32 %v2067, 4294901760
    %v2327 = vsub.f32 %v2067, %v2326
    %2328 = vmatpush1.msra.mxu0 %v2327
    %2329 = vmatprep.subr.mxu0 0.0
    %v2330 = vand.u32 %v2068, 4294901760
    %v2331 = vsub.f32 %v2068, %v2330
    %2332 = vmatpush1.msra.mxu0 %v2331
    %2333 = vmatprep.subr.mxu0 0.0
    %v2334 = vand.u32 %v2069, 4294901760
    %v2335 = vsub.f32 %v2069, %v2334
    %2336 = vmatpush1.msra.mxu0 %v2335
    %2337 = vmatprep.subr.mxu0 0.0
    %v2338 = vand.u32 %v2070, 4294901760
    %v2339 = vsub.f32 %v2070, %v2338
    %2340 = vmatpush1.msra.mxu0 %v2339
    %2341 = vmatprep.subr.mxu0 0.0
    %v2342 = vand.u32 %v2071, 4294901760
    %v2343 = vsub.f32 %v2071, %v2342
    %2344 = vmatpush1.msra.mxu0 %v2343
    %2345 = vmatprep.subr.mxu0 0.0
    %v2346 = vand.u32 %v2072, 4294901760
    %v2347 = vsub.f32 %v2072, %v2346
    %2348 = vmatpush1.msra.mxu0 %v2347
    %2349 = vmatprep.subr.mxu0 0.0
    %v2350 = vand.u32 %v2073, 4294901760
    %v2351 = vsub.f32 %v2073, %v2350
    %2352 = vmatpush1.msra.mxu0 %v2351
    %2353 = vmatprep.subr.mxu0 0.0
    %v2354 = vand.u32 %v2074, 4294901760
    %v2355 = vsub.f32 %v2074, %v2354
    %2356 = vmatpush1.msra.mxu0 %v2355
    %2357 = vmatprep.subr.mxu0 0.0
    %2358 = vmatpush1.msra.mxu0 0.0
    %2359 = vmatprep.subr.mxu0 0.0
    %2360 = vmatpush1.msra.mxu0 0.0
    %2361 = vmatprep.subr.mxu0 0.0
    %2362 = vmatpush1.msra.mxu0 0.0
    %2363 = vmatprep.subr.mxu0 0.0
    %2364 = vmatpush1.msra.mxu0 0.0
    %2365 = vmatprep.subr.mxu0 0.0
    %2366 = vmatpush1.msra.mxu0 0.0
    %2367 = vmatprep.subr.mxu0 0.0
    %2368 = vmatpush1.msra.mxu0 0.0
    %2369 = vmatprep.subr.mxu0 0.0
    %2370 = vmatpush1.msra.mxu0 0.0
    %2371 = vmatprep.subr.mxu0 0.0
    %2372 = vmatpush1.msra.mxu0 0.0
    %2373 = vmatprep.subr.mxu0 0.0
    %2374 = vmatpush1.msra.mxu0 0.0
    %2375 = vmatprep.subr.mxu0 0.0
    %2376 = vmatpush1.msra.mxu0 0.0
    %2377 = vmatprep.subr.mxu0 0.0
    %2378 = vmatpush1.msra.mxu0 0.0
    %2379 = vmatprep.subr.mxu0 0.0
    %2380 = vmatpush1.msra.mxu0 0.0
    %2381 = vmatprep.subr.mxu0 0.0
    %2382 = vmatpush1.msra.mxu0 0.0
    %2383 = vmatprep.subr.mxu0 0.0
    %2384 = vmatpush1.msra.mxu0 0.0
    %2385 = vmatprep.subr.mxu0 0.0
    %2386 = vmatpush1.msra.mxu0 0.0
    %2387 = vmatprep.subr.mxu0 0.0
    %2388 = vmatpush1.msra.mxu0 0.0
    %2389 = vmatprep.subr.mxu0 0.0
    %2390 = vmatpush1.msra.mxu0 0.0
    %2391 = vmatprep.subr.mxu0 0.0
    %2392 = vmatpush1.msra.mxu0 0.0
    %2393 = vmatprep.subr.mxu0 0.0
    %2394 = vmatpush1.msra.mxu0 0.0
    %2395 = vmatprep.subr.mxu0 0.0
    %2396 = vmatpush1.msra.mxu0 0.0
    %2397 = vmatprep.subr.mxu0 0.0
    %2398 = vmatpush1.msra.mxu0 0.0
    %2399 = vmatprep.subr.mxu0 0.0
    %2400 = vmatpush1.msra.mxu0 0.0
    %2401 = vmatprep.subr.mxu0 0.0
    %2402 = vmatpush1.msra.mxu0 0.0
    %2403 = vmatprep.subr.mxu0 0.0
    %2404 = vmatpush1.msra.mxu0 0.0
    %2405 = vmatprep.mubr.f32.mxu0 0.0
    %v2406 = vand.u32 %v2075, 4294901760
    %v2407 = vsub.f32 %v2075, %v2406
    %2408 = vmatmul.mubr.f32.gmra.mrb[0].mxu0 %v2407
    %v2409 = vpop.f32.mrb[0].mxu0
    %v2410 = vadd.f32 %v2304, %v2409
    %v2411 = vpop.f32.mrb[0].mxu0
    %2412 = vmatprep.mubr.f32.mxu0 0.0
    %v2413 = vand.u32 %v2077, 4294901760
    %v2414 = vsub.f32 %v2077, %v2413
    %2415 = vmatmul.mubr.f32.gmra.mrb[0].mxu0 %v2414
    %v2416 = vpop.f32.mrb[0].mxu0
    %v2417 = vadd.f32 %v2310, %v2416
    %v2418 = vpop.f32.mrb[0].mxu0
    %2419 = vmatprep.mubr.f32.mxu0 0.0
    %v2420 = vand.u32 %v2079, 4294901760
    %v2421 = vsub.f32 %v2079, %v2420
    %2422 = vmatmul.mubr.f32.gmra.mrb[0].mxu0 %v2421
    %v2423 = vpop.f32.mrb[0].mxu0
    %v2424 = vadd.f32 %v2316, %v2423
    %v2425 = vpop.f32.mrb[0].mxu0
    %2426 = vmatprep.mubr.f32.mxu0 0.0
    %v2427 = vand.u32 %v2081, 4294901760
    %v2428 = vsub.f32 %v2081, %v2427
    %2429 = vmatmul.mubr.f32.gmra.mrb[0].mxu0 %v2428
    %v2430 = vpop.f32.mrb[0].mxu0
    %v2431 = vadd.f32 %v2322, %v2430
    %v2432 = vpop.f32.mrb[0].mxu0
    %2433 = vdwg.mxu0
    %2434 = vmatprep.subr.mxu0 0.0
    %v2435 = vand.u32 %v2067, 4294901760
    %2436 = vmatpush1.msra.mxu0 %v2435
    %2437 = vmatprep.subr.mxu0 0.0
    %v2438 = vand.u32 %v2068, 4294901760
    %2439 = vmatpush1.msra.mxu0 %v2438
    %2440 = vmatprep.subr.mxu0 0.0
    %v2441 = vand.u32 %v2069, 4294901760
    %2442 = vmatpush1.msra.mxu0 %v2441
    %2443 = vmatprep.subr.mxu0 0.0
    %v2444 = vand.u32 %v2070, 4294901760
    %2445 = vmatpush1.msra.mxu0 %v2444
    %2446 = vmatprep.subr.mxu0 0.0
    %v2447 = vand.u32 %v2071, 4294901760
    %2448 = vmatpush1.msra.mxu0 %v2447
    %2449 = vmatprep.subr.mxu0 0.0
    %v2450 = vand.u32 %v2072, 4294901760
    %2451 = vmatpush1.msra.mxu0 %v2450
    %2452 = vmatprep.subr.mxu0 0.0
    %v2453 = vand.u32 %v2073, 4294901760
    %2454 = vmatpush1.msra.mxu0 %v2453
    %2455 = vmatprep.subr.mxu0 0.0
    %v2456 = vand.u32 %v2074, 4294901760
    %2457 = vmatpush1.msra.mxu0 %v2456
    %2458 = vmatprep.subr.mxu0 0.0
    %2459 = vmatpush1.msra.mxu0 0.0
    %2460 = vmatprep.subr.mxu0 0.0
    %2461 = vmatpush1.msra.mxu0 0.0
    %2462 = vmatprep.subr.mxu0 0.0
    %2463 = vmatpush1.msra.mxu0 0.0
    %2464 = vmatprep.subr.mxu0 0.0
    %2465 = vmatpush1.msra.mxu0 0.0
    %2466 = vmatprep.subr.mxu0 0.0
    %2467 = vmatpush1.msra.mxu0 0.0
    %2468 = vmatprep.subr.mxu0 0.0
    %2469 = vmatpush1.msra.mxu0 0.0
    %2470 = vmatprep.subr.mxu0 0.0
    %2471 = vmatpush1.msra.mxu0 0.0
    %2472 = vmatprep.subr.mxu0 0.0
    %2473 = vmatpush1.msra.mxu0 0.0
    %2474 = vmatprep.subr.mxu0 0.0
    %2475 = vmatpush1.msra.mxu0 0.0
    %2476 = vmatprep.subr.mxu0 0.0
    %2477 = vmatpush1.msra.mxu0 0.0
    %2478 = vmatprep.subr.mxu0 0.0
    %2479 = vmatpush1.msra.mxu0 0.0
    %2480 = vmatprep.subr.mxu0 0.0
    %2481 = vmatpush1.msra.mxu0 0.0
    %2482 = vmatprep.subr.mxu0 0.0
    %2483 = vmatpush1.msra.mxu0 0.0
    %2484 = vmatprep.subr.mxu0 0.0
    %2485 = vmatpush1.msra.mxu0 0.0
    %2486 = vmatprep.subr.mxu0 0.0
    %2487 = vmatpush1.msra.mxu0 0.0
    %2488 = vmatprep.subr.mxu0 0.0
    %2489 = vmatpush1.msra.mxu0 0.0
    %2490 = vmatprep.subr.mxu0 0.0
    %2491 = vmatpush1.msra.mxu0 0.0
    %2492 = vmatprep.subr.mxu0 0.0
    %2493 = vmatpush1.msra.mxu0 0.0
    %2494 = vmatprep.subr.mxu0 0.0
    %2495 = vmatpush1.msra.mxu0 0.0
    %2496 = vmatprep.subr.mxu0 0.0
    %2497 = vmatpush1.msra.mxu0 0.0
    %2498 = vmatprep.subr.mxu0 0.0
    %2499 = vmatpush1.msra.mxu0 0.0
    %2500 = vmatprep.subr.mxu0 0.0
    %2501 = vmatpush1.msra.mxu0 0.0
    %2502 = vmatprep.subr.mxu0 0.0
    %2503 = vmatpush1.msra.mxu0 0.0
    %2504 = vmatprep.subr.mxu0 0.0
    %2505 = vmatpush1.msra.mxu0 0.0
    %2506 = vmatprep.mubr.f32.mxu0 0.0
    %v2507 = vand.u32 %v2075, 4294901760
    %v2508 = vsub.f32 %v2075, %v2507
    %v2509 = vand.u32 %v2508, 4294901760
    %2510 = vmatmul.mubr.f32.gmra.mrb[0].mxu0 %v2509
    %v2511 = vpop.f32.mrb[0].mxu0
    %v2512 = vadd.f32 %v2410, %v2511
    %v2513 = vpop.f32.mrb[0].mxu0
    %2514 = vmatprep.mubr.f32.mxu0 0.0
    %v2515 = vand.u32 %v2077, 4294901760
    %v2516 = vsub.f32 %v2077, %v2515
    %v2517 = vand.u32 %v2516, 4294901760
    %2518 = vmatmul.mubr.f32.gmra.mrb[0].mxu0 %v2517
    %v2519 = vpop.f32.mrb[0].mxu0
    %v2520 = vadd.f32 %v2417, %v2519
    %v2521 = vpop.f32.mrb[0].mxu0
    %2522 = vmatprep.mubr.f32.mxu0 0.0
    %v2523 = vand.u32 %v2079, 4294901760
    %v2524 = vsub.f32 %v2079, %v2523
    %v2525 = vand.u32 %v2524, 4294901760
    %2526 = vmatmul.mubr.f32.gmra.mrb[0].mxu0 %v2525
    %v2527 = vpop.f32.mrb[0].mxu0
    %v2528 = vadd.f32 %v2424, %v2527
    %v2529 = vpop.f32.mrb[0].mxu0
    %2530 = vmatprep.mubr.f32.mxu0 0.0
    %v2531 = vand.u32 %v2081, 4294901760
    %v2532 = vsub.f32 %v2081, %v2531
    %v2533 = vand.u32 %v2532, 4294901760
    %2534 = vmatmul.mubr.f32.gmra.mrb[0].mxu0 %v2533
    %v2535 = vpop.f32.mrb[0].mxu0
    %v2536 = vadd.f32 %v2431, %v2535
    %v2537 = vpop.f32.mrb[0].mxu0
    %2538 = vdwg.mxu0
    %2539 = vmatprep.subr.mxu0 0.0
    %v2540 = vand.u32 %v2067, 4294901760
    %v2541 = vsub.f32 %v2067, %v2540
    %v2542 = vand.u32 %v2541, 4294901760
    %2543 = vmatpush1.msra.mxu0 %v2542
    %2544 = vmatprep.subr.mxu0 0.0
    %v2545 = vand.u32 %v2068, 4294901760
    %v2546 = vsub.f32 %v2068, %v2545
    %v2547 = vand.u32 %v2546, 4294901760
    %2548 = vmatpush1.msra.mxu0 %v2547
    %2549 = vmatprep.subr.mxu0 0.0
    %v2550 = vand.u32 %v2069, 4294901760
    %v2551 = vsub.f32 %v2069, %v2550
    %v2552 = vand.u32 %v2551, 4294901760
    %2553 = vmatpush1.msra.mxu0 %v2552
    %2554 = vmatprep.subr.mxu0 0.0
    %v2555 = vand.u32 %v2070, 4294901760
    %v2556 = vsub.f32 %v2070, %v2555
    %v2557 = vand.u32 %v2556, 4294901760
    %2558 = vmatpush1.msra.mxu0 %v2557
    %2559 = vmatprep.subr.mxu0 0.0
    %v2560 = vand.u32 %v2071, 4294901760
    %v2561 = vsub.f32 %v2071, %v2560
    %v2562 = vand.u32 %v2561, 4294901760
    %2563 = vmatpush1.msra.mxu0 %v2562
    %2564 = vmatprep.subr.mxu0 0.0
    %v2565 = vand.u32 %v2072, 4294901760
    %v2566 = vsub.f32 %v2072, %v2565
    %v2567 = vand.u32 %v2566, 4294901760
    %2568 = vmatpush1.msra.mxu0 %v2567
    %2569 = vmatprep.subr.mxu0 0.0
    %v2570 = vand.u32 %v2073, 4294901760
    %v2571 = vsub.f32 %v2073, %v2570
    %v2572 = vand.u32 %v2571, 4294901760
    %2573 = vmatpush1.msra.mxu0 %v2572
    %2574 = vmatprep.subr.mxu0 0.0
    %v2575 = vand.u32 %v2074, 4294901760
    %v2576 = vsub.f32 %v2074, %v2575
    %v2577 = vand.u32 %v2576, 4294901760
    %2578 = vmatpush1.msra.mxu0 %v2577
    %2579 = vmatprep.subr.mxu0 0.0
    %2580 = vmatpush1.msra.mxu0 0.0
    %2581 = vmatprep.subr.mxu0 0.0
    %2582 = vmatpush1.msra.mxu0 0.0
    %2583 = vmatprep.subr.mxu0 0.0
    %2584 = vmatpush1.msra.mxu0 0.0
    %2585 = vmatprep.subr.mxu0 0.0
    %2586 = vmatpush1.msra.mxu0 0.0
    %2587 = vmatprep.subr.mxu0 0.0
    %2588 = vmatpush1.msra.mxu0 0.0
    %2589 = vmatprep.subr.mxu0 0.0
    %2590 = vmatpush1.msra.mxu0 0.0
    %2591 = vmatprep.subr.mxu0 0.0
    %2592 = vmatpush1.msra.mxu0 0.0
    %2593 = vmatprep.subr.mxu0 0.0
    %2594 = vmatpush1.msra.mxu0 0.0
    %2595 = vmatprep.subr.mxu0 0.0
    %2596 = vmatpush1.msra.mxu0 0.0
    %2597 = vmatprep.subr.mxu0 0.0
    %2598 = vmatpush1.msra.mxu0 0.0
    %2599 = vmatprep.subr.mxu0 0.0
    %2600 = vmatpush1.msra.mxu0 0.0
    %2601 = vmatprep.subr.mxu0 0.0
    %2602 = vmatpush1.msra.mxu0 0.0
    %2603 = vmatprep.subr.mxu0 0.0
    %2604 = vmatpush1.msra.mxu0 0.0
    %2605 = vmatprep.subr.mxu0 0.0
    %2606 = vmatpush1.msra.mxu0 0.0
    %2607 = vmatprep.subr.mxu0 0.0
    %2608 = vmatpush1.msra.mxu0 0.0
    %2609 = vmatprep.subr.mxu0 0.0
    %2610 = vmatpush1.msra.mxu0 0.0
    %2611 = vmatprep.subr.mxu0 0.0
    %2612 = vmatpush1.msra.mxu0 0.0
    %2613 = vmatprep.subr.mxu0 0.0
    %2614 = vmatpush1.msra.mxu0 0.0
    %2615 = vmatprep.subr.mxu0 0.0
    %2616 = vmatpush1.msra.mxu0 0.0
    %2617 = vmatprep.subr.mxu0 0.0
    %2618 = vmatpush1.msra.mxu0 0.0
    %2619 = vmatprep.subr.mxu0 0.0
    %2620 = vmatpush1.msra.mxu0 0.0
    %2621 = vmatprep.subr.mxu0 0.0
    %2622 = vmatpush1.msra.mxu0 0.0
    %2623 = vmatprep.subr.mxu0 0.0
    %2624 = vmatpush1.msra.mxu0 0.0
    %2625 = vmatprep.subr.mxu0 0.0
    %2626 = vmatpush1.msra.mxu0 0.0
    %2627 = vmatprep.mubr.f32.mxu0 0.0
    %v2628 = vand.u32 %v2075, 4294901760
    %2629 = vmatmul.mubr.f32.gmra.mrb[0].mxu0 %v2628
    %v2630 = vpop.f32.mrb[0].mxu0
    %v2631 = vadd.f32 %v2512, %v2630
    %v2632 = vpop.f32.mrb[0].mxu0
    %2633 = vmatprep.mubr.f32.mxu0 0.0
    %v2634 = vand.u32 %v2077, 4294901760
    %2635 = vmatmul.mubr.f32.gmra.mrb[0].mxu0 %v2634
    %v2636 = vpop.f32.mrb[0].mxu0
    %v2637 = vadd.f32 %v2520, %v2636
    %v2638 = vpop.f32.mrb[0].mxu0
    %2639 = vmatprep.mubr.f32.mxu0 0.0
    %v2640 = vand.u32 %v2079, 4294901760
    %2641 = vmatmul.mubr.f32.gmra.mrb[0].mxu0 %v2640
    %v2642 = vpop.f32.mrb[0].mxu0
    %v2643 = vadd.f32 %v2528, %v2642
    %v2644 = vpop.f32.mrb[0].mxu0
    %2645 = vmatprep.mubr.f32.mxu0 0.0
    %v2646 = vand.u32 %v2081, 4294901760
    %2647 = vmatmul.mubr.f32.gmra.mrb[0].mxu0 %v2646
    %v2648 = vpop.f32.mrb[0].mxu0
    %v2649 = vadd.f32 %v2536, %v2648
    %v2650 = vpop.f32.mrb[0].mxu0
    %2651 = vdwg.mxu0
    %2652 = vmatprep.subr.mxu0 0.0
    %v2653 = vand.u32 %v2067, 4294901760
    %2654 = vmatpush1.msra.mxu0 %v2653
    %2655 = vmatprep.subr.mxu0 0.0
    %v2656 = vand.u32 %v2068, 4294901760
    %2657 = vmatpush1.msra.mxu0 %v2656
    %2658 = vmatprep.subr.mxu0 0.0
    %v2659 = vand.u32 %v2069, 4294901760
    %2660 = vmatpush1.msra.mxu0 %v2659
    %2661 = vmatprep.subr.mxu0 0.0
    %v2662 = vand.u32 %v2070, 4294901760
    %2663 = vmatpush1.msra.mxu0 %v2662
    %2664 = vmatprep.subr.mxu0 0.0
    %v2665 = vand.u32 %v2071, 4294901760
    %2666 = vmatpush1.msra.mxu0 %v2665
    %2667 = vmatprep.subr.mxu0 0.0
    %v2668 = vand.u32 %v2072, 4294901760
    %2669 = vmatpush1.msra.mxu0 %v2668
    %2670 = vmatprep.subr.mxu0 0.0
    %v2671 = vand.u32 %v2073, 4294901760
    %2672 = vmatpush1.msra.mxu0 %v2671
    %2673 = vmatprep.subr.mxu0 0.0
    %v2674 = vand.u32 %v2074, 4294901760
    %2675 = vmatpush1.msra.mxu0 %v2674
    %2676 = vmatprep.subr.mxu0 0.0
    %2677 = vmatpush1.msra.mxu0 0.0
    %2678 = vmatprep.subr.mxu0 0.0
    %2679 = vmatpush1.msra.mxu0 0.0
    %2680 = vmatprep.subr.mxu0 0.0
    %2681 = vmatpush1.msra.mxu0 0.0
    %2682 = vmatprep.subr.mxu0 0.0
    %2683 = vmatpush1.msra.mxu0 0.0
    %2684 = vmatprep.subr.mxu0 0.0
    %2685 = vmatpush1.msra.mxu0 0.0
    %2686 = vmatprep.subr.mxu0 0.0
    %2687 = vmatpush1.msra.mxu0 0.0
    %2688 = vmatprep.subr.mxu0 0.0
    %2689 = vmatpush1.msra.mxu0 0.0
    %2690 = vmatprep.subr.mxu0 0.0
    %2691 = vmatpush1.msra.mxu0 0.0
    %2692 = vmatprep.subr.mxu0 0.0
    %2693 = vmatpush1.msra.mxu0 0.0
    %2694 = vmatprep.subr.mxu0 0.0
    %2695 = vmatpush1.msra.mxu0 0.0
    %2696 = vmatprep.subr.mxu0 0.0
    %2697 = vmatpush1.msra.mxu0 0.0
    %2698 = vmatprep.subr.mxu0 0.0
    %2699 = vmatpush1.msra.mxu0 0.0
    %2700 = vmatprep.subr.mxu0 0.0
    %2701 = vmatpush1.msra.mxu0 0.0
    %2702 = vmatprep.subr.mxu0 0.0
    %2703 = vmatpush1.msra.mxu0 0.0
    %2704 = vmatprep.subr.mxu0 0.0
    %2705 = vmatpush1.msra.mxu0 0.0
    %2706 = vmatprep.subr.mxu0 0.0
    %2707 = vmatpush1.msra.mxu0 0.0
    %2708 = vmatprep.subr.mxu0 0.0
    %2709 = vmatpush1.msra.mxu0 0.0
    %2710 = vmatprep.subr.mxu0 0.0
    %2711 = vmatpush1.msra.mxu0 0.0
    %2712 = vmatprep.subr.mxu0 0.0
    %2713 = vmatpush1.msra.mxu0 0.0
    %2714 = vmatprep.subr.mxu0 0.0
    %2715 = vmatpush1.msra.mxu0 0.0
    %2716 = vmatprep.subr.mxu0 0.0
    %2717 = vmatpush1.msra.mxu0 0.0
    %2718 = vmatprep.subr.mxu0 0.0
    %2719 = vmatpush1.msra.mxu0 0.0
    %2720 = vmatprep.subr.mxu0 0.0
    %2721 = vmatpush1.msra.mxu0 0.0
    %2722 = vmatprep.subr.mxu0 0.0
    %2723 = vmatpush1.msra.mxu0 0.0
    %2724 = vmatprep.mubr.f32.mxu0 0.0
    %v2725 = vand.u32 %v2075, 4294901760
    %2726 = vmatmul.mubr.f32.gmra.mrb[0].mxu0 %v2725
    %v2727 = vpop.f32.mrb[0].mxu0
    %v2728 = vadd.f32 %v2631, %v2727
    %v2729 = vpop.f32.mrb[0].mxu0
    %2730 = vmatprep.mubr.f32.mxu0 0.0
    %v2731 = vand.u32 %v2077, 4294901760
    %2732 = vmatmul.mubr.f32.gmra.mrb[0].mxu0 %v2731
    %v2733 = vpop.f32.mrb[0].mxu0
    %v2734 = vadd.f32 %v2637, %v2733
    %v2735 = vpop.f32.mrb[0].mxu0
    %2736 = vmatprep.mubr.f32.mxu0 0.0
    %v2737 = vand.u32 %v2079, 4294901760
    %2738 = vmatmul.mubr.f32.gmra.mrb[0].mxu0 %v2737
    %v2739 = vpop.f32.mrb[0].mxu0
    %v2740 = vadd.f32 %v2643, %v2739
    %v2741 = vpop.f32.mrb[0].mxu0
    %2742 = vmatprep.mubr.f32.mxu0 0.0
    %v2743 = vand.u32 %v2081, 4294901760
    %2744 = vmatmul.mubr.f32.gmra.mrb[0].mxu0 %v2743
    %v2745 = vpop.f32.mrb[0].mxu0
    %v2746 = vadd.f32 %v2649, %v2745
    %v2747 = vpop.f32.mrb[0].mxu0
    %2748 = vdwg.mxu0
    %v2749 = vadd.f32 %v2037, %v2728
    %v2750 = vadd.f32 %v2043, %v2734
    %v2751 = vadd.f32 %v2049, %v2740
    %v2752 = vadd.f32 %v2055, %v2746
    %vm2753 = vcmask 1041408
    %v2754 = vrot.slane 0.0, 6
    %v2755 = vrot.slane %v672, 6
    %v2756 = vsel %vm2753, %v2754, %v2755
    %v2757 = vsel %vm2753, %v2755, %v2754
    %v2758 = vrot.slane %v673, 6
    %v2759 = vsel %vm2753, %v2754, %v2758
    %v2760 = vsel %vm2753, %v2758, %v2754
    %s2761 = scalar_lea.vmem [#allocation2], 192
    %v2762 = vld [vmem:[%s2761] sm:$0xff]
    %v2763 = vld [vmem:[%s2761 + $0x8] sm:$0xff]
    %v2764 = vld [vmem:[%s2761 + $0x10] sm:$0xff]
    %v2765 = vld [vmem:[%s2761 + $0x18] sm:$0xff]
    %v2766 = vld [vmem:[%s2761 + $0x20] sm:$0xff]
    %v2767 = vld [vmem:[%s2761 + $0x28] sm:$0xff]
    %v2768 = vld [vmem:[%s2761 + $0x30] sm:$0xff]
    %v2769 = vld [vmem:[%s2761 + $0x38] sm:$0xff]
    %v2770 = vsel %vm85, %v2756, 0
    %v2772 = vsel %vm85, %v2757, 0
    %v2774 = vsel %vm85, %v2759, 0
    %v2776 = vsel %vm85, %v2760, 0
    %2778 = vmatprep.subr.mxu0 0.0
    %v2779 = vand.u32 %v2762, 4294901760
    %2780 = vmatpush1.msra.mxu0 %v2779
    %2781 = vmatprep.subr.mxu0 0.0
    %v2782 = vand.u32 %v2763, 4294901760
    %2783 = vmatpush1.msra.mxu0 %v2782
    %2784 = vmatprep.subr.mxu0 0.0
    %v2785 = vand.u32 %v2764, 4294901760
    %2786 = vmatpush1.msra.mxu0 %v2785
    %2787 = vmatprep.subr.mxu0 0.0
    %v2788 = vand.u32 %v2765, 4294901760
    %2789 = vmatpush1.msra.mxu0 %v2788
    %2790 = vmatprep.subr.mxu0 0.0
    %v2791 = vand.u32 %v2766, 4294901760
    %2792 = vmatpush1.msra.mxu0 %v2791
    %2793 = vmatprep.subr.mxu0 0.0
    %v2794 = vand.u32 %v2767, 4294901760
    %2795 = vmatpush1.msra.mxu0 %v2794
    %2796 = vmatprep.subr.mxu0 0.0
    %v2797 = vand.u32 %v2768, 4294901760
    %2798 = vmatpush1.msra.mxu0 %v2797
    %2799 = vmatprep.subr.mxu0 0.0
    %v2800 = vand.u32 %v2769, 4294901760
    %2801 = vmatpush1.msra.mxu0 %v2800
    %2802 = vmatprep.subr.mxu0 0.0
    %2803 = vmatpush1.msra.mxu0 0.0
    %2804 = vmatprep.subr.mxu0 0.0
    %2805 = vmatpush1.msra.mxu0 0.0
    %2806 = vmatprep.subr.mxu0 0.0
    %2807 = vmatpush1.msra.mxu0 0.0
    %2808 = vmatprep.subr.mxu0 0.0
    %2809 = vmatpush1.msra.mxu0 0.0
    %2810 = vmatprep.subr.mxu0 0.0
    %2811 = vmatpush1.msra.mxu0 0.0
    %2812 = vmatprep.subr.mxu0 0.0
    %2813 = vmatpush1.msra.mxu0 0.0
    %2814 = vmatprep.subr.mxu0 0.0
    %2815 = vmatpush1.msra.mxu0 0.0
    %2816 = vmatprep.subr.mxu0 0.0
    %2817 = vmatpush1.msra.mxu0 0.0
    %2818 = vmatprep.subr.mxu0 0.0
    %2819 = vmatpush1.msra.mxu0 0.0
    %2820 = vmatprep.subr.mxu0 0.0
    %2821 = vmatpush1.msra.mxu0 0.0
    %2822 = vmatprep.subr.mxu0 0.0
    %2823 = vmatpush1.msra.mxu0 0.0
    %2824 = vmatprep.subr.mxu0 0.0
    %2825 = vmatpush1.msra.mxu0 0.0
    %2826 = vmatprep.subr.mxu0 0.0
    %2827 = vmatpush1.msra.mxu0 0.0
    %2828 = vmatprep.subr.mxu0 0.0
    %2829 = vmatpush1.msra.mxu0 0.0
    %2830 = vmatprep.subr.mxu0 0.0
    %2831 = vmatpush1.msra.mxu0 0.0
    %2832 = vmatprep.subr.mxu0 0.0
    %2833 = vmatpush1.msra.mxu0 0.0
    %2834 = vmatprep.subr.mxu0 0.0
    %2835 = vmatpush1.msra.mxu0 0.0
    %2836 = vmatprep.subr.mxu0 0.0
    %2837 = vmatpush1.msra.mxu0 0.0
    %2838 = vmatprep.subr.mxu0 0.0
    %2839 = vmatpush1.msra.mxu0 0.0
    %2840 = vmatprep.subr.mxu0 0.0
    %2841 = vmatpush1.msra.mxu0 0.0
    %2842 = vmatprep.subr.mxu0 0.0
    %2843 = vmatpush1.msra.mxu0 0.0
    %2844 = vmatprep.subr.mxu0 0.0
    %2845 = vmatpush1.msra.mxu0 0.0
    %2846 = vmatprep.subr.mxu0 0.0
    %2847 = vmatpush1.msra.mxu0 0.0
    %2848 = vmatprep.subr.mxu0 0.0
    %2849 = vmatpush1.msra.mxu0 0.0
    %2850 = vmatprep.mubr.f32.mxu0 0.0
    %v2851 = vand.u32 %v2770, 4294901760
    %v2852 = vsub.f32 %v2770, %v2851
    %v2853 = vand.u32 %v2852, 4294901760
    %v2854 = vsub.f32 %v2852, %v2853
    %v2855 = vand.u32 %v2854, 4294901760
    %2856 = vmatmul.mubr.f32.gmra.mrb[0].mxu0 %v2855
    %v2857 = vpop.f32.mrb[0].mxu0
    %v2858 = vadd.f32 0.0, %v2857
    %v2859 = vpop.f32.mrb[0].mxu0
    %2860 = vmatprep.mubr.f32.mxu0 0.0
    %v2861 = vand.u32 %v2772, 4294901760
    %v2862 = vsub.f32 %v2772, %v2861
    %v2863 = vand.u32 %v2862, 4294901760
    %v2864 = vsub.f32 %v2862, %v2863
    %v2865 = vand.u32 %v2864, 4294901760
    %2866 = vmatmul.mubr.f32.gmra.mrb[0].mxu0 %v2865
    %v2867 = vpop.f32.mrb[0].mxu0
    %v2868 = vadd.f32 0.0, %v2867
    %v2869 = vpop.f32.mrb[0].mxu0
    %2870 = vmatprep.mubr.f32.mxu0 0.0
    %v2871 = vand.u32 %v2774, 4294901760
    %v2872 = vsub.f32 %v2774, %v2871
    %v2873 = vand.u32 %v2872, 4294901760
    %v2874 = vsub.f32 %v2872, %v2873
    %v2875 = vand.u32 %v2874, 4294901760
    %2876 = vmatmul.mubr.f32.gmra.mrb[0].mxu0 %v2875
    %v2877 = vpop.f32.mrb[0].mxu0
    %v2878 = vadd.f32 0.0, %v2877
    %v2879 = vpop.f32.mrb[0].mxu0
    %2880 = vmatprep.mubr.f32.mxu0 0.0
    %v2881 = vand.u32 %v2776, 4294901760
    %v2882 = vsub.f32 %v2776, %v2881
    %v2883 = vand.u32 %v2882, 4294901760
    %v2884 = vsub.f32 %v2882, %v2883
    %v2885 = vand.u32 %v2884, 4294901760
    %2886 = vmatmul.mubr.f32.gmra.mrb[0].mxu0 %v2885
    %v2887 = vpop.f32.mrb[0].mxu0
    %v2888 = vadd.f32 0.0, %v2887
    %v2889 = vpop.f32.mrb[0].mxu0
    %2890 = vdwg.mxu0
    %2891 = vmatprep.subr.mxu0 0.0
    %v2892 = vand.u32 %v2762, 4294901760
    %v2893 = vsub.f32 %v2762, %v2892
    %v2894 = vand.u32 %v2893, 4294901760
    %v2895 = vsub.f32 %v2893, %v2894
    %v2896 = vand.u32 %v2895, 4294901760
    %2897 = vmatpush1.msra.mxu0 %v2896
    %2898 = vmatprep.subr.mxu0 0.0
    %v2899 = vand.u32 %v2763, 4294901760
    %v2900 = vsub.f32 %v2763, %v2899
    %v2901 = vand.u32 %v2900, 4294901760
    %v2902 = vsub.f32 %v2900, %v2901
    %v2903 = vand.u32 %v2902, 4294901760
    %2904 = vmatpush1.msra.mxu0 %v2903
    %2905 = vmatprep.subr.mxu0 0.0
    %v2906 = vand.u32 %v2764, 4294901760
    %v2907 = vsub.f32 %v2764, %v2906
    %v2908 = vand.u32 %v2907, 4294901760
    %v2909 = vsub.f32 %v2907, %v2908
    %v2910 = vand.u32 %v2909, 4294901760
    %2911 = vmatpush1.msra.mxu0 %v2910
    %2912 = vmatprep.subr.mxu0 0.0
    %v2913 = vand.u32 %v2765, 4294901760
    %v2914 = vsub.f32 %v2765, %v2913
    %v2915 = vand.u32 %v2914, 4294901760
    %v2916 = vsub.f32 %v2914, %v2915
    %v2917 = vand.u32 %v2916, 4294901760
    %2918 = vmatpush1.msra.mxu0 %v2917
    %2919 = vmatprep.subr.mxu0 0.0
    %v2920 = vand.u32 %v2766, 4294901760
    %v2921 = vsub.f32 %v2766, %v2920
    %v2922 = vand.u32 %v2921, 4294901760
    %v2923 = vsub.f32 %v2921, %v2922
    %v2924 = vand.u32 %v2923, 4294901760
    %2925 = vmatpush1.msra.mxu0 %v2924
    %2926 = vmatprep.subr.mxu0 0.0
    %v2927 = vand.u32 %v2767, 4294901760
    %v2928 = vsub.f32 %v2767, %v2927
    %v2929 = vand.u32 %v2928, 4294901760
    %v2930 = vsub.f32 %v2928, %v2929
    %v2931 = vand.u32 %v2930, 4294901760
    %2932 = vmatpush1.msra.mxu0 %v2931
    %2933 = vmatprep.subr.mxu0 0.0
    %v2934 = vand.u32 %v2768, 4294901760
    %v2935 = vsub.f32 %v2768, %v2934
    %v2936 = vand.u32 %v2935, 4294901760
    %v2937 = vsub.f32 %v2935, %v2936
    %v2938 = vand.u32 %v2937, 4294901760
    %2939 = vmatpush1.msra.mxu0 %v2938
    %2940 = vmatprep.subr.mxu0 0.0
    %v2941 = vand.u32 %v2769, 4294901760
    %v2942 = vsub.f32 %v2769, %v2941
    %v2943 = vand.u32 %v2942, 4294901760
    %v2944 = vsub.f32 %v2942, %v2943
    %v2945 = vand.u32 %v2944, 4294901760
    %2946 = vmatpush1.msra.mxu0 %v2945
    %2947 = vmatprep.subr.mxu0 0.0
    %2948 = vmatpush1.msra.mxu0 0.0
    %2949 = vmatprep.subr.mxu0 0.0
    %2950 = vmatpush1.msra.mxu0 0.0
    %2951 = vmatprep.subr.mxu0 0.0
    %2952 = vmatpush1.msra.mxu0 0.0
    %2953 = vmatprep.subr.mxu0 0.0
    %2954 = vmatpush1.msra.mxu0 0.0
    %2955 = vmatprep.subr.mxu0 0.0
    %2956 = vmatpush1.msra.mxu0 0.0
    %2957 = vmatprep.subr.mxu0 0.0
    %2958 = vmatpush1.msra.mxu0 0.0
    %2959 = vmatprep.subr.mxu0 0.0
    %2960 = vmatpush1.msra.mxu0 0.0
    %2961 = vmatprep.subr.mxu0 0.0
    %2962 = vmatpush1.msra.mxu0 0.0
    %2963 = vmatprep.subr.mxu0 0.0
    %2964 = vmatpush1.msra.mxu0 0.0
    %2965 = vmatprep.subr.mxu0 0.0
    %2966 = vmatpush1.msra.mxu0 0.0
    %2967 = vmatprep.subr.mxu0 0.0
    %2968 = vmatpush1.msra.mxu0 0.0
    %2969 = vmatprep.subr.mxu0 0.0
    %2970 = vmatpush1.msra.mxu0 0.0
    %2971 = vmatprep.subr.mxu0 0.0
    %2972 = vmatpush1.msra.mxu0 0.0
    %2973 = vmatprep.subr.mxu0 0.0
    %2974 = vmatpush1.msra.mxu0 0.0
    %2975 = vmatprep.subr.mxu0 0.0
    %2976 = vmatpush1.msra.mxu0 0.0
    %2977 = vmatprep.subr.mxu0 0.0
    %2978 = vmatpush1.msra.mxu0 0.0
    %2979 = vmatprep.subr.mxu0 0.0
    %2980 = vmatpush1.msra.mxu0 0.0
    %2981 = vmatprep.subr.mxu0 0.0
    %2982 = vmatpush1.msra.mxu0 0.0
    %2983 = vmatprep.subr.mxu0 0.0
    %2984 = vmatpush1.msra.mxu0 0.0
    %2985 = vmatprep.subr.mxu0 0.0
    %2986 = vmatpush1.msra.mxu0 0.0
    %2987 = vmatprep.subr.mxu0 0.0
    %2988 = vmatpush1.msra.mxu0 0.0
    %2989 = vmatprep.subr.mxu0 0.0
    %2990 = vmatpush1.msra.mxu0 0.0
    %2991 = vmatprep.subr.mxu0 0.0
    %2992 = vmatpush1.msra.mxu0 0.0
    %2993 = vmatprep.subr.mxu0 0.0
    %2994 = vmatpush1.msra.mxu0 0.0
    %2995 = vmatprep.mubr.f32.mxu0 0.0
    %v2996 = vand.u32 %v2770, 4294901760
    %2997 = vmatmul.mubr.f32.gmra.mrb[0].mxu0 %v2996
    %v2998 = vpop.f32.mrb[0].mxu0
    %v2999 = vadd.f32 %v2858, %v2998
    %v3000 = vpop.f32.mrb[0].mxu0
    %3001 = vmatprep.mubr.f32.mxu0 0.0
    %v3002 = vand.u32 %v2772, 4294901760
    %3003 = vmatmul.mubr.f32.gmra.mrb[0].mxu0 %v3002
    %v3004 = vpop.f32.mrb[0].mxu0
    %v3005 = vadd.f32 %v2868, %v3004
    %v3006 = vpop.f32.mrb[0].mxu0
    %3007 = vmatprep.mubr.f32.mxu0 0.0
    %v3008 = vand.u32 %v2774, 4294901760
    %3009 = vmatmul.mubr.f32.gmra.mrb[0].mxu0 %v3008
    %v3010 = vpop.f32.mrb[0].mxu0
    %v3011 = vadd.f32 %v2878, %v3010
    %v3012 = vpop.f32.mrb[0].mxu0
    %3013 = vmatprep.mubr.f32.mxu0 0.0
    %v3014 = vand.u32 %v2776, 4294901760
    %3015 = vmatmul.mubr.f32.gmra.mrb[0].mxu0 %v3014
    %v3016 = vpop.f32.mrb[0].mxu0
    %v3017 = vadd.f32 %v2888, %v3016
    %v3018 = vpop.f32.mrb[0].mxu0
    %3019 = vdwg.mxu0
    %3020 = vmatprep.subr.mxu0 0.0
    %v3021 = vand.u32 %v2762, 4294901760
    %v3022 = vsub.f32 %v2762, %v3021
    %3023 = vmatpush1.msra.mxu0 %v3022
    %3024 = vmatprep.subr.mxu0 0.0
    %v3025 = vand.u32 %v2763, 4294901760
    %v3026 = vsub.f32 %v2763, %v3025
    %3027 = vmatpush1.msra.mxu0 %v3026
    %3028 = vmatprep.subr.mxu0 0.0
    %v3029 = vand.u32 %v2764, 4294901760
    %v3030 = vsub.f32 %v2764, %v3029
    %3031 = vmatpush1.msra.mxu0 %v3030
    %3032 = vmatprep.subr.mxu0 0.0
    %v3033 = vand.u32 %v2765, 4294901760
    %v3034 = vsub.f32 %v2765, %v3033
    %3035 = vmatpush1.msra.mxu0 %v3034
    %3036 = vmatprep.subr.mxu0 0.0
    %v3037 = vand.u32 %v2766, 4294901760
    %v3038 = vsub.f32 %v2766, %v3037
    %3039 = vmatpush1.msra.mxu0 %v3038
    %3040 = vmatprep.subr.mxu0 0.0
    %v3041 = vand.u32 %v2767, 4294901760
    %v3042 = vsub.f32 %v2767, %v3041
    %3043 = vmatpush1.msra.mxu0 %v3042
    %3044 = vmatprep.subr.mxu0 0.0
    %v3045 = vand.u32 %v2768, 4294901760
    %v3046 = vsub.f32 %v2768, %v3045
    %3047 = vmatpush1.msra.mxu0 %v3046
    %3048 = vmatprep.subr.mxu0 0.0
    %v3049 = vand.u32 %v2769, 4294901760
    %v3050 = vsub.f32 %v2769, %v3049
    %3051 = vmatpush1.msra.mxu0 %v3050
    %3052 = vmatprep.subr.mxu0 0.0
    %3053 = vmatpush1.msra.mxu0 0.0
    %3054 = vmatprep.subr.mxu0 0.0
    %3055 = vmatpush1.msra.mxu0 0.0
    %3056 = vmatprep.subr.mxu0 0.0
    %3057 = vmatpush1.msra.mxu0 0.0
    %3058 = vmatprep.subr.mxu0 0.0
    %3059 = vmatpush1.msra.mxu0 0.0
    %3060 = vmatprep.subr.mxu0 0.0
    %3061 = vmatpush1.msra.mxu0 0.0
    %3062 = vmatprep.subr.mxu0 0.0
    %3063 = vmatpush1.msra.mxu0 0.0
    %3064 = vmatprep.subr.mxu0 0.0
    %3065 = vmatpush1.msra.mxu0 0.0
    %3066 = vmatprep.subr.mxu0 0.0
    %3067 = vmatpush1.msra.mxu0 0.0
    %3068 = vmatprep.subr.mxu0 0.0
    %3069 = vmatpush1.msra.mxu0 0.0
    %3070 = vmatprep.subr.mxu0 0.0
    %3071 = vmatpush1.msra.mxu0 0.0
    %3072 = vmatprep.subr.mxu0 0.0
    %3073 = vmatpush1.msra.mxu0 0.0
    %3074 = vmatprep.subr.mxu0 0.0
    %3075 = vmatpush1.msra.mxu0 0.0
    %3076 = vmatprep.subr.mxu0 0.0
    %3077 = vmatpush1.msra.mxu0 0.0
    %3078 = vmatprep.subr.mxu0 0.0
    %3079 = vmatpush1.msra.mxu0 0.0
    %3080 = vmatprep.subr.mxu0 0.0
    %3081 = vmatpush1.msra.mxu0 0.0
    %3082 = vmatprep.subr.mxu0 0.0
    %3083 = vmatpush1.msra.mxu0 0.0
    %3084 = vmatprep.subr.mxu0 0.0
    %3085 = vmatpush1.msra.mxu0 0.0
    %3086 = vmatprep.subr.mxu0 0.0
    %3087 = vmatpush1.msra.mxu0 0.0
    %3088 = vmatprep.subr.mxu0 0.0
    %3089 = vmatpush1.msra.mxu0 0.0
    %3090 = vmatprep.subr.mxu0 0.0
    %3091 = vmatpush1.msra.mxu0 0.0
    %3092 = vmatprep.subr.mxu0 0.0
    %3093 = vmatpush1.msra.mxu0 0.0
    %3094 = vmatprep.subr.mxu0 0.0
    %3095 = vmatpush1.msra.mxu0 0.0
    %3096 = vmatprep.subr.mxu0 0.0
    %3097 = vmatpush1.msra.mxu0 0.0
    %3098 = vmatprep.subr.mxu0 0.0
    %3099 = vmatpush1.msra.mxu0 0.0
    %3100 = vmatprep.mubr.f32.mxu0 0.0
    %v3101 = vand.u32 %v2770, 4294901760
    %v3102 = vsub.f32 %v2770, %v3101
    %3103 = vmatmul.mubr.f32.gmra.mrb[0].mxu0 %v3102
    %v3104 = vpop.f32.mrb[0].mxu0
    %v3105 = vadd.f32 %v2999, %v3104
    %v3106 = vpop.f32.mrb[0].mxu0
    %3107 = vmatprep.mubr.f32.mxu0 0.0
    %v3108 = vand.u32 %v2772, 4294901760
    %v3109 = vsub.f32 %v2772, %v3108
    %3110 = vmatmul.mubr.f32.gmra.mrb[0].mxu0 %v3109
    %v3111 = vpop.f32.mrb[0].mxu0
    %v3112 = vadd.f32 %v3005, %v3111
    %v3113 = vpop.f32.mrb[0].mxu0
    %3114 = vmatprep.mubr.f32.mxu0 0.0
    %v3115 = vand.u32 %v2774, 4294901760
    %v3116 = vsub.f32 %v2774, %v3115
    %3117 = vmatmul.mubr.f32.gmra.mrb[0].mxu0 %v3116
    %v3118 = vpop.f32.mrb[0].mxu0
    %v3119 = vadd.f32 %v3011, %v3118
    %v3120 = vpop.f32.mrb[0].mxu0
    %3121 = vmatprep.mubr.f32.mxu0 0.0
    %v3122 = vand.u32 %v2776, 4294901760
    %v3123 = vsub.f32 %v2776, %v3122
    %3124 = vmatmul.mubr.f32.gmra.mrb[0].mxu0 %v3123
    %v3125 = vpop.f32.mrb[0].mxu0
    %v3126 = vadd.f32 %v3017, %v3125
    %v3127 = vpop.f32.mrb[0].mxu0
    %3128 = vdwg.mxu0
    %3129 = vmatprep.subr.mxu0 0.0
    %v3130 = vand.u32 %v2762, 4294901760
    %3131 = vmatpush1.msra.mxu0 %v3130
    %3132 = vmatprep.subr.mxu0 0.0
    %v3133 = vand.u32 %v2763, 4294901760
    %3134 = vmatpush1.msra.mxu0 %v3133
    %3135 = vmatprep.subr.mxu0 0.0
    %v3136 = vand.u32 %v2764, 4294901760
    %3137 = vmatpush1.msra.mxu0 %v3136
    %3138 = vmatprep.subr.mxu0 0.0
    %v3139 = vand.u32 %v2765, 4294901760
    %3140 = vmatpush1.msra.mxu0 %v3139
    %3141 = vmatprep.subr.mxu0 0.0
    %v3142 = vand.u32 %v2766, 4294901760
    %3143 = vmatpush1.msra.mxu0 %v3142
    %3144 = vmatprep.subr.mxu0 0.0
    %v3145 = vand.u32 %v2767, 4294901760
    %3146 = vmatpush1.msra.mxu0 %v3145
    %3147 = vmatprep.subr.mxu0 0.0
    %v3148 = vand.u32 %v2768, 4294901760
    %3149 = vmatpush1.msra.mxu0 %v3148
    %3150 = vmatprep.subr.mxu0 0.0
    %v3151 = vand.u32 %v2769, 4294901760
    %3152 = vmatpush1.msra.mxu0 %v3151
    %3153 = vmatprep.subr.mxu0 0.0
    %3154 = vmatpush1.msra.mxu0 0.0
    %3155 = vmatprep.subr.mxu0 0.0
    %3156 = vmatpush1.msra.mxu0 0.0
    %3157 = vmatprep.subr.mxu0 0.0
    %3158 = vmatpush1.msra.mxu0 0.0
    %3159 = vmatprep.subr.mxu0 0.0
    %3160 = vmatpush1.msra.mxu0 0.0
    %3161 = vmatprep.subr.mxu0 0.0
    %3162 = vmatpush1.msra.mxu0 0.0
    %3163 = vmatprep.subr.mxu0 0.0
    %3164 = vmatpush1.msra.mxu0 0.0
    %3165 = vmatprep.subr.mxu0 0.0
    %3166 = vmatpush1.msra.mxu0 0.0
    %3167 = vmatprep.subr.mxu0 0.0
    %3168 = vmatpush1.msra.mxu0 0.0
    %3169 = vmatprep.subr.mxu0 0.0
    %3170 = vmatpush1.msra.mxu0 0.0
    %3171 = vmatprep.subr.mxu0 0.0
    %3172 = vmatpush1.msra.mxu0 0.0
    %3173 = vmatprep.subr.mxu0 0.0
    %3174 = vmatpush1.msra.mxu0 0.0
    %3175 = vmatprep.subr.mxu0 0.0
    %3176 = vmatpush1.msra.mxu0 0.0
    %3177 = vmatprep.subr.mxu0 0.0
    %3178 = vmatpush1.msra.mxu0 0.0
    %3179 = vmatprep.subr.mxu0 0.0
    %3180 = vmatpush1.msra.mxu0 0.0
    %3181 = vmatprep.subr.mxu0 0.0
    %3182 = vmatpush1.msra.mxu0 0.0
    %3183 = vmatprep.subr.mxu0 0.0
    %3184 = vmatpush1.msra.mxu0 0.0
    %3185 = vmatprep.subr.mxu0 0.0
    %3186 = vmatpush1.msra.mxu0 0.0
    %3187 = vmatprep.subr.mxu0 0.0
    %3188 = vmatpush1.msra.mxu0 0.0
    %3189 = vmatprep.subr.mxu0 0.0
    %3190 = vmatpush1.msra.mxu0 0.0
    %3191 = vmatprep.subr.mxu0 0.0
    %3192 = vmatpush1.msra.mxu0 0.0
    %3193 = vmatprep.subr.mxu0 0.0
    %3194 = vmatpush1.msra.mxu0 0.0
    %3195 = vmatprep.subr.mxu0 0.0
    %3196 = vmatpush1.msra.mxu0 0.0
    %3197 = vmatprep.subr.mxu0 0.0
    %3198 = vmatpush1.msra.mxu0 0.0
    %3199 = vmatprep.subr.mxu0 0.0
    %3200 = vmatpush1.msra.mxu0 0.0
    %3201 = vmatprep.mubr.f32.mxu0 0.0
    %v3202 = vand.u32 %v2770, 4294901760
    %v3203 = vsub.f32 %v2770, %v3202
    %v3204 = vand.u32 %v3203, 4294901760
    %3205 = vmatmul.mubr.f32.gmra.mrb[0].mxu0 %v3204
    %v3206 = vpop.f32.mrb[0].mxu0
    %v3207 = vadd.f32 %v3105, %v3206
    %v3208 = vpop.f32.mrb[0].mxu0
    %3209 = vmatprep.mubr.f32.mxu0 0.0
    %v3210 = vand.u32 %v2772, 4294901760
    %v3211 = vsub.f32 %v2772, %v3210
    %v3212 = vand.u32 %v3211, 4294901760
    %3213 = vmatmul.mubr.f32.gmra.mrb[0].mxu0 %v3212
    %v3214 = vpop.f32.mrb[0].mxu0
    %v3215 = vadd.f32 %v3112, %v3214
    %v3216 = vpop.f32.mrb[0].mxu0
    %3217 = vmatprep.mubr.f32.mxu0 0.0
    %v3218 = vand.u32 %v2774, 4294901760
    %v3219 = vsub.f32 %v2774, %v3218
    %v3220 = vand.u32 %v3219, 4294901760
    %3221 = vmatmul.mubr.f32.gmra.mrb[0].mxu0 %v3220
    %v3222 = vpop.f32.mrb[0].mxu0
    %v3223 = vadd.f32 %v3119, %v3222
    %v3224 = vpop.f32.mrb[0].mxu0
    %3225 = vmatprep.mubr.f32.mxu0 0.0
    %v3226 = vand.u32 %v2776, 4294901760
    %v3227 = vsub.f32 %v2776, %v3226
    %v3228 = vand.u32 %v3227, 4294901760
    %3229 = vmatmul.mubr.f32.gmra.mrb[0].mxu0 %v3228
    %v3230 = vpop.f32.mrb[0].mxu0
    %v3231 = vadd.f32 %v3126, %v3230
    %v3232 = vpop.f32.mrb[0].mxu0
    %3233 = vdwg.mxu0
    %3234 = vmatprep.subr.mxu0 0.0
    %v3235 = vand.u32 %v2762, 4294901760
    %v3236 = vsub.f32 %v2762, %v3235
    %v3237 = vand.u32 %v3236, 4294901760
    %3238 = vmatpush1.msra.mxu0 %v3237
    %3239 = vmatprep.subr.mxu0 0.0
    %v3240 = vand.u32 %v2763, 4294901760
    %v3241 = vsub.f32 %v2763, %v3240
    %v3242 = vand.u32 %v3241, 4294901760
    %3243 = vmatpush1.msra.mxu0 %v3242
    %3244 = vmatprep.subr.mxu0 0.0
    %v3245 = vand.u32 %v2764, 4294901760
    %v3246 = vsub.f32 %v2764, %v3245
    %v3247 = vand.u32 %v3246, 4294901760
    %3248 = vmatpush1.msra.mxu0 %v3247
    %3249 = vmatprep.subr.mxu0 0.0
    %v3250 = vand.u32 %v2765, 4294901760
    %v3251 = vsub.f32 %v2765, %v3250
    %v3252 = vand.u32 %v3251, 4294901760
    %3253 = vmatpush1.msra.mxu0 %v3252
    %3254 = vmatprep.subr.mxu0 0.0
    %v3255 = vand.u32 %v2766, 4294901760
    %v3256 = vsub.f32 %v2766, %v3255
    %v3257 = vand.u32 %v3256, 4294901760
    %3258 = vmatpush1.msra.mxu0 %v3257
    %3259 = vmatprep.subr.mxu0 0.0
    %v3260 = vand.u32 %v2767, 4294901760
    %v3261 = vsub.f32 %v2767, %v3260
    %v3262 = vand.u32 %v3261, 4294901760
    %3263 = vmatpush1.msra.mxu0 %v3262
    %3264 = vmatprep.subr.mxu0 0.0
    %v3265 = vand.u32 %v2768, 4294901760
    %v3266 = vsub.f32 %v2768, %v3265
    %v3267 = vand.u32 %v3266, 4294901760
    %3268 = vmatpush1.msra.mxu0 %v3267
    %3269 = vmatprep.subr.mxu0 0.0
    %v3270 = vand.u32 %v2769, 4294901760
    %v3271 = vsub.f32 %v2769, %v3270
    %v3272 = vand.u32 %v3271, 4294901760
    %3273 = vmatpush1.msra.mxu0 %v3272
    %3274 = vmatprep.subr.mxu0 0.0
    %3275 = vmatpush1.msra.mxu0 0.0
    %3276 = vmatprep.subr.mxu0 0.0
    %3277 = vmatpush1.msra.mxu0 0.0
    %3278 = vmatprep.subr.mxu0 0.0
    %3279 = vmatpush1.msra.mxu0 0.0
    %3280 = vmatprep.subr.mxu0 0.0
    %3281 = vmatpush1.msra.mxu0 0.0
    %3282 = vmatprep.subr.mxu0 0.0
    %3283 = vmatpush1.msra.mxu0 0.0
    %3284 = vmatprep.subr.mxu0 0.0
    %3285 = vmatpush1.msra.mxu0 0.0
    %3286 = vmatprep.subr.mxu0 0.0
    %3287 = vmatpush1.msra.mxu0 0.0
    %3288 = vmatprep.subr.mxu0 0.0
    %3289 = vmatpush1.msra.mxu0 0.0
    %3290 = vmatprep.subr.mxu0 0.0
    %3291 = vmatpush1.msra.mxu0 0.0
    %3292 = vmatprep.subr.mxu0 0.0
    %3293 = vmatpush1.msra.mxu0 0.0
    %3294 = vmatprep.subr.mxu0 0.0
    %3295 = vmatpush1.msra.mxu0 0.0
    %3296 = vmatprep.subr.mxu0 0.0
    %3297 = vmatpush1.msra.mxu0 0.0
    %3298 = vmatprep.subr.mxu0 0.0
    %3299 = vmatpush1.msra.mxu0 0.0
    %3300 = vmatprep.subr.mxu0 0.0
    %3301 = vmatpush1.msra.mxu0 0.0
    %3302 = vmatprep.subr.mxu0 0.0
    %3303 = vmatpush1.msra.mxu0 0.0
    %3304 = vmatprep.subr.mxu0 0.0
    %3305 = vmatpush1.msra.mxu0 0.0
    %3306 = vmatprep.subr.mxu0 0.0
    %3307 = vmatpush1.msra.mxu0 0.0
    %3308 = vmatprep.subr.mxu0 0.0
    %3309 = vmatpush1.msra.mxu0 0.0
    %3310 = vmatprep.subr.mxu0 0.0
    %3311 = vmatpush1.msra.mxu0 0.0
    %3312 = vmatprep.subr.mxu0 0.0
    %3313 = vmatpush1.msra.mxu0 0.0
    %3314 = vmatprep.subr.mxu0 0.0
    %3315 = vmatpush1.msra.mxu0 0.0
    %3316 = vmatprep.subr.mxu0 0.0
    %3317 = vmatpush1.msra.mxu0 0.0
    %3318 = vmatprep.subr.mxu0 0.0
    %3319 = vmatpush1.msra.mxu0 0.0
    %3320 = vmatprep.subr.mxu0 0.0
    %3321 = vmatpush1.msra.mxu0 0.0
    %3322 = vmatprep.mubr.f32.mxu0 0.0
    %v3323 = vand.u32 %v2770, 4294901760
    %3324 = vmatmul.mubr.f32.gmra.mrb[0].mxu0 %v3323
    %v3325 = vpop.f32.mrb[0].mxu0
    %v3326 = vadd.f32 %v3207, %v3325
    %v3327 = vpop.f32.mrb[0].mxu0
    %3328 = vmatprep.mubr.f32.mxu0 0.0
    %v3329 = vand.u32 %v2772, 4294901760
    %3330 = vmatmul.mubr.f32.gmra.mrb[0].mxu0 %v3329
    %v3331 = vpop.f32.mrb[0].mxu0
    %v3332 = vadd.f32 %v3215, %v3331
    %v3333 = vpop.f32.mrb[0].mxu0
    %3334 = vmatprep.mubr.f32.mxu0 0.0
    %v3335 = vand.u32 %v2774, 4294901760
    %3336 = vmatmul.mubr.f32.gmra.mrb[0].mxu0 %v3335
    %v3337 = vpop.f32.mrb[0].mxu0
    %v3338 = vadd.f32 %v3223, %v3337
    %v3339 = vpop.f32.mrb[0].mxu0
    %3340 = vmatprep.mubr.f32.mxu0 0.0
    %v3341 = vand.u32 %v2776, 4294901760
    %3342 = vmatmul.mubr.f32.gmra.mrb[0].mxu0 %v3341
    %v3343 = vpop.f32.mrb[0].mxu0
    %v3344 = vadd.f32 %v3231, %v3343
    %v3345 = vpop.f32.mrb[0].mxu0
    %3346 = vdwg.mxu0
    %3347 = vmatprep.subr.mxu0 0.0
    %v3348 = vand.u32 %v2762, 4294901760
    %3349 = vmatpush1.msra.mxu0 %v3348
    %3350 = vmatprep.subr.mxu0 0.0
    %v3351 = vand.u32 %v2763, 4294901760
    %3352 = vmatpush1.msra.mxu0 %v3351
    %3353 = vmatprep.subr.mxu0 0.0
    %v3354 = vand.u32 %v2764, 4294901760
    %3355 = vmatpush1.msra.mxu0 %v3354
    %3356 = vmatprep.subr.mxu0 0.0
    %v3357 = vand.u32 %v2765, 4294901760
    %3358 = vmatpush1.msra.mxu0 %v3357
    %3359 = vmatprep.subr.mxu0 0.0
    %v3360 = vand.u32 %v2766, 4294901760
    %3361 = vmatpush1.msra.mxu0 %v3360
    %3362 = vmatprep.subr.mxu0 0.0
    %v3363 = vand.u32 %v2767, 4294901760
    %3364 = vmatpush1.msra.mxu0 %v3363
    %3365 = vmatprep.subr.mxu0 0.0
    %v3366 = vand.u32 %v2768, 4294901760
    %3367 = vmatpush1.msra.mxu0 %v3366
    %3368 = vmatprep.subr.mxu0 0.0
    %v3369 = vand.u32 %v2769, 4294901760
    %3370 = vmatpush1.msra.mxu0 %v3369
    %3371 = vmatprep.subr.mxu0 0.0
    %3372 = vmatpush1.msra.mxu0 0.0
    %3373 = vmatprep.subr.mxu0 0.0
    %3374 = vmatpush1.msra.mxu0 0.0
    %3375 = vmatprep.subr.mxu0 0.0
    %3376 = vmatpush1.msra.mxu0 0.0
    %3377 = vmatprep.subr.mxu0 0.0
    %3378 = vmatpush1.msra.mxu0 0.0
    %3379 = vmatprep.subr.mxu0 0.0
    %3380 = vmatpush1.msra.mxu0 0.0
    %3381 = vmatprep.subr.mxu0 0.0
    %3382 = vmatpush1.msra.mxu0 0.0
    %3383 = vmatprep.subr.mxu0 0.0
    %3384 = vmatpush1.msra.mxu0 0.0
    %3385 = vmatprep.subr.mxu0 0.0
    %3386 = vmatpush1.msra.mxu0 0.0
    %3387 = vmatprep.subr.mxu0 0.0
    %3388 = vmatpush1.msra.mxu0 0.0
    %3389 = vmatprep.subr.mxu0 0.0
    %3390 = vmatpush1.msra.mxu0 0.0
    %3391 = vmatprep.subr.mxu0 0.0
    %3392 = vmatpush1.msra.mxu0 0.0
    %3393 = vmatprep.subr.mxu0 0.0
    %3394 = vmatpush1.msra.mxu0 0.0
    %3395 = vmatprep.subr.mxu0 0.0
    %3396 = vmatpush1.msra.mxu0 0.0
    %3397 = vmatprep.subr.mxu0 0.0
    %3398 = vmatpush1.msra.mxu0 0.0
    %3399 = vmatprep.subr.mxu0 0.0
    %3400 = vmatpush1.msra.mxu0 0.0
    %3401 = vmatprep.subr.mxu0 0.0
    %3402 = vmatpush1.msra.mxu0 0.0
    %3403 = vmatprep.subr.mxu0 0.0
    %3404 = vmatpush1.msra.mxu0 0.0
    %3405 = vmatprep.subr.mxu0 0.0
    %3406 = vmatpush1.msra.mxu0 0.0
    %3407 = vmatprep.subr.mxu0 0.0
    %3408 = vmatpush1.msra.mxu0 0.0
    %3409 = vmatprep.subr.mxu0 0.0
    %3410 = vmatpush1.msra.mxu0 0.0
    %3411 = vmatprep.subr.mxu0 0.0
    %3412 = vmatpush1.msra.mxu0 0.0
    %3413 = vmatprep.subr.mxu0 0.0
    %3414 = vmatpush1.msra.mxu0 0.0
    %3415 = vmatprep.subr.mxu0 0.0
    %3416 = vmatpush1.msra.mxu0 0.0
    %3417 = vmatprep.subr.mxu0 0.0
    %3418 = vmatpush1.msra.mxu0 0.0
    %3419 = vmatprep.mubr.f32.mxu0 0.0
    %v3420 = vand.u32 %v2770, 4294901760
    %3421 = vmatmul.mubr.f32.gmra.mrb[0].mxu0 %v3420
    %v3422 = vpop.f32.mrb[0].mxu0
    %v3423 = vadd.f32 %v3326, %v3422
    %v3424 = vpop.f32.mrb[0].mxu0
    %3425 = vmatprep.mubr.f32.mxu0 0.0
    %v3426 = vand.u32 %v2772, 4294901760
    %3427 = vmatmul.mubr.f32.gmra.mrb[0].mxu0 %v3426
    %v3428 = vpop.f32.mrb[0].mxu0
    %v3429 = vadd.f32 %v3332, %v3428
    %v3430 = vpop.f32.mrb[0].mxu0
    %3431 = vmatprep.mubr.f32.mxu0 0.0
    %v3432 = vand.u32 %v2774, 4294901760
    %3433 = vmatmul.mubr.f32.gmra.mrb[0].mxu0 %v3432
    %v3434 = vpop.f32.mrb[0].mxu0
    %v3435 = vadd.f32 %v3338, %v3434
    %v3436 = vpop.f32.mrb[0].mxu0
    %3437 = vmatprep.mubr.f32.mxu0 0.0
    %v3438 = vand.u32 %v2776, 4294901760
    %3439 = vmatmul.mubr.f32.gmra.mrb[0].mxu0 %v3438
    %v3440 = vpop.f32.mrb[0].mxu0
    %v3441 = vadd.f32 %v3344, %v3440
    %v3442 = vpop.f32.mrb[0].mxu0
    %3443 = vdwg.mxu0
    %v3444 = vadd.f32 %v2749, %v3423
    %v3445 = vadd.f32 %v2750, %v3429
    %v3446 = vadd.f32 %v2751, %v3435
    %v3447 = vadd.f32 %v2752, %v3441
    %vm3448 = vcmask 1040384
    %v3449 = vrot.slane 0.0, 7
    %v3450 = vrot.slane %v672, 7
    %v3451 = vsel %vm3448, %v3449, %v3450
    %v3452 = vsel %vm3448, %v3450, %v3449
    %v3453 = vrot.slane %v673, 7
    %v3454 = vsel %vm3448, %v3449, %v3453
    %v3455 = vsel %vm3448, %v3453, %v3449
    %s3456 = scalar_lea.vmem [#allocation2], 256
    %v3457 = vld [vmem:[%s3456] sm:$0xff]
    %v3458 = vld [vmem:[%s3456 + $0x8] sm:$0xff]
    %v3459 = vld [vmem:[%s3456 + $0x10] sm:$0xff]
    %v3460 = vld [vmem:[%s3456 + $0x18] sm:$0xff]
    %v3461 = vld [vmem:[%s3456 + $0x20] sm:$0xff]
    %v3462 = vld [vmem:[%s3456 + $0x28] sm:$0xff]
    %v3463 = vld [vmem:[%s3456 + $0x30] sm:$0xff]
    %v3464 = vld [vmem:[%s3456 + $0x38] sm:$0xff]
    %v3465 = vsel %vm85, %v3451, 0
    %v3467 = vsel %vm85, %v3452, 0
    %v3469 = vsel %vm85, %v3454, 0
    %v3471 = vsel %vm85, %v3455, 0
    %3473 = vmatprep.subr.mxu0 0.0
    %v3474 = vand.u32 %v3457, 4294901760
    %3475 = vmatpush1.msra.mxu0 %v3474
    %3476 = vmatprep.subr.mxu0 0.0
    %v3477 = vand.u32 %v3458, 4294901760
    %3478 = vmatpush1.msra.mxu0 %v3477
    %3479 = vmatprep.subr.mxu0 0.0
    %v3480 = vand.u32 %v3459, 4294901760
    %3481 = vmatpush1.msra.mxu0 %v3480
    %3482 = vmatprep.subr.mxu0 0.0
    %v3483 = vand.u32 %v3460, 4294901760
    %3484 = vmatpush1.msra.mxu0 %v3483
    %3485 = vmatprep.subr.mxu0 0.0
    %v3486 = vand.u32 %v3461, 4294901760
    %3487 = vmatpush1.msra.mxu0 %v3486
    %3488 = vmatprep.subr.mxu0 0.0
    %v3489 = vand.u32 %v3462, 4294901760
    %3490 = vmatpush1.msra.mxu0 %v3489
    %3491 = vmatprep.subr.mxu0 0.0
    %v3492 = vand.u32 %v3463, 4294901760
    %3493 = vmatpush1.msra.mxu0 %v3492
    %3494 = vmatprep.subr.mxu0 0.0
    %v3495 = vand.u32 %v3464, 4294901760
    %3496 = vmatpush1.msra.mxu0 %v3495
    %3497 = vmatprep.subr.mxu0 0.0
    %3498 = vmatpush1.msra.mxu0 0.0
    %3499 = vmatprep.subr.mxu0 0.0
    %3500 = vmatpush1.msra.mxu0 0.0
    %3501 = vmatprep.subr.mxu0 0.0
    %3502 = vmatpush1.msra.mxu0 0.0
    %3503 = vmatprep.subr.mxu0 0.0
    %3504 = vmatpush1.msra.mxu0 0.0
    %3505 = vmatprep.subr.mxu0 0.0
    %3506 = vmatpush1.msra.mxu0 0.0
    %3507 = vmatprep.subr.mxu0 0.0
    %3508 = vmatpush1.msra.mxu0 0.0
    %3509 = vmatprep.subr.mxu0 0.0
    %3510 = vmatpush1.msra.mxu0 0.0
    %3511 = vmatprep.subr.mxu0 0.0
    %3512 = vmatpush1.msra.mxu0 0.0
    %3513 = vmatprep.subr.mxu0 0.0
    %3514 = vmatpush1.msra.mxu0 0.0
    %3515 = vmatprep.subr.mxu0 0.0
    %3516 = vmatpush1.msra.mxu0 0.0
    %3517 = vmatprep.subr.mxu0 0.0
    %3518 = vmatpush1.msra.mxu0 0.0
    %3519 = vmatprep.subr.mxu0 0.0
    %3520 = vmatpush1.msra.mxu0 0.0
    %3521 = vmatprep.subr.mxu0 0.0
    %3522 = vmatpush1.msra.mxu0 0.0
    %3523 = vmatprep.subr.mxu0 0.0
    %3524 = vmatpush1.msra.mxu0 0.0
    %3525 = vmatprep.subr.mxu0 0.0
    %3526 = vmatpush1.msra.mxu0 0.0
    %3527 = vmatprep.subr.mxu0 0.0
    %3528 = vmatpush1.msra.mxu0 0.0
    %3529 = vmatprep.subr.mxu0 0.0
    %3530 = vmatpush1.msra.mxu0 0.0
    %3531 = vmatprep.subr.mxu0 0.0
    %3532 = vmatpush1.msra.mxu0 0.0
    %3533 = vmatprep.subr.mxu0 0.0
    %3534 = vmatpush1.msra.mxu0 0.0
    %3535 = vmatprep.subr.mxu0 0.0
    %3536 = vmatpush1.msra.mxu0 0.0
    %3537 = vmatprep.subr.mxu0 0.0
    %3538 = vmatpush1.msra.mxu0 0.0
    %3539 = vmatprep.subr.mxu0 0.0
    %3540 = vmatpush1.msra.mxu0 0.0
    %3541 = vmatprep.subr.mxu0 0.0
    %3542 = vmatpush1.msra.mxu0 0.0
    %3543 = vmatprep.subr.mxu0 0.0
    %3544 = vmatpush1.msra.mxu0 0.0
    %3545 = vmatprep.mubr.f32.mxu0 0.0
    %v3546 = vand.u32 %v3465, 4294901760
    %v3547 = vsub.f32 %v3465, %v3546
    %v3548 = vand.u32 %v3547, 4294901760
    %v3549 = vsub.f32 %v3547, %v3548
    %v3550 = vand.u32 %v3549, 4294901760
    %3551 = vmatmul.mubr.f32.gmra.mrb[0].mxu0 %v3550
    %v3552 = vpop.f32.mrb[0].mxu0
    %v3553 = vadd.f32 0.0, %v3552
    %v3554 = vpop.f32.mrb[0].mxu0
    %3555 = vmatprep.mubr.f32.mxu0 0.0
    %v3556 = vand.u32 %v3467, 4294901760
    %v3557 = vsub.f32 %v3467, %v3556
    %v3558 = vand.u32 %v3557, 4294901760
    %v3559 = vsub.f32 %v3557, %v3558
    %v3560 = vand.u32 %v3559, 4294901760
    %3561 = vmatmul.mubr.f32.gmra.mrb[0].mxu0 %v3560
    %v3562 = vpop.f32.mrb[0].mxu0
    %v3563 = vadd.f32 0.0, %v3562
    %v3564 = vpop.f32.mrb[0].mxu0
    %3565 = vmatprep.mubr.f32.mxu0 0.0
    %v3566 = vand.u32 %v3469, 4294901760
    %v3567 = vsub.f32 %v3469, %v3566
    %v3568 = vand.u32 %v3567, 4294901760
    %v3569 = vsub.f32 %v3567, %v3568
    %v3570 = vand.u32 %v3569, 4294901760
    %3571 = vmatmul.mubr.f32.gmra.mrb[0].mxu0 %v3570
    %v3572 = vpop.f32.mrb[0].mxu0
    %v3573 = vadd.f32 0.0, %v3572
    %v3574 = vpop.f32.mrb[0].mxu0
    %3575 = vmatprep.mubr.f32.mxu0 0.0
    %v3576 = vand.u32 %v3471, 4294901760
    %v3577 = vsub.f32 %v3471, %v3576
    %v3578 = vand.u32 %v3577, 4294901760
    %v3579 = vsub.f32 %v3577, %v3578
    %v3580 = vand.u32 %v3579, 4294901760
    %3581 = vmatmul.mubr.f32.gmra.mrb[0].mxu0 %v3580
    %v3582 = vpop.f32.mrb[0].mxu0
    %v3583 = vadd.f32 0.0, %v3582
    %v3584 = vpop.f32.mrb[0].mxu0
    %3585 = vdwg.mxu0
    %3586 = vmatprep.subr.mxu0 0.0
    %v3587 = vand.u32 %v3457, 4294901760
    %v3588 = vsub.f32 %v3457, %v3587
    %v3589 = vand.u32 %v3588, 4294901760
    %v3590 = vsub.f32 %v3588, %v3589
    %v3591 = vand.u32 %v3590, 4294901760
    %3592 = vmatpush1.msra.mxu0 %v3591
    %3593 = vmatprep.subr.mxu0 0.0
    %v3594 = vand.u32 %v3458, 4294901760
    %v3595 = vsub.f32 %v3458, %v3594
    %v3596 = vand.u32 %v3595, 4294901760
    %v3597 = vsub.f32 %v3595, %v3596
    %v3598 = vand.u32 %v3597, 4294901760
    %3599 = vmatpush1.msra.mxu0 %v3598
    %3600 = vmatprep.subr.mxu0 0.0
    %v3601 = vand.u32 %v3459, 4294901760
    %v3602 = vsub.f32 %v3459, %v3601
    %v3603 = vand.u32 %v3602, 4294901760
    %v3604 = vsub.f32 %v3602, %v3603
    %v3605 = vand.u32 %v3604, 4294901760
    %3606 = vmatpush1.msra.mxu0 %v3605
    %3607 = vmatprep.subr.mxu0 0.0
    %v3608 = vand.u32 %v3460, 4294901760
    %v3609 = vsub.f32 %v3460, %v3608
    %v3610 = vand.u32 %v3609, 4294901760
    %v3611 = vsub.f32 %v3609, %v3610
    %v3612 = vand.u32 %v3611, 4294901760
    %3613 = vmatpush1.msra.mxu0 %v3612
    %3614 = vmatprep.subr.mxu0 0.0
    %v3615 = vand.u32 %v3461, 4294901760
    %v3616 = vsub.f32 %v3461, %v3615
    %v3617 = vand.u32 %v3616, 4294901760
    %v3618 = vsub.f32 %v3616, %v3617
    %v3619 = vand.u32 %v3618, 4294901760
    %3620 = vmatpush1.msra.mxu0 %v3619
    %3621 = vmatprep.subr.mxu0 0.0
    %v3622 = vand.u32 %v3462, 4294901760
    %v3623 = vsub.f32 %v3462, %v3622
    %v3624 = vand.u32 %v3623, 4294901760
    %v3625 = vsub.f32 %v3623, %v3624
    %v3626 = vand.u32 %v3625, 4294901760
    %3627 = vmatpush1.msra.mxu0 %v3626
    %3628 = vmatprep.subr.mxu0 0.0
    %v3629 = vand.u32 %v3463, 4294901760
    %v3630 = vsub.f32 %v3463, %v3629
    %v3631 = vand.u32 %v3630, 4294901760
    %v3632 = vsub.f32 %v3630, %v3631
    %v3633 = vand.u32 %v3632, 4294901760
    %3634 = vmatpush1.msra.mxu0 %v3633
    %3635 = vmatprep.subr.mxu0 0.0
    %v3636 = vand.u32 %v3464, 4294901760
    %v3637 = vsub.f32 %v3464, %v3636
    %v3638 = vand.u32 %v3637, 4294901760
    %v3639 = vsub.f32 %v3637, %v3638
    %v3640 = vand.u32 %v3639, 4294901760
    %3641 = vmatpush1.msra.mxu0 %v3640
    %3642 = vmatprep.subr.mxu0 0.0
    %3643 = vmatpush1.msra.mxu0 0.0
    %3644 = vmatprep.subr.mxu0 0.0
    %3645 = vmatpush1.msra.mxu0 0.0
    %3646 = vmatprep.subr.mxu0 0.0
    %3647 = vmatpush1.msra.mxu0 0.0
    %3648 = vmatprep.subr.mxu0 0.0
    %3649 = vmatpush1.msra.mxu0 0.0
    %3650 = vmatprep.subr.mxu0 0.0
    %3651 = vmatpush1.msra.mxu0 0.0
    %3652 = vmatprep.subr.mxu0 0.0
    %3653 = vmatpush1.msra.mxu0 0.0
    %3654 = vmatprep.subr.mxu0 0.0
    %3655 = vmatpush1.msra.mxu0 0.0
    %3656 = vmatprep.subr.mxu0 0.0
    %3657 = vmatpush1.msra.mxu0 0.0
    %3658 = vmatprep.subr.mxu0 0.0
    %3659 = vmatpush1.msra.mxu0 0.0
    %3660 = vmatprep.subr.mxu0 0.0
    %3661 = vmatpush1.msra.mxu0 0.0
    %3662 = vmatprep.subr.mxu0 0.0
    %3663 = vmatpush1.msra.mxu0 0.0
    %3664 = vmatprep.subr.mxu0 0.0
    %3665 = vmatpush1.msra.mxu0 0.0
    %3666 = vmatprep.subr.mxu0 0.0
    %3667 = vmatpush1.msra.mxu0 0.0
    %3668 = vmatprep.subr.mxu0 0.0
    %3669 = vmatpush1.msra.mxu0 0.0
    %3670 = vmatprep.subr.mxu0 0.0
    %3671 = vmatpush1.msra.mxu0 0.0
    %3672 = vmatprep.subr.mxu0 0.0
    %3673 = vmatpush1.msra.mxu0 0.0
    %3674 = vmatprep.subr.mxu0 0.0
    %3675 = vmatpush1.msra.mxu0 0.0
    %3676 = vmatprep.subr.mxu0 0.0
    %3677 = vmatpush1.msra.mxu0 0.0
    %3678 = vmatprep.subr.mxu0 0.0
    %3679 = vmatpush1.msra.mxu0 0.0
    %3680 = vmatprep.subr.mxu0 0.0
    %3681 = vmatpush1.msra.mxu0 0.0
    %3682 = vmatprep.subr.mxu0 0.0
    %3683 = vmatpush1.msra.mxu0 0.0
    %3684 = vmatprep.subr.mxu0 0.0
    %3685 = vmatpush1.msra.mxu0 0.0
    %3686 = vmatprep.subr.mxu0 0.0
    %3687 = vmatpush1.msra.mxu0 0.0
    %3688 = vmatprep.subr.mxu0 0.0
    %3689 = vmatpush1.msra.mxu0 0.0
    %3690 = vmatprep.mubr.f32.mxu0 0.0
    %v3691 = vand.u32 %v3465, 4294901760
    %3692 = vmatmul.mubr.f32.gmra.mrb[0].mxu0 %v3691
    %v3693 = vpop.f32.mrb[0].mxu0
    %v3694 = vadd.f32 %v3553, %v3693
    %v3695 = vpop.f32.mrb[0].mxu0
    %3696 = vmatprep.mubr.f32.mxu0 0.0
    %v3697 = vand.u32 %v3467, 4294901760
    %3698 = vmatmul.mubr.f32.gmra.mrb[0].mxu0 %v3697
    %v3699 = vpop.f32.mrb[0].mxu0
    %v3700 = vadd.f32 %v3563, %v3699
    %v3701 = vpop.f32.mrb[0].mxu0
    %3702 = vmatprep.mubr.f32.mxu0 0.0
    %v3703 = vand.u32 %v3469, 4294901760
    %3704 = vmatmul.mubr.f32.gmra.mrb[0].mxu0 %v3703
    %v3705 = vpop.f32.mrb[0].mxu0
    %v3706 = vadd.f32 %v3573, %v3705
    %v3707 = vpop.f32.mrb[0].mxu0
    %3708 = vmatprep.mubr.f32.mxu0 0.0
    %v3709 = vand.u32 %v3471, 4294901760
    %3710 = vmatmul.mubr.f32.gmra.mrb[0].mxu0 %v3709
    %v3711 = vpop.f32.mrb[0].mxu0
    %v3712 = vadd.f32 %v3583, %v3711
    %v3713 = vpop.f32.mrb[0].mxu0
    %3714 = vdwg.mxu0
    %3715 = vmatprep.subr.mxu0 0.0
    %v3716 = vand.u32 %v3457, 4294901760
    %v3717 = vsub.f32 %v3457, %v3716
    %3718 = vmatpush1.msra.mxu0 %v3717
    %3719 = vmatprep.subr.mxu0 0.0
    %v3720 = vand.u32 %v3458, 4294901760
    %v3721 = vsub.f32 %v3458, %v3720
    %3722 = vmatpush1.msra.mxu0 %v3721
    %3723 = vmatprep.subr.mxu0 0.0
    %v3724 = vand.u32 %v3459, 4294901760
    %v3725 = vsub.f32 %v3459, %v3724
    %3726 = vmatpush1.msra.mxu0 %v3725
    %3727 = vmatprep.subr.mxu0 0.0
    %v3728 = vand.u32 %v3460, 4294901760
    %v3729 = vsub.f32 %v3460, %v3728
    %3730 = vmatpush1.msra.mxu0 %v3729
    %3731 = vmatprep.subr.mxu0 0.0
    %v3732 = vand.u32 %v3461, 4294901760
    %v3733 = vsub.f32 %v3461, %v3732
    %3734 = vmatpush1.msra.mxu0 %v3733
    %3735 = vmatprep.subr.mxu0 0.0
    %v3736 = vand.u32 %v3462, 4294901760
    %v3737 = vsub.f32 %v3462, %v3736
    %3738 = vmatpush1.msra.mxu0 %v3737
    %3739 = vmatprep.subr.mxu0 0.0
    %v3740 = vand.u32 %v3463, 4294901760
    %v3741 = vsub.f32 %v3463, %v3740
    %3742 = vmatpush1.msra.mxu0 %v3741
    %3743 = vmatprep.subr.mxu0 0.0
    %v3744 = vand.u32 %v3464, 4294901760
    %v3745 = vsub.f32 %v3464, %v3744
    %3746 = vmatpush1.msra.mxu0 %v3745
    %3747 = vmatprep.subr.mxu0 0.0
    %3748 = vmatpush1.msra.mxu0 0.0
    %3749 = vmatprep.subr.mxu0 0.0
    %3750 = vmatpush1.msra.mxu0 0.0
    %3751 = vmatprep.subr.mxu0 0.0
    %3752 = vmatpush1.msra.mxu0 0.0
    %3753 = vmatprep.subr.mxu0 0.0
    %3754 = vmatpush1.msra.mxu0 0.0
    %3755 = vmatprep.subr.mxu0 0.0
    %3756 = vmatpush1.msra.mxu0 0.0
    %3757 = vmatprep.subr.mxu0 0.0
    %3758 = vmatpush1.msra.mxu0 0.0
    %3759 = vmatprep.subr.mxu0 0.0
    %3760 = vmatpush1.msra.mxu0 0.0
    %3761 = vmatprep.subr.mxu0 0.0
    %3762 = vmatpush1.msra.mxu0 0.0
    %3763 = vmatprep.subr.mxu0 0.0
    %3764 = vmatpush1.msra.mxu0 0.0
    %3765 = vmatprep.subr.mxu0 0.0
    %3766 = vmatpush1.msra.mxu0 0.0
    %3767 = vmatprep.subr.mxu0 0.0
    %3768 = vmatpush1.msra.mxu0 0.0
    %3769 = vmatprep.subr.mxu0 0.0
    %3770 = vmatpush1.msra.mxu0 0.0
    %3771 = vmatprep.subr.mxu0 0.0
    %3772 = vmatpush1.msra.mxu0 0.0
    %3773 = vmatprep.subr.mxu0 0.0
    %3774 = vmatpush1.msra.mxu0 0.0
    %3775 = vmatprep.subr.mxu0 0.0
    %3776 = vmatpush1.msra.mxu0 0.0
    %3777 = vmatprep.subr.mxu0 0.0
    %3778 = vmatpush1.msra.mxu0 0.0
    %3779 = vmatprep.subr.mxu0 0.0
    %3780 = vmatpush1.msra.mxu0 0.0
    %3781 = vmatprep.subr.mxu0 0.0
    %3782 = vmatpush1.msra.mxu0 0.0
    %3783 = vmatprep.subr.mxu0 0.0
    %3784 = vmatpush1.msra.mxu0 0.0
    %3785 = vmatprep.subr.mxu0 0.0
    %3786 = vmatpush1.msra.mxu0 0.0
    %3787 = vmatprep.subr.mxu0 0.0
    %3788 = vmatpush1.msra.mxu0 0.0
    %3789 = vmatprep.subr.mxu0 0.0
    %3790 = vmatpush1.msra.mxu0 0.0
    %3791 = vmatprep.subr.mxu0 0.0
    %3792 = vmatpush1.msra.mxu0 0.0
    %3793 = vmatprep.subr.mxu0 0.0
    %3794 = vmatpush1.msra.mxu0 0.0
    %3795 = vmatprep.mubr.f32.mxu0 0.0
    %v3796 = vand.u32 %v3465, 4294901760
    %v3797 = vsub.f32 %v3465, %v3796
    %3798 = vmatmul.mubr.f32.gmra.mrb[0].mxu0 %v3797
    %v3799 = vpop.f32.mrb[0].mxu0
    %v3800 = vadd.f32 %v3694, %v3799
    %v3801 = vpop.f32.mrb[0].mxu0
    %3802 = vmatprep.mubr.f32.mxu0 0.0
    %v3803 = vand.u32 %v3467, 4294901760
    %v3804 = vsub.f32 %v3467, %v3803
    %3805 = vmatmul.mubr.f32.gmra.mrb[0].mxu0 %v3804
    %v3806 = vpop.f32.mrb[0].mxu0
    %v3807 = vadd.f32 %v3700, %v3806
    %v3808 = vpop.f32.mrb[0].mxu0
    %3809 = vmatprep.mubr.f32.mxu0 0.0
    %v3810 = vand.u32 %v3469, 4294901760
    %v3811 = vsub.f32 %v3469, %v3810
    %3812 = vmatmul.mubr.f32.gmra.mrb[0].mxu0 %v3811
    %v3813 = vpop.f32.mrb[0].mxu0
    %v3814 = vadd.f32 %v3706, %v3813
    %v3815 = vpop.f32.mrb[0].mxu0
    %3816 = vmatprep.mubr.f32.mxu0 0.0
    %v3817 = vand.u32 %v3471, 4294901760
    %v3818 = vsub.f32 %v3471, %v3817
    %3819 = vmatmul.mubr.f32.gmra.mrb[0].mxu0 %v3818
    %v3820 = vpop.f32.mrb[0].mxu0
    %v3821 = vadd.f32 %v3712, %v3820
    %v3822 = vpop.f32.mrb[0].mxu0
    %3823 = vdwg.mxu0
    %3824 = vmatprep.subr.mxu0 0.0
    %v3825 = vand.u32 %v3457, 4294901760
    %3826 = vmatpush1.msra.mxu0 %v3825
    %3827 = vmatprep.subr.mxu0 0.0
    %v3828 = vand.u32 %v3458, 4294901760
    %3829 = vmatpush1.msra.mxu0 %v3828
    %3830 = vmatprep.subr.mxu0 0.0
    %v3831 = vand.u32 %v3459, 4294901760
    %3832 = vmatpush1.msra.mxu0 %v3831
    %3833 = vmatprep.subr.mxu0 0.0
    %v3834 = vand.u32 %v3460, 4294901760
    %3835 = vmatpush1.msra.mxu0 %v3834
    %3836 = vmatprep.subr.mxu0 0.0
    %v3837 = vand.u32 %v3461, 4294901760
    %3838 = vmatpush1.msra.mxu0 %v3837
    %3839 = vmatprep.subr.mxu0 0.0
    %v3840 = vand.u32 %v3462, 4294901760
    %3841 = vmatpush1.msra.mxu0 %v3840
    %3842 = vmatprep.subr.mxu0 0.0
    %v3843 = vand.u32 %v3463, 4294901760
    %3844 = vmatpush1.msra.mxu0 %v3843
    %3845 = vmatprep.subr.mxu0 0.0
    %v3846 = vand.u32 %v3464, 4294901760
    %3847 = vmatpush1.msra.mxu0 %v3846
    %3848 = vmatprep.subr.mxu0 0.0
    %3849 = vmatpush1.msra.mxu0 0.0
    %3850 = vmatprep.subr.mxu0 0.0
    %3851 = vmatpush1.msra.mxu0 0.0
    %3852 = vmatprep.subr.mxu0 0.0
    %3853 = vmatpush1.msra.mxu0 0.0
    %3854 = vmatprep.subr.mxu0 0.0
    %3855 = vmatpush1.msra.mxu0 0.0
    %3856 = vmatprep.subr.mxu0 0.0
    %3857 = vmatpush1.msra.mxu0 0.0
    %3858 = vmatprep.subr.mxu0 0.0
    %3859 = vmatpush1.msra.mxu0 0.0
    %3860 = vmatprep.subr.mxu0 0.0
    %3861 = vmatpush1.msra.mxu0 0.0
    %3862 = vmatprep.subr.mxu0 0.0
    %3863 = vmatpush1.msra.mxu0 0.0
    %3864 = vmatprep.subr.mxu0 0.0
    %3865 = vmatpush1.msra.mxu0 0.0
    %3866 = vmatprep.subr.mxu0 0.0
    %3867 = vmatpush1.msra.mxu0 0.0
    %3868 = vmatprep.subr.mxu0 0.0
    %3869 = vmatpush1.msra.mxu0 0.0
    %3870 = vmatprep.subr.mxu0 0.0
    %3871 = vmatpush1.msra.mxu0 0.0
    %3872 = vmatprep.subr.mxu0 0.0
    %3873 = vmatpush1.msra.mxu0 0.0
    %3874 = vmatprep.subr.mxu0 0.0
    %3875 = vmatpush1.msra.mxu0 0.0
    %3876 = vmatprep.subr.mxu0 0.0
    %3877 = vmatpush1.msra.mxu0 0.0
    %3878 = vmatprep.subr.mxu0 0.0
    %3879 = vmatpush1.msra.mxu0 0.0
    %3880 = vmatprep.subr.mxu0 0.0
    %3881 = vmatpush1.msra.mxu0 0.0
    %3882 = vmatprep.subr.mxu0 0.0
    %3883 = vmatpush1.msra.mxu0 0.0
    %3884 = vmatprep.subr.mxu0 0.0
    %3885 = vmatpush1.msra.mxu0 0.0
    %3886 = vmatprep.subr.mxu0 0.0
    %3887 = vmatpush1.msra.mxu0 0.0
    %3888 = vmatprep.subr.mxu0 0.0
    %3889 = vmatpush1.msra.mxu0 0.0
    %3890 = vmatprep.subr.mxu0 0.0
    %3891 = vmatpush1.msra.mxu0 0.0
    %3892 = vmatprep.subr.mxu0 0.0
    %3893 = vmatpush1.msra.mxu0 0.0
    %3894 = vmatprep.subr.mxu0 0.0
    %3895 = vmatpush1.msra.mxu0 0.0
    %3896 = vmatprep.mubr.f32.mxu0 0.0
    %v3897 = vand.u32 %v3465, 4294901760
    %v3898 = vsub.f32 %v3465, %v3897
    %v3899 = vand.u32 %v3898, 4294901760
    %3900 = vmatmul.mubr.f32.gmra.mrb[0].mxu0 %v3899
    %v3901 = vpop.f32.mrb[0].mxu0
    %v3902 = vadd.f32 %v3800, %v3901
    %v3903 = vpop.f32.mrb[0].mxu0
    %3904 = vmatprep.mubr.f32.mxu0 0.0
    %v3905 = vand.u32 %v3467, 4294901760
    %v3906 = vsub.f32 %v3467, %v3905
    %v3907 = vand.u32 %v3906, 4294901760
    %3908 = vmatmul.mubr.f32.gmra.mrb[0].mxu0 %v3907
    %v3909 = vpop.f32.mrb[0].mxu0
    %v3910 = vadd.f32 %v3807, %v3909
    %v3911 = vpop.f32.mrb[0].mxu0
    %3912 = vmatprep.mubr.f32.mxu0 0.0
    %v3913 = vand.u32 %v3469, 4294901760
    %v3914 = vsub.f32 %v3469, %v3913
    %v3915 = vand.u32 %v3914, 4294901760
    %3916 = vmatmul.mubr.f32.gmra.mrb[0].mxu0 %v3915
    %v3917 = vpop.f32.mrb[0].mxu0
    %v3918 = vadd.f32 %v3814, %v3917
    %v3919 = vpop.f32.mrb[0].mxu0
    %3920 = vmatprep.mubr.f32.mxu0 0.0
    %v3921 = vand.u32 %v3471, 4294901760
    %v3922 = vsub.f32 %v3471, %v3921
    %v3923 = vand.u32 %v3922, 4294901760
    %3924 = vmatmul.mubr.f32.gmra.mrb[0].mxu0 %v3923
    %v3925 = vpop.f32.mrb[0].mxu0
    %v3926 = vadd.f32 %v3821, %v3925
    %v3927 = vpop.f32.mrb[0].mxu0
    %3928 = vdwg.mxu0
    %3929 = vmatprep.subr.mxu0 0.0
    %v3930 = vand.u32 %v3457, 4294901760
    %v3931 = vsub.f32 %v3457, %v3930
    %v3932 = vand.u32 %v3931, 4294901760
    %3933 = vmatpush1.msra.mxu0 %v3932
    %3934 = vmatprep.subr.mxu0 0.0
    %v3935 = vand.u32 %v3458, 4294901760
    %v3936 = vsub.f32 %v3458, %v3935
    %v3937 = vand.u32 %v3936, 4294901760
    %3938 = vmatpush1.msra.mxu0 %v3937
    %3939 = vmatprep.subr.mxu0 0.0
    %v3940 = vand.u32 %v3459, 4294901760
    %v3941 = vsub.f32 %v3459, %v3940
    %v3942 = vand.u32 %v3941, 4294901760
    %3943 = vmatpush1.msra.mxu0 %v3942
    %3944 = vmatprep.subr.mxu0 0.0
    %v3945 = vand.u32 %v3460, 4294901760
    %v3946 = vsub.f32 %v3460, %v3945
    %v3947 = vand.u32 %v3946, 4294901760
    %3948 = vmatpush1.msra.mxu0 %v3947
    %3949 = vmatprep.subr.mxu0 0.0
    %v3950 = vand.u32 %v3461, 4294901760
    %v3951 = vsub.f32 %v3461, %v3950
    %v3952 = vand.u32 %v3951, 4294901760
    %3953 = vmatpush1.msra.mxu0 %v3952
    %3954 = vmatprep.subr.mxu0 0.0
    %v3955 = vand.u32 %v3462, 4294901760
    %v3956 = vsub.f32 %v3462, %v3955
    %v3957 = vand.u32 %v3956, 4294901760
    %3958 = vmatpush1.msra.mxu0 %v3957
    %3959 = vmatprep.subr.mxu0 0.0
    %v3960 = vand.u32 %v3463, 4294901760
    %v3961 = vsub.f32 %v3463, %v3960
    %v3962 = vand.u32 %v3961, 4294901760
    %3963 = vmatpush1.msra.mxu0 %v3962
    %3964 = vmatprep.subr.mxu0 0.0
    %v3965 = vand.u32 %v3464, 4294901760
    %v3966 = vsub.f32 %v3464, %v3965
    %v3967 = vand.u32 %v3966, 4294901760
    %3968 = vmatpush1.msra.mxu0 %v3967
    %3969 = vmatprep.subr.mxu0 0.0
    %3970 = vmatpush1.msra.mxu0 0.0
    %3971 = vmatprep.subr.mxu0 0.0
    %3972 = vmatpush1.msra.mxu0 0.0
    %3973 = vmatprep.subr.mxu0 0.0
    %3974 = vmatpush1.msra.mxu0 0.0
    %3975 = vmatprep.subr.mxu0 0.0
    %3976 = vmatpush1.msra.mxu0 0.0
    %3977 = vmatprep.subr.mxu0 0.0
    %3978 = vmatpush1.msra.mxu0 0.0
    %3979 = vmatprep.subr.mxu0 0.0
    %3980 = vmatpush1.msra.mxu0 0.0
    %3981 = vmatprep.subr.mxu0 0.0
    %3982 = vmatpush1.msra.mxu0 0.0
    %3983 = vmatprep.subr.mxu0 0.0
    %3984 = vmatpush1.msra.mxu0 0.0
    %3985 = vmatprep.subr.mxu0 0.0
    %3986 = vmatpush1.msra.mxu0 0.0
    %3987 = vmatprep.subr.mxu0 0.0
    %3988 = vmatpush1.msra.mxu0 0.0
    %3989 = vmatprep.subr.mxu0 0.0
    %3990 = vmatpush1.msra.mxu0 0.0
    %3991 = vmatprep.subr.mxu0 0.0
    %3992 = vmatpush1.msra.mxu0 0.0
    %3993 = vmatprep.subr.mxu0 0.0
    %3994 = vmatpush1.msra.mxu0 0.0
    %3995 = vmatprep.subr.mxu0 0.0
    %3996 = vmatpush1.msra.mxu0 0.0
    %3997 = vmatprep.subr.mxu0 0.0
    %3998 = vmatpush1.msra.mxu0 0.0
    %3999 = vmatprep.subr.mxu0 0.0
    %4000 = vmatpush1.msra.mxu0 0.0
    %4001 = vmatprep.subr.mxu0 0.0
    %4002 = vmatpush1.msra.mxu0 0.0
    %4003 = vmatprep.subr.mxu0 0.0
    %4004 = vmatpush1.msra.mxu0 0.0
    %4005 = vmatprep.subr.mxu0 0.0
    %4006 = vmatpush1.msra.mxu0 0.0
    %4007 = vmatprep.subr.mxu0 0.0
    %4008 = vmatpush1.msra.mxu0 0.0
    %4009 = vmatprep.subr.mxu0 0.0
    %4010 = vmatpush1.msra.mxu0 0.0
    %4011 = vmatprep.subr.mxu0 0.0
    %4012 = vmatpush1.msra.mxu0 0.0
    %4013 = vmatprep.subr.mxu0 0.0
    %4014 = vmatpush1.msra.mxu0 0.0
    %4015 = vmatprep.subr.mxu0 0.0
    %4016 = vmatpush1.msra.mxu0 0.0
    %4017 = vmatprep.mubr.f32.mxu0 0.0
    %v4018 = vand.u32 %v3465, 4294901760
    %4019 = vmatmul.mubr.f32.gmra.mrb[0].mxu0 %v4018
    %v4020 = vpop.f32.mrb[0].mxu0
    %v4021 = vadd.f32 %v3902, %v4020
    %v4022 = vpop.f32.mrb[0].mxu0
    %4023 = vmatprep.mubr.f32.mxu0 0.0
    %v4024 = vand.u32 %v3467, 4294901760
    %4025 = vmatmul.mubr.f32.gmra.mrb[0].mxu0 %v4024
    %v4026 = vpop.f32.mrb[0].mxu0
    %v4027 = vadd.f32 %v3910, %v4026
    %v4028 = vpop.f32.mrb[0].mxu0
    %4029 = vmatprep.mubr.f32.mxu0 0.0
    %v4030 = vand.u32 %v3469, 4294901760
    %4031 = vmatmul.mubr.f32.gmra.mrb[0].mxu0 %v4030
    %v4032 = vpop.f32.mrb[0].mxu0
    %v4033 = vadd.f32 %v3918, %v4032
    %v4034 = vpop.f32.mrb[0].mxu0
    %4035 = vmatprep.mubr.f32.mxu0 0.0
    %v4036 = vand.u32 %v3471, 4294901760
    %4037 = vmatmul.mubr.f32.gmra.mrb[0].mxu0 %v4036
    %v4038 = vpop.f32.mrb[0].mxu0
    %v4039 = vadd.f32 %v3926, %v4038
    %v4040 = vpop.f32.mrb[0].mxu0
    %4041 = vdwg.mxu0
    %4042 = vmatprep.subr.mxu0 0.0
    %v4043 = vand.u32 %v3457, 4294901760
    %4044 = vmatpush1.msra.mxu0 %v4043
    %4045 = vmatprep.subr.mxu0 0.0
    %v4046 = vand.u32 %v3458, 4294901760
    %4047 = vmatpush1.msra.mxu0 %v4046
    %4048 = vmatprep.subr.mxu0 0.0
    %v4049 = vand.u32 %v3459, 4294901760
    %4050 = vmatpush1.msra.mxu0 %v4049
    %4051 = vmatprep.subr.mxu0 0.0
    %v4052 = vand.u32 %v3460, 4294901760
    %4053 = vmatpush1.msra.mxu0 %v4052
    %4054 = vmatprep.subr.mxu0 0.0
    %v4055 = vand.u32 %v3461, 4294901760
    %4056 = vmatpush1.msra.mxu0 %v4055
    %4057 = vmatprep.subr.mxu0 0.0
    %v4058 = vand.u32 %v3462, 4294901760
    %4059 = vmatpush1.msra.mxu0 %v4058
    %4060 = vmatprep.subr.mxu0 0.0
    %v4061 = vand.u32 %v3463, 4294901760
    %4062 = vmatpush1.msra.mxu0 %v4061
    %4063 = vmatprep.subr.mxu0 0.0
    %v4064 = vand.u32 %v3464, 4294901760
    %4065 = vmatpush1.msra.mxu0 %v4064
    %4066 = vmatprep.subr.mxu0 0.0
    %4067 = vmatpush1.msra.mxu0 0.0
    %4068 = vmatprep.subr.mxu0 0.0
    %4069 = vmatpush1.msra.mxu0 0.0
    %4070 = vmatprep.subr.mxu0 0.0
    %4071 = vmatpush1.msra.mxu0 0.0
    %4072 = vmatprep.subr.mxu0 0.0
    %4073 = vmatpush1.msra.mxu0 0.0
    %4074 = vmatprep.subr.mxu0 0.0
    %4075 = vmatpush1.msra.mxu0 0.0
    %4076 = vmatprep.subr.mxu0 0.0
    %4077 = vmatpush1.msra.mxu0 0.0
    %4078 = vmatprep.subr.mxu0 0.0
    %4079 = vmatpush1.msra.mxu0 0.0
    %4080 = vmatprep.subr.mxu0 0.0
    %4081 = vmatpush1.msra.mxu0 0.0
    %4082 = vmatprep.subr.mxu0 0.0
    %4083 = vmatpush1.msra.mxu0 0.0
    %4084 = vmatprep.subr.mxu0 0.0
    %4085 = vmatpush1.msra.mxu0 0.0
    %4086 = vmatprep.subr.mxu0 0.0
    %4087 = vmatpush1.msra.mxu0 0.0
    %4088 = vmatprep.subr.mxu0 0.0
    %4089 = vmatpush1.msra.mxu0 0.0
    %4090 = vmatprep.subr.mxu0 0.0
    %4091 = vmatpush1.msra.mxu0 0.0
    %4092 = vmatprep.subr.mxu0 0.0
    %4093 = vmatpush1.msra.mxu0 0.0
    %4094 = vmatprep.subr.mxu0 0.0
    %4095 = vmatpush1.msra.mxu0 0.0
    %4096 = vmatprep.subr.mxu0 0.0
    %4097 = vmatpush1.msra.mxu0 0.0
    %4098 = vmatprep.subr.mxu0 0.0
    %4099 = vmatpush1.msra.mxu0 0.0
    %4100 = vmatprep.subr.mxu0 0.0
    %4101 = vmatpush1.msra.mxu0 0.0
    %4102 = vmatprep.subr.mxu0 0.0
    %4103 = vmatpush1.msra.mxu0 0.0
    %4104 = vmatprep.subr.mxu0 0.0
    %4105 = vmatpush1.msra.mxu0 0.0
    %4106 = vmatprep.subr.mxu0 0.0
    %4107 = vmatpush1.msra.mxu0 0.0
    %4108 = vmatprep.subr.mxu0 0.0
    %4109 = vmatpush1.msra.mxu0 0.0
    %4110 = vmatprep.subr.mxu0 0.0
    %4111 = vmatpush1.msra.mxu0 0.0
    %4112 = vmatprep.subr.mxu0 0.0
    %4113 = vmatpush1.msra.mxu0 0.0
    %4114 = vmatprep.mubr.f32.mxu0 0.0
    %v4115 = vand.u32 %v3465, 4294901760
    %4116 = vmatmul.mubr.f32.gmra.mrb[0].mxu0 %v4115
    %v4117 = vpop.f32.mrb[0].mxu0
    %v4118 = vadd.f32 %v4021, %v4117
    %v4119 = vpop.f32.mrb[0].mxu0
    %4120 = vmatprep.mubr.f32.mxu0 0.0
    %v4121 = vand.u32 %v3467, 4294901760
    %4122 = vmatmul.mubr.f32.gmra.mrb[0].mxu0 %v4121
    %v4123 = vpop.f32.mrb[0].mxu0
    %v4124 = vadd.f32 %v4027, %v4123
    %v4125 = vpop.f32.mrb[0].mxu0
    %4126 = vmatprep.mubr.f32.mxu0 0.0
    %v4127 = vand.u32 %v3469, 4294901760
    %4128 = vmatmul.mubr.f32.gmra.mrb[0].mxu0 %v4127
    %v4129 = vpop.f32.mrb[0].mxu0
    %v4130 = vadd.f32 %v4033, %v4129
    %v4131 = vpop.f32.mrb[0].mxu0
    %4132 = vmatprep.mubr.f32.mxu0 0.0
    %v4133 = vand.u32 %v3471, 4294901760
    %4134 = vmatmul.mubr.f32.gmra.mrb[0].mxu0 %v4133
    %v4135 = vpop.f32.mrb[0].mxu0
    %v4136 = vadd.f32 %v4039, %v4135
    %v4137 = vpop.f32.mrb[0].mxu0
    %4138 = vdwg.mxu0
    %v4139 = vadd.f32 %v3444, %v4118
    %v4140 = vadd.f32 %v3445, %v4124
    %v4141 = vadd.f32 %v3446, %v4130
    %v4142 = vadd.f32 %v3447, %v4136
    %v4143 = vld [vmem:[%s4] sm:$0x1]
    %v4145 = vlaneseq
    %v4146 = vshrl.u32 %v4145, 7
    %v4147 = vsub.s32 0, %v4146
    %v4148 = vrot.slane %v4143, %v4147
    %v4150 = vadd.f32 %v4139, %v4148
    %v4151 = vadd.f32 %v4140, %v4148
    %v4152 = vadd.f32 %v4141, %v4148
    %v4153 = vadd.f32 %v4142, %v4148
    %v4154 = vmax.f32 %v4150, 0.0
    %v4155 = vmax.f32 %v4151, 0.0
    %v4156 = vmax.f32 %v4152, 0.0
    %v4157 = vmax.f32 %v4153, 0.0
    %v4158 = vmax.f32 %v4154, %v4155
    %v4159 = vrot.slane %v4158, 4
    %v4160 = vmax.f32 %v4158, %v4159
    %v4161 = vrot.slane %v4160, 2
    %v4162 = vmax.f32 %v4160, %v4161
    %v4163 = vrot.slane %v4162, 1
    %v4164 = vmax.f32 %v4162, %v4163
    %v4165 = vmax.f32 %v4156, %v4157
    %v4166 = vrot.slane %v4165, 4
    %v4167 = vmax.f32 %v4165, %v4166
    %v4168 = vrot.slane %v4167, 2
    %v4169 = vmax.f32 %v4167, %v4168
    %v4170 = vrot.slane %v4169, 1
    %v4171 = vmax.f32 %v4169, %v4170
    %v4172 = vld [vmem:[%s5] sm:$0xff]
    %v4173 = vld [vmem:[%s5 + $0x8] sm:$0xff]
    %v4174 = vld [vmem:[%s5 + $0x10] sm:$0xff]
    %v4175 = vld [vmem:[%s5 + $0x18] sm:$0xff]
    %v4176 = vld [vmem:[%s5 + $0x20] sm:$0xff]
    %v4177 = vld [vmem:[%s5 + $0x28] sm:$0xff]
    %v4178 = vld [vmem:[%s5 + $0x30] sm:$0xff]
    %v4179 = vld [vmem:[%s5 + $0x38] sm:$0xff]
    %v4180 = vld [vmem:[%s5 + $0x40] sm:$0xff]
    %v4181 = vld [vmem:[%s5 + $0x48] sm:$0xff]
    %v4182 = vld [vmem:[%s5 + $0x50] sm:$0xff]
    %v4183 = vld [vmem:[%s5 + $0x58] sm:$0xff]
    %v4184 = vld [vmem:[%s5 + $0x60] sm:$0xff]
    %v4185 = vld [vmem:[%s5 + $0x68] sm:$0xff]
    %v4186 = vld [vmem:[%s5 + $0x70] sm:$0xff]
    %v4187 = vld [vmem:[%s5 + $0x78] sm:$0xff]
    %v4188 = vld [vmem:[%s6] sm:$0x1]
    %v4190 = vlaneseq
    %v4191 = vshrl.u32 %v4190, 7
    %v4192 = vsub.s32 0, %v4191
    %v4193 = vrot.slane %v4188, %v4192
    %vm4197 = vcmask 1041409
    %v4198 = vsel %vm4197, %v4171, %v4164
    %4200 = vmatprep.subr.mxu0 0.0
    %v4201 = vand.u32 %v4172, 4294901760
    %4202 = vmatpush1.msra.mxu0 %v4201
    %4203 = vmatprep.subr.mxu0 0.0
    %v4204 = vand.u32 %v4173, 4294901760
    %4205 = vmatpush1.msra.mxu0 %v4204
    %4206 = vmatprep.subr.mxu0 0.0
    %v4207 = vand.u32 %v4174, 4294901760
    %4208 = vmatpush1.msra.mxu0 %v4207
    %4209 = vmatprep.subr.mxu0 0.0
    %v4210 = vand.u32 %v4175, 4294901760
    %4211 = vmatpush1.msra.mxu0 %v4210
    %4212 = vmatprep.subr.mxu0 0.0
    %v4213 = vand.u32 %v4176, 4294901760
    %4214 = vmatpush1.msra.mxu0 %v4213
    %4215 = vmatprep.subr.mxu0 0.0
    %v4216 = vand.u32 %v4177, 4294901760
    %4217 = vmatpush1.msra.mxu0 %v4216
    %4218 = vmatprep.subr.mxu0 0.0
    %v4219 = vand.u32 %v4178, 4294901760
    %4220 = vmatpush1.msra.mxu0 %v4219
    %4221 = vmatprep.subr.mxu0 0.0
    %v4222 = vand.u32 %v4179, 4294901760
    %4223 = vmatpush1.msra.mxu0 %v4222
    %4224 = vmatprep.subr.mxu0 0.0
    %v4225 = vand.u32 %v4180, 4294901760
    %4226 = vmatpush1.msra.mxu0 %v4225
    %4227 = vmatprep.subr.mxu0 0.0
    %v4228 = vand.u32 %v4181, 4294901760
    %4229 = vmatpush1.msra.mxu0 %v4228
    %4230 = vmatprep.subr.mxu0 0.0
    %v4231 = vand.u32 %v4182, 4294901760
    %4232 = vmatpush1.msra.mxu0 %v4231
    %4233 = vmatprep.subr.mxu0 0.0
    %v4234 = vand.u32 %v4183, 4294901760
    %4235 = vmatpush1.msra.mxu0 %v4234
    %4236 = vmatprep.subr.mxu0 0.0
    %v4237 = vand.u32 %v4184, 4294901760
    %4238 = vmatpush1.msra.mxu0 %v4237
    %4239 = vmatprep.subr.mxu0 0.0
    %v4240 = vand.u32 %v4185, 4294901760
    %4241 = vmatpush1.msra.mxu0 %v4240
    %4242 = vmatprep.subr.mxu0 0.0
    %v4243 = vand.u32 %v4186, 4294901760
    %4244 = vmatpush1.msra.mxu0 %v4243
    %4245 = vmatprep.subr.mxu0 0.0
    %v4246 = vand.u32 %v4187, 4294901760
    %4247 = vmatpush1.msra.mxu0 %v4246
    %4248 = vmatprep.subr.mxu0 0.0
    %4249 = vmatpush1.msra.mxu0 0.0
    %4250 = vmatprep.subr.mxu0 0.0
    %4251 = vmatpush1.msra.mxu0 0.0
    %4252 = vmatprep.subr.mxu0 0.0
    %4253 = vmatpush1.msra.mxu0 0.0
    %4254 = vmatprep.subr.mxu0 0.0
    %4255 = vmatpush1.msra.mxu0 0.0
    %4256 = vmatprep.subr.mxu0 0.0
    %4257 = vmatpush1.msra.mxu0 0.0
    %4258 = vmatprep.subr.mxu0 0.0
    %4259 = vmatpush1.msra.mxu0 0.0
    %4260 = vmatprep.subr.mxu0 0.0
    %4261 = vmatpush1.msra.mxu0 0.0
    %4262 = vmatprep.subr.mxu0 0.0
    %4263 = vmatpush1.msra.mxu0 0.0
    %4264 = vmatprep.subr.mxu0 0.0
    %4265 = vmatpush1.msra.mxu0 0.0
    %4266 = vmatprep.subr.mxu0 0.0
    %4267 = vmatpush1.msra.mxu0 0.0
    %4268 = vmatprep.subr.mxu0 0.0
    %4269 = vmatpush1.msra.mxu0 0.0
    %4270 = vmatprep.subr.mxu0 0.0
    %4271 = vmatpush1.msra.mxu0 0.0
    %4272 = vmatprep.subr.mxu0 0.0
    %4273 = vmatpush1.msra.mxu0 0.0
    %4274 = vmatprep.subr.mxu0 0.0
    %4275 = vmatpush1.msra.mxu0 0.0
    %4276 = vmatprep.subr.mxu0 0.0
    %4277 = vmatpush1.msra.mxu0 0.0
    %4278 = vmatprep.subr.mxu0 0.0
    %4279 = vmatpush1.msra.mxu0 0.0
    %4280 = vmatprep.mubr.f32.mxu0 0.0
    %v4281 = vand.u32 %v4198, 4294901760
    %v4282 = vsub.f32 %v4198, %v4281
    %v4283 = vand.u32 %v4282, 4294901760
    %v4284 = vsub.f32 %v4282, %v4283
    %v4285 = vand.u32 %v4284, 4294901760
    %4286 = vmatmul.mubr.f32.gmra.mrb[0].mxu0 %v4285
    %v4287 = vpop.f32.mrb[0].mxu0
    %v4288 = vadd.f32 %v4193, %v4287
    %v4289 = vpop.f32.mrb[0].mxu0
    %4290 = vdwg.mxu0
    %4291 = vmatprep.subr.mxu0 0.0
    %v4292 = vand.u32 %v4172, 4294901760
    %v4293 = vsub.f32 %v4172, %v4292
    %v4294 = vand.u32 %v4293, 4294901760
    %v4295 = vsub.f32 %v4293, %v4294
    %v4296 = vand.u32 %v4295, 4294901760
    %4297 = vmatpush1.msra.mxu0 %v4296
    %4298 = vmatprep.subr.mxu0 0.0
    %v4299 = vand.u32 %v4173, 4294901760
    %v4300 = vsub.f32 %v4173, %v4299
    %v4301 = vand.u32 %v4300, 4294901760
    %v4302 = vsub.f32 %v4300, %v4301
    %v4303 = vand.u32 %v4302, 4294901760
    %4304 = vmatpush1.msra.mxu0 %v4303
    %4305 = vmatprep.subr.mxu0 0.0
    %v4306 = vand.u32 %v4174, 4294901760
    %v4307 = vsub.f32 %v4174, %v4306
    %v4308 = vand.u32 %v4307, 4294901760
    %v4309 = vsub.f32 %v4307, %v4308
    %v4310 = vand.u32 %v4309, 4294901760
    %4311 = vmatpush1.msra.mxu0 %v4310
    %4312 = vmatprep.subr.mxu0 0.0
    %v4313 = vand.u32 %v4175, 4294901760
    %v4314 = vsub.f32 %v4175, %v4313
    %v4315 = vand.u32 %v4314, 4294901760
    %v4316 = vsub.f32 %v4314, %v4315
    %v4317 = vand.u32 %v4316, 4294901760
    %4318 = vmatpush1.msra.mxu0 %v4317
    %4319 = vmatprep.subr.mxu0 0.0
    %v4320 = vand.u32 %v4176, 4294901760
    %v4321 = vsub.f32 %v4176, %v4320
    %v4322 = vand.u32 %v4321, 4294901760
    %v4323 = vsub.f32 %v4321, %v4322
    %v4324 = vand.u32 %v4323, 4294901760
    %4325 = vmatpush1.msra.mxu0 %v4324
    %4326 = vmatprep.subr.mxu0 0.0
    %v4327 = vand.u32 %v4177, 4294901760
    %v4328 = vsub.f32 %v4177, %v4327
    %v4329 = vand.u32 %v4328, 4294901760
    %v4330 = vsub.f32 %v4328, %v4329
    %v4331 = vand.u32 %v4330, 4294901760
    %4332 = vmatpush1.msra.mxu0 %v4331
    %4333 = vmatprep.subr.mxu0 0.0
    %v4334 = vand.u32 %v4178, 4294901760
    %v4335 = vsub.f32 %v4178, %v4334
    %v4336 = vand.u32 %v4335, 4294901760
    %v4337 = vsub.f32 %v4335, %v4336
    %v4338 = vand.u32 %v4337, 4294901760
    %4339 = vmatpush1.msra.mxu0 %v4338
    %4340 = vmatprep.subr.mxu0 0.0
    %v4341 = vand.u32 %v4179, 4294901760
    %v4342 = vsub.f32 %v4179, %v4341
    %v4343 = vand.u32 %v4342, 4294901760
    %v4344 = vsub.f32 %v4342, %v4343
    %v4345 = vand.u32 %v4344, 4294901760
    %4346 = vmatpush1.msra.mxu0 %v4345
    %4347 = vmatprep.subr.mxu0 0.0
    %v4348 = vand.u32 %v4180, 4294901760
    %v4349 = vsub.f32 %v4180, %v4348
    %v4350 = vand.u32 %v4349, 4294901760
    %v4351 = vsub.f32 %v4349, %v4350
    %v4352 = vand.u32 %v4351, 4294901760
    %4353 = vmatpush1.msra.mxu0 %v4352
    %4354 = vmatprep.subr.mxu0 0.0
    %v4355 = vand.u32 %v4181, 4294901760
    %v4356 = vsub.f32 %v4181, %v4355
    %v4357 = vand.u32 %v4356, 4294901760
    %v4358 = vsub.f32 %v4356, %v4357
    %v4359 = vand.u32 %v4358, 4294901760
    %4360 = vmatpush1.msra.mxu0 %v4359
    %4361 = vmatprep.subr.mxu0 0.0
    %v4362 = vand.u32 %v4182, 4294901760
    %v4363 = vsub.f32 %v4182, %v4362
    %v4364 = vand.u32 %v4363, 4294901760
    %v4365 = vsub.f32 %v4363, %v4364
    %v4366 = vand.u32 %v4365, 4294901760
    %4367 = vmatpush1.msra.mxu0 %v4366
    %4368 = vmatprep.subr.mxu0 0.0
    %v4369 = vand.u32 %v4183, 4294901760
    %v4370 = vsub.f32 %v4183, %v4369
    %v4371 = vand.u32 %v4370, 4294901760
    %v4372 = vsub.f32 %v4370, %v4371
    %v4373 = vand.u32 %v4372, 4294901760
    %4374 = vmatpush1.msra.mxu0 %v4373
    %4375 = vmatprep.subr.mxu0 0.0
    %v4376 = vand.u32 %v4184, 4294901760
    %v4377 = vsub.f32 %v4184, %v4376
    %v4378 = vand.u32 %v4377, 4294901760
    %v4379 = vsub.f32 %v4377, %v4378
    %v4380 = vand.u32 %v4379, 4294901760
    %4381 = vmatpush1.msra.mxu0 %v4380
    %4382 = vmatprep.subr.mxu0 0.0
    %v4383 = vand.u32 %v4185, 4294901760
    %v4384 = vsub.f32 %v4185, %v4383
    %v4385 = vand.u32 %v4384, 4294901760
    %v4386 = vsub.f32 %v4384, %v4385
    %v4387 = vand.u32 %v4386, 4294901760
    %4388 = vmatpush1.msra.mxu0 %v4387
    %4389 = vmatprep.subr.mxu0 0.0
    %v4390 = vand.u32 %v4186, 4294901760
    %v4391 = vsub.f32 %v4186, %v4390
    %v4392 = vand.u32 %v4391, 4294901760
    %v4393 = vsub.f32 %v4391, %v4392
    %v4394 = vand.u32 %v4393, 4294901760
    %4395 = vmatpush1.msra.mxu0 %v4394
    %4396 = vmatprep.subr.mxu0 0.0
    %v4397 = vand.u32 %v4187, 4294901760
    %v4398 = vsub.f32 %v4187, %v4397
    %v4399 = vand.u32 %v4398, 4294901760
    %v4400 = vsub.f32 %v4398, %v4399
    %v4401 = vand.u32 %v4400, 4294901760
    %4402 = vmatpush1.msra.mxu0 %v4401
    %4403 = vmatprep.subr.mxu0 0.0
    %4404 = vmatpush1.msra.mxu0 0.0
    %4405 = vmatprep.subr.mxu0 0.0
    %4406 = vmatpush1.msra.mxu0 0.0
    %4407 = vmatprep.subr.mxu0 0.0
    %4408 = vmatpush1.msra.mxu0 0.0
    %4409 = vmatprep.subr.mxu0 0.0
    %4410 = vmatpush1.msra.mxu0 0.0
    %4411 = vmatprep.subr.mxu0 0.0
    %4412 = vmatpush1.msra.mxu0 0.0
    %4413 = vmatprep.subr.mxu0 0.0
    %4414 = vmatpush1.msra.mxu0 0.0
    %4415 = vmatprep.subr.mxu0 0.0
    %4416 = vmatpush1.msra.mxu0 0.0
    %4417 = vmatprep.subr.mxu0 0.0
    %4418 = vmatpush1.msra.mxu0 0.0
    %4419 = vmatprep.subr.mxu0 0.0
    %4420 = vmatpush1.msra.mxu0 0.0
    %4421 = vmatprep.subr.mxu0 0.0
    %4422 = vmatpush1.msra.mxu0 0.0
    %4423 = vmatprep.subr.mxu0 0.0
    %4424 = vmatpush1.msra.mxu0 0.0
    %4425 = vmatprep.subr.mxu0 0.0
    %4426 = vmatpush1.msra.mxu0 0.0
    %4427 = vmatprep.subr.mxu0 0.0
    %4428 = vmatpush1.msra.mxu0 0.0
    %4429 = vmatprep.subr.mxu0 0.0
    %4430 = vmatpush1.msra.mxu0 0.0
    %4431 = vmatprep.subr.mxu0 0.0
    %4432 = vmatpush1.msra.mxu0 0.0
    %4433 = vmatprep.subr.mxu0 0.0
    %4434 = vmatpush1.msra.mxu0 0.0
    %4435 = vmatprep.mubr.f32.mxu0 0.0
    %v4436 = vand.u32 %v4198, 4294901760
    %4437 = vmatmul.mubr.f32.gmra.mrb[0].mxu0 %v4436
    %v4438 = vpop.f32.mrb[0].mxu0
    %v4439 = vadd.f32 %v4288, %v4438
    %v4440 = vpop.f32.mrb[0].mxu0
    %4441 = vdwg.mxu0
    %4442 = vmatprep.subr.mxu0 0.0
    %v4443 = vand.u32 %v4172, 4294901760
    %v4444 = vsub.f32 %v4172, %v4443
    %4445 = vmatpush1.msra.mxu0 %v4444
    %4446 = vmatprep.subr.mxu0 0.0
    %v4447 = vand.u32 %v4173, 4294901760
    %v4448 = vsub.f32 %v4173, %v4447
    %4449 = vmatpush1.msra.mxu0 %v4448
    %4450 = vmatprep.subr.mxu0 0.0
    %v4451 = vand.u32 %v4174, 4294901760
    %v4452 = vsub.f32 %v4174, %v4451
    %4453 = vmatpush1.msra.mxu0 %v4452
    %4454 = vmatprep.subr.mxu0 0.0
    %v4455 = vand.u32 %v4175, 4294901760
    %v4456 = vsub.f32 %v4175, %v4455
    %4457 = vmatpush1.msra.mxu0 %v4456
    %4458 = vmatprep.subr.mxu0 0.0
    %v4459 = vand.u32 %v4176, 4294901760
    %v4460 = vsub.f32 %v4176, %v4459
    %4461 = vmatpush1.msra.mxu0 %v4460
    %4462 = vmatprep.subr.mxu0 0.0
    %v4463 = vand.u32 %v4177, 4294901760
    %v4464 = vsub.f32 %v4177, %v4463
    %4465 = vmatpush1.msra.mxu0 %v4464
    %4466 = vmatprep.subr.mxu0 0.0
    %v4467 = vand.u32 %v4178, 4294901760
    %v4468 = vsub.f32 %v4178, %v4467
    %4469 = vmatpush1.msra.mxu0 %v4468
    %4470 = vmatprep.subr.mxu0 0.0
    %v4471 = vand.u32 %v4179, 4294901760
    %v4472 = vsub.f32 %v4179, %v4471
    %4473 = vmatpush1.msra.mxu0 %v4472
    %4474 = vmatprep.subr.mxu0 0.0
    %v4475 = vand.u32 %v4180, 4294901760
    %v4476 = vsub.f32 %v4180, %v4475
    %4477 = vmatpush1.msra.mxu0 %v4476
    %4478 = vmatprep.subr.mxu0 0.0
    %v4479 = vand.u32 %v4181, 4294901760
    %v4480 = vsub.f32 %v4181, %v4479
    %4481 = vmatpush1.msra.mxu0 %v4480
    %4482 = vmatprep.subr.mxu0 0.0
    %v4483 = vand.u32 %v4182, 4294901760
    %v4484 = vsub.f32 %v4182, %v4483
    %4485 = vmatpush1.msra.mxu0 %v4484
    %4486 = vmatprep.subr.mxu0 0.0
    %v4487 = vand.u32 %v4183, 4294901760
    %v4488 = vsub.f32 %v4183, %v4487
    %4489 = vmatpush1.msra.mxu0 %v4488
    %4490 = vmatprep.subr.mxu0 0.0
    %v4491 = vand.u32 %v4184, 4294901760
    %v4492 = vsub.f32 %v4184, %v4491
    %4493 = vmatpush1.msra.mxu0 %v4492
    %4494 = vmatprep.subr.mxu0 0.0
    %v4495 = vand.u32 %v4185, 4294901760
    %v4496 = vsub.f32 %v4185, %v4495
    %4497 = vmatpush1.msra.mxu0 %v4496
    %4498 = vmatprep.subr.mxu0 0.0
    %v4499 = vand.u32 %v4186, 4294901760
    %v4500 = vsub.f32 %v4186, %v4499
    %4501 = vmatpush1.msra.mxu0 %v4500
    %4502 = vmatprep.subr.mxu0 0.0
    %v4503 = vand.u32 %v4187, 4294901760
    %v4504 = vsub.f32 %v4187, %v4503
    %4505 = vmatpush1.msra.mxu0 %v4504
    %4506 = vmatprep.subr.mxu0 0.0
    %4507 = vmatpush1.msra.mxu0 0.0
    %4508 = vmatprep.subr.mxu0 0.0
    %4509 = vmatpush1.msra.mxu0 0.0
    %4510 = vmatprep.subr.mxu0 0.0
    %4511 = vmatpush1.msra.mxu0 0.0
    %4512 = vmatprep.subr.mxu0 0.0
    %4513 = vmatpush1.msra.mxu0 0.0
    %4514 = vmatprep.subr.mxu0 0.0
    %4515 = vmatpush1.msra.mxu0 0.0
    %4516 = vmatprep.subr.mxu0 0.0
    %4517 = vmatpush1.msra.mxu0 0.0
    %4518 = vmatprep.subr.mxu0 0.0
    %4519 = vmatpush1.msra.mxu0 0.0
    %4520 = vmatprep.subr.mxu0 0.0
    %4521 = vmatpush1.msra.mxu0 0.0
    %4522 = vmatprep.subr.mxu0 0.0
    %4523 = vmatpush1.msra.mxu0 0.0
    %4524 = vmatprep.subr.mxu0 0.0
    %4525 = vmatpush1.msra.mxu0 0.0
    %4526 = vmatprep.subr.mxu0 0.0
    %4527 = vmatpush1.msra.mxu0 0.0
    %4528 = vmatprep.subr.mxu0 0.0
    %4529 = vmatpush1.msra.mxu0 0.0
    %4530 = vmatprep.subr.mxu0 0.0
    %4531 = vmatpush1.msra.mxu0 0.0
    %4532 = vmatprep.subr.mxu0 0.0
    %4533 = vmatpush1.msra.mxu0 0.0
    %4534 = vmatprep.subr.mxu0 0.0
    %4535 = vmatpush1.msra.mxu0 0.0
    %4536 = vmatprep.subr.mxu0 0.0
    %4537 = vmatpush1.msra.mxu0 0.0
    %4538 = vmatprep.mubr.f32.mxu0 0.0
    %v4539 = vand.u32 %v4198, 4294901760
    %v4540 = vsub.f32 %v4198, %v4539
    %4541 = vmatmul.mubr.f32.gmra.mrb[0].mxu0 %v4540
    %v4542 = vpop.f32.mrb[0].mxu0
    %v4543 = vadd.f32 %v4439, %v4542
    %v4544 = vpop.f32.mrb[0].mxu0
    %4545 = vdwg.mxu0
    %4546 = vmatprep.subr.mxu0 0.0
    %v4547 = vand.u32 %v4172, 4294901760
    %4548 = vmatpush1.msra.mxu0 %v4547
    %4549 = vmatprep.subr.mxu0 0.0
    %v4550 = vand.u32 %v4173, 4294901760
    %4551 = vmatpush1.msra.mxu0 %v4550
    %4552 = vmatprep.subr.mxu0 0.0
    %v4553 = vand.u32 %v4174, 4294901760
    %4554 = vmatpush1.msra.mxu0 %v4553
    %4555 = vmatprep.subr.mxu0 0.0
    %v4556 = vand.u32 %v4175, 4294901760
    %4557 = vmatpush1.msra.mxu0 %v4556
    %4558 = vmatprep.subr.mxu0 0.0
    %v4559 = vand.u32 %v4176, 4294901760
    %4560 = vmatpush1.msra.mxu0 %v4559
    %4561 = vmatprep.subr.mxu0 0.0
    %v4562 = vand.u32 %v4177, 4294901760
    %4563 = vmatpush1.msra.mxu0 %v4562
    %4564 = vmatprep.subr.mxu0 0.0
    %v4565 = vand.u32 %v4178, 4294901760
    %4566 = vmatpush1.msra.mxu0 %v4565
    %4567 = vmatprep.subr.mxu0 0.0
    %v4568 = vand.u32 %v4179, 4294901760
    %4569 = vmatpush1.msra.mxu0 %v4568
    %4570 = vmatprep.subr.mxu0 0.0
    %v4571 = vand.u32 %v4180, 4294901760
    %4572 = vmatpush1.msra.mxu0 %v4571
    %4573 = vmatprep.subr.mxu0 0.0
    %v4574 = vand.u32 %v4181, 4294901760
    %4575 = vmatpush1.msra.mxu0 %v4574
    %4576 = vmatprep.subr.mxu0 0.0
    %v4577 = vand.u32 %v4182, 4294901760
    %4578 = vmatpush1.msra.mxu0 %v4577
    %4579 = vmatprep.subr.mxu0 0.0
    %v4580 = vand.u32 %v4183, 4294901760
    %4581 = vmatpush1.msra.mxu0 %v4580
    %4582 = vmatprep.subr.mxu0 0.0
    %v4583 = vand.u32 %v4184, 4294901760
    %4584 = vmatpush1.msra.mxu0 %v4583
    %4585 = vmatprep.subr.mxu0 0.0
    %v4586 = vand.u32 %v4185, 4294901760
    %4587 = vmatpush1.msra.mxu0 %v4586
    %4588 = vmatprep.subr.mxu0 0.0
    %v4589 = vand.u32 %v4186, 4294901760
    %4590 = vmatpush1.msra.mxu0 %v4589
    %4591 = vmatprep.subr.mxu0 0.0
    %v4592 = vand.u32 %v4187, 4294901760
    %4593 = vmatpush1.msra.mxu0 %v4592
    %4594 = vmatprep.subr.mxu0 0.0
    %4595 = vmatpush1.msra.mxu0 0.0
    %4596 = vmatprep.subr.mxu0 0.0
    %4597 = vmatpush1.msra.mxu0 0.0
    %4598 = vmatprep.subr.mxu0 0.0
    %4599 = vmatpush1.msra.mxu0 0.0
    %4600 = vmatprep.subr.mxu0 0.0
    %4601 = vmatpush1.msra.mxu0 0.0
    %4602 = vmatprep.subr.mxu0 0.0
    %4603 = vmatpush1.msra.mxu0 0.0
    %4604 = vmatprep.subr.mxu0 0.0
    %4605 = vmatpush1.msra.mxu0 0.0
    %4606 = vmatprep.subr.mxu0 0.0
    %4607 = vmatpush1.msra.mxu0 0.0
    %4608 = vmatprep.subr.mxu0 0.0
    %4609 = vmatpush1.msra.mxu0 0.0
    %4610 = vmatprep.subr.mxu0 0.0
    %4611 = vmatpush1.msra.mxu0 0.0
    %4612 = vmatprep.subr.mxu0 0.0
    %4613 = vmatpush1.msra.mxu0 0.0
    %4614 = vmatprep.subr.mxu0 0.0
    %4615 = vmatpush1.msra.mxu0 0.0
    %4616 = vmatprep.subr.mxu0 0.0
    %4617 = vmatpush1.msra.mxu0 0.0
    %4618 = vmatprep.subr.mxu0 0.0
    %4619 = vmatpush1.msra.mxu0 0.0
    %4620 = vmatprep.subr.mxu0 0.0
    %4621 = vmatpush1.msra.mxu0 0.0
    %4622 = vmatprep.subr.mxu0 0.0
    %4623 = vmatpush1.msra.mxu0 0.0
    %4624 = vmatprep.subr.mxu0 0.0
    %4625 = vmatpush1.msra.mxu0 0.0
    %4626 = vmatprep.mubr.f32.mxu0 0.0
    %v4627 = vand.u32 %v4198, 4294901760
    %v4628 = vsub.f32 %v4198, %v4627
    %v4629 = vand.u32 %v4628, 4294901760
    %4630 = vmatmul.mubr.f32.gmra.mrb[0].mxu0 %v4629
    %v4631 = vpop.f32.mrb[0].mxu0
    %v4632 = vadd.f32 %v4543, %v4631
    %v4633 = vpop.f32.mrb[0].mxu0
    %4634 = vdwg.mxu0
    %4635 = vmatprep.subr.mxu0 0.0
    %v4636 = vand.u32 %v4172, 4294901760
    %v4637 = vsub.f32 %v4172, %v4636
    %v4638 = vand.u32 %v4637, 4294901760
    %4639 = vmatpush1.msra.mxu0 %v4638
    %4640 = vmatprep.subr.mxu0 0.0
    %v4641 = vand.u32 %v4173, 4294901760
    %v4642 = vsub.f32 %v4173, %v4641
    %v4643 = vand.u32 %v4642, 4294901760
    %4644 = vmatpush1.msra.mxu0 %v4643
    %4645 = vmatprep.subr.mxu0 0.0
    %v4646 = vand.u32 %v4174, 4294901760
    %v4647 = vsub.f32 %v4174, %v4646
    %v4648 = vand.u32 %v4647, 4294901760
    %4649 = vmatpush1.msra.mxu0 %v4648
    %4650 = vmatprep.subr.mxu0 0.0
    %v4651 = vand.u32 %v4175, 4294901760
    %v4652 = vsub.f32 %v4175, %v4651
    %v4653 = vand.u32 %v4652, 4294901760
    %4654 = vmatpush1.msra.mxu0 %v4653
    %4655 = vmatprep.subr.mxu0 0.0
    %v4656 = vand.u32 %v4176, 4294901760
    %v4657 = vsub.f32 %v4176, %v4656
    %v4658 = vand.u32 %v4657, 4294901760
    %4659 = vmatpush1.msra.mxu0 %v4658
    %4660 = vmatprep.subr.mxu0 0.0
    %v4661 = vand.u32 %v4177, 4294901760
    %v4662 = vsub.f32 %v4177, %v4661
    %v4663 = vand.u32 %v4662, 4294901760
    %4664 = vmatpush1.msra.mxu0 %v4663
    %4665 = vmatprep.subr.mxu0 0.0
    %v4666 = vand.u32 %v4178, 4294901760
    %v4667 = vsub.f32 %v4178, %v4666
    %v4668 = vand.u32 %v4667, 4294901760
    %4669 = vmatpush1.msra.mxu0 %v4668
    %4670 = vmatprep.subr.mxu0 0.0
    %v4671 = vand.u32 %v4179, 4294901760
    %v4672 = vsub.f32 %v4179, %v4671
    %v4673 = vand.u32 %v4672, 4294901760
    %4674 = vmatpush1.msra.mxu0 %v4673
    %4675 = vmatprep.subr.mxu0 0.0
    %v4676 = vand.u32 %v4180, 4294901760
    %v4677 = vsub.f32 %v4180, %v4676
    %v4678 = vand.u32 %v4677, 4294901760
    %4679 = vmatpush1.msra.mxu0 %v4678
    %4680 = vmatprep.subr.mxu0 0.0
    %v4681 = vand.u32 %v4181, 4294901760
    %v4682 = vsub.f32 %v4181, %v4681
    %v4683 = vand.u32 %v4682, 4294901760
    %4684 = vmatpush1.msra.mxu0 %v4683
    %4685 = vmatprep.subr.mxu0 0.0
    %v4686 = vand.u32 %v4182, 4294901760
    %v4687 = vsub.f32 %v4182, %v4686
    %v4688 = vand.u32 %v4687, 4294901760
    %4689 = vmatpush1.msra.mxu0 %v4688
    %4690 = vmatprep.subr.mxu0 0.0
    %v4691 = vand.u32 %v4183, 4294901760
    %v4692 = vsub.f32 %v4183, %v4691
    %v4693 = vand.u32 %v4692, 4294901760
    %4694 = vmatpush1.msra.mxu0 %v4693
    %4695 = vmatprep.subr.mxu0 0.0
    %v4696 = vand.u32 %v4184, 4294901760
    %v4697 = vsub.f32 %v4184, %v4696
    %v4698 = vand.u32 %v4697, 4294901760
    %4699 = vmatpush1.msra.mxu0 %v4698
    %4700 = vmatprep.subr.mxu0 0.0
    %v4701 = vand.u32 %v4185, 4294901760
    %v4702 = vsub.f32 %v4185, %v4701
    %v4703 = vand.u32 %v4702, 4294901760
    %4704 = vmatpush1.msra.mxu0 %v4703
    %4705 = vmatprep.subr.mxu0 0.0
    %v4706 = vand.u32 %v4186, 4294901760
    %v4707 = vsub.f32 %v4186, %v4706
    %v4708 = vand.u32 %v4707, 4294901760
    %4709 = vmatpush1.msra.mxu0 %v4708
    %4710 = vmatprep.subr.mxu0 0.0
    %v4711 = vand.u32 %v4187, 4294901760
    %v4712 = vsub.f32 %v4187, %v4711
    %v4713 = vand.u32 %v4712, 4294901760
    %4714 = vmatpush1.msra.mxu0 %v4713
    %4715 = vmatprep.subr.mxu0 0.0
    %4716 = vmatpush1.msra.mxu0 0.0
    %4717 = vmatprep.subr.mxu0 0.0
    %4718 = vmatpush1.msra.mxu0 0.0
    %4719 = vmatprep.subr.mxu0 0.0
    %4720 = vmatpush1.msra.mxu0 0.0
    %4721 = vmatprep.subr.mxu0 0.0
    %4722 = vmatpush1.msra.mxu0 0.0
    %4723 = vmatprep.subr.mxu0 0.0
    %4724 = vmatpush1.msra.mxu0 0.0
    %4725 = vmatprep.subr.mxu0 0.0
    %4726 = vmatpush1.msra.mxu0 0.0
    %4727 = vmatprep.subr.mxu0 0.0
    %4728 = vmatpush1.msra.mxu0 0.0
    %4729 = vmatprep.subr.mxu0 0.0
    %4730 = vmatpush1.msra.mxu0 0.0
    %4731 = vmatprep.subr.mxu0 0.0
    %4732 = vmatpush1.msra.mxu0 0.0
    %4733 = vmatprep.subr.mxu0 0.0
    %4734 = vmatpush1.msra.mxu0 0.0
    %4735 = vmatprep.subr.mxu0 0.0
    %4736 = vmatpush1.msra.mxu0 0.0
    %4737 = vmatprep.subr.mxu0 0.0
    %4738 = vmatpush1.msra.mxu0 0.0
    %4739 = vmatprep.subr.mxu0 0.0
    %4740 = vmatpush1.msra.mxu0 0.0
    %4741 = vmatprep.subr.mxu0 0.0
    %4742 = vmatpush1.msra.mxu0 0.0
    %4743 = vmatprep.subr.mxu0 0.0
    %4744 = vmatpush1.msra.mxu0 0.0
    %4745 = vmatprep.subr.mxu0 0.0
    %4746 = vmatpush1.msra.mxu0 0.0
    %4747 = vmatprep.mubr.f32.mxu0 0.0
    %v4748 = vand.u32 %v4198, 4294901760
    %4749 = vmatmul.mubr.f32.gmra.mrb[0].mxu0 %v4748
    %v4750 = vpop.f32.mrb[0].mxu0
    %v4751 = vadd.f32 %v4632, %v4750
    %v4752 = vpop.f32.mrb[0].mxu0
    %4753 = vdwg.mxu0
    %4754 = vmatprep.subr.mxu0 0.0
    %v4755 = vand.u32 %v4172, 4294901760
    %4756 = vmatpush1.msra.mxu0 %v4755
    %4757 = vmatprep.subr.mxu0 0.0
    %v4758 = vand.u32 %v4173, 4294901760
    %4759 = vmatpush1.msra.mxu0 %v4758
    %4760 = vmatprep.subr.mxu0 0.0
    %v4761 = vand.u32 %v4174, 4294901760
    %4762 = vmatpush1.msra.mxu0 %v4761
    %4763 = vmatprep.subr.mxu0 0.0
    %v4764 = vand.u32 %v4175, 4294901760
    %4765 = vmatpush1.msra.mxu0 %v4764
    %4766 = vmatprep.subr.mxu0 0.0
    %v4767 = vand.u32 %v4176, 4294901760
    %4768 = vmatpush1.msra.mxu0 %v4767
    %4769 = vmatprep.subr.mxu0 0.0
    %v4770 = vand.u32 %v4177, 4294901760
    %4771 = vmatpush1.msra.mxu0 %v4770
    %4772 = vmatprep.subr.mxu0 0.0
    %v4773 = vand.u32 %v4178, 4294901760
    %4774 = vmatpush1.msra.mxu0 %v4773
    %4775 = vmatprep.subr.mxu0 0.0
    %v4776 = vand.u32 %v4179, 4294901760
    %4777 = vmatpush1.msra.mxu0 %v4776
    %4778 = vmatprep.subr.mxu0 0.0
    %v4779 = vand.u32 %v4180, 4294901760
    %4780 = vmatpush1.msra.mxu0 %v4779
    %4781 = vmatprep.subr.mxu0 0.0
    %v4782 = vand.u32 %v4181, 4294901760
    %4783 = vmatpush1.msra.mxu0 %v4782
    %4784 = vmatprep.subr.mxu0 0.0
    %v4785 = vand.u32 %v4182, 4294901760
    %4786 = vmatpush1.msra.mxu0 %v4785
    %4787 = vmatprep.subr.mxu0 0.0
    %v4788 = vand.u32 %v4183, 4294901760
    %4789 = vmatpush1.msra.mxu0 %v4788
    %4790 = vmatprep.subr.mxu0 0.0
    %v4791 = vand.u32 %v4184, 4294901760
    %4792 = vmatpush1.msra.mxu0 %v4791
    %4793 = vmatprep.subr.mxu0 0.0
    %v4794 = vand.u32 %v4185, 4294901760
    %4795 = vmatpush1.msra.mxu0 %v4794
    %4796 = vmatprep.subr.mxu0 0.0
    %v4797 = vand.u32 %v4186, 4294901760
    %4798 = vmatpush1.msra.mxu0 %v4797
    %4799 = vmatprep.subr.mxu0 0.0
    %v4800 = vand.u32 %v4187, 4294901760
    %4801 = vmatpush1.msra.mxu0 %v4800
    %4802 = vmatprep.subr.mxu0 0.0
    %4803 = vmatpush1.msra.mxu0 0.0
    %4804 = vmatprep.subr.mxu0 0.0
    %4805 = vmatpush1.msra.mxu0 0.0
    %4806 = vmatprep.subr.mxu0 0.0
    %4807 = vmatpush1.msra.mxu0 0.0
    %4808 = vmatprep.subr.mxu0 0.0
    %4809 = vmatpush1.msra.mxu0 0.0
    %4810 = vmatprep.subr.mxu0 0.0
    %4811 = vmatpush1.msra.mxu0 0.0
    %4812 = vmatprep.subr.mxu0 0.0
    %4813 = vmatpush1.msra.mxu0 0.0
    %4814 = vmatprep.subr.mxu0 0.0
    %4815 = vmatpush1.msra.mxu0 0.0
    %4816 = vmatprep.subr.mxu0 0.0
    %4817 = vmatpush1.msra.mxu0 0.0
    %4818 = vmatprep.subr.mxu0 0.0
    %4819 = vmatpush1.msra.mxu0 0.0
    %4820 = vmatprep.subr.mxu0 0.0
    %4821 = vmatpush1.msra.mxu0 0.0
    %4822 = vmatprep.subr.mxu0 0.0
    %4823 = vmatpush1.msra.mxu0 0.0
    %4824 = vmatprep.subr.mxu0 0.0
    %4825 = vmatpush1.msra.mxu0 0.0
    %4826 = vmatprep.subr.mxu0 0.0
    %4827 = vmatpush1.msra.mxu0 0.0
    %4828 = vmatprep.subr.mxu0 0.0
    %4829 = vmatpush1.msra.mxu0 0.0
    %4830 = vmatprep.subr.mxu0 0.0
    %4831 = vmatpush1.msra.mxu0 0.0
    %4832 = vmatprep.subr.mxu0 0.0
    %4833 = vmatpush1.msra.mxu0 0.0
    %4834 = vmatprep.mubr.f32.mxu0 0.0
    %v4835 = vand.u32 %v4198, 4294901760
    %4836 = vmatmul.mubr.f32.gmra.mrb[0].mxu0 %v4835
    %v4837 = vpop.f32.mrb[0].mxu0
    %v4838 = vadd.f32 %v4751, %v4837
    %v4839 = vpop.f32.mrb[0].mxu0
    %4840 = vdwg.mxu0
    %v4841 = vmax.f32 %v4838, 0.0
    %v4842 = vld [vmem:[%s7] sm:$0xff]
    %v4843 = vld [vmem:[%s7 + $0x8] sm:$0xff]
    %v4844 = vld [vmem:[%s7 + $0x10] sm:$0xff]
    %v4845 = vld [vmem:[%s7 + $0x18] sm:$0xff]
    %v4846 = vld [vmem:[%s7 + $0x20] sm:$0xff]
    %v4847 = vld [vmem:[%s7 + $0x28] sm:$0xff]
    %v4848 = vld [vmem:[%s7 + $0x30] sm:$0xff]
    %v4849 = vld [vmem:[%s7 + $0x38] sm:$0xff]
    %v4850 = vld [vmem:[%s8] sm:$0x1]
    %v4852 = vlaneseq
    %v4853 = vshrl.u32 %v4852, 7
    %v4854 = vsub.s32 0, %v4853
    %v4855 = vrot.slane %v4850, %v4854
    %v4858 = vsel %vm85, %v4841, 0
    %4860 = vmatprep.subr.mxu0 0.0
    %v4861 = vand.u32 %v4842, 4294901760
    %4862 = vmatpush1.msra.mxu0 %v4861
    %4863 = vmatprep.subr.mxu0 0.0
    %v4864 = vand.u32 %v4843, 4294901760
    %4865 = vmatpush1.msra.mxu0 %v4864
    %4866 = vmatprep.subr.mxu0 0.0
    %v4867 = vand.u32 %v4844, 4294901760
    %4868 = vmatpush1.msra.mxu0 %v4867
    %4869 = vmatprep.subr.mxu0 0.0
    %v4870 = vand.u32 %v4845, 4294901760
    %4871 = vmatpush1.msra.mxu0 %v4870
    %4872 = vmatprep.subr.mxu0 0.0
    %v4873 = vand.u32 %v4846, 4294901760
    %4874 = vmatpush1.msra.mxu0 %v4873
    %4875 = vmatprep.subr.mxu0 0.0
    %v4876 = vand.u32 %v4847, 4294901760
    %4877 = vmatpush1.msra.mxu0 %v4876
    %4878 = vmatprep.subr.mxu0 0.0
    %v4879 = vand.u32 %v4848, 4294901760
    %4880 = vmatpush1.msra.mxu0 %v4879
    %4881 = vmatprep.subr.mxu0 0.0
    %v4882 = vand.u32 %v4849, 4294901760
    %4883 = vmatpush1.msra.mxu0 %v4882
    %4884 = vmatprep.subr.mxu0 0.0
    %4885 = vmatpush1.msra.mxu0 0.0
    %4886 = vmatprep.subr.mxu0 0.0
    %4887 = vmatpush1.msra.mxu0 0.0
    %4888 = vmatprep.subr.mxu0 0.0
    %4889 = vmatpush1.msra.mxu0 0.0
    %4890 = vmatprep.subr.mxu0 0.0
    %4891 = vmatpush1.msra.mxu0 0.0
    %4892 = vmatprep.subr.mxu0 0.0
    %4893 = vmatpush1.msra.mxu0 0.0
    %4894 = vmatprep.subr.mxu0 0.0
    %4895 = vmatpush1.msra.mxu0 0.0
    %4896 = vmatprep.subr.mxu0 0.0
    %4897 = vmatpush1.msra.mxu0 0.0
    %4898 = vmatprep.subr.mxu0 0.0
    %4899 = vmatpush1.msra.mxu0 0.0
    %4900 = vmatprep.subr.mxu0 0.0
    %4901 = vmatpush1.msra.mxu0 0.0
    %4902 = vmatprep.subr.mxu0 0.0
    %4903 = vmatpush1.msra.mxu0 0.0
    %4904 = vmatprep.subr.mxu0 0.0
    %4905 = vmatpush1.msra.mxu0 0.0
    %4906 = vmatprep.subr.mxu0 0.0
    %4907 = vmatpush1.msra.mxu0 0.0
    %4908 = vmatprep.subr.mxu0 0.0
    %4909 = vmatpush1.msra.mxu0 0.0
    %4910 = vmatprep.subr.mxu0 0.0
    %4911 = vmatpush1.msra.mxu0 0.0
    %4912 = vmatprep.subr.mxu0 0.0
    %4913 = vmatpush1.msra.mxu0 0.0
    %4914 = vmatprep.subr.mxu0 0.0
    %4915 = vmatpush1.msra.mxu0 0.0
    %4916 = vmatprep.subr.mxu0 0.0
    %4917 = vmatpush1.msra.mxu0 0.0
    %4918 = vmatprep.subr.mxu0 0.0
    %4919 = vmatpush1.msra.mxu0 0.0
    %4920 = vmatprep.subr.mxu0 0.0
    %4921 = vmatpush1.msra.mxu0 0.0
    %4922 = vmatprep.subr.mxu0 0.0
    %4923 = vmatpush1.msra.mxu0 0.0
    %4924 = vmatprep.subr.mxu0 0.0
    %4925 = vmatpush1.msra.mxu0 0.0
    %4926 = vmatprep.subr.mxu0 0.0
    %4927 = vmatpush1.msra.mxu0 0.0
    %4928 = vmatprep.subr.mxu0 0.0
    %4929 = vmatpush1.msra.mxu0 0.0
    %4930 = vmatprep.subr.mxu0 0.0
    %4931 = vmatpush1.msra.mxu0 0.0
    %4932 = vmatprep.mubr.f32.mxu0 0.0
    %v4933 = vand.u32 %v4858, 4294901760
    %v4934 = vsub.f32 %v4858, %v4933
    %v4935 = vand.u32 %v4934, 4294901760
    %v4936 = vsub.f32 %v4934, %v4935
    %v4937 = vand.u32 %v4936, 4294901760
    %4938 = vmatmul.mubr.f32.gmra.mrb[0].mxu0 %v4937
    %v4939 = vpop.f32.mrb[0].mxu0
    %v4940 = vadd.f32 %v4855, %v4939
    %v4941 = vpop.f32.mrb[0].mxu0
    %4942 = vdwg.mxu0
    %4943 = vmatprep.subr.mxu0 0.0
    %v4944 = vand.u32 %v4842, 4294901760
    %v4945 = vsub.f32 %v4842, %v4944
    %v4946 = vand.u32 %v4945, 4294901760
    %v4947 = vsub.f32 %v4945, %v4946
    %v4948 = vand.u32 %v4947, 4294901760
    %4949 = vmatpush1.msra.mxu0 %v4948
    %4950 = vmatprep.subr.mxu0 0.0
    %v4951 = vand.u32 %v4843, 4294901760
    %v4952 = vsub.f32 %v4843, %v4951
    %v4953 = vand.u32 %v4952, 4294901760
    %v4954 = vsub.f32 %v4952, %v4953
    %v4955 = vand.u32 %v4954, 4294901760
    %4956 = vmatpush1.msra.mxu0 %v4955
    %4957 = vmatprep.subr.mxu0 0.0
    %v4958 = vand.u32 %v4844, 4294901760
    %v4959 = vsub.f32 %v4844, %v4958
    %v4960 = vand.u32 %v4959, 4294901760
    %v4961 = vsub.f32 %v4959, %v4960
    %v4962 = vand.u32 %v4961, 4294901760
    %4963 = vmatpush1.msra.mxu0 %v4962
    %4964 = vmatprep.subr.mxu0 0.0
    %v4965 = vand.u32 %v4845, 4294901760
    %v4966 = vsub.f32 %v4845, %v4965
    %v4967 = vand.u32 %v4966, 4294901760
    %v4968 = vsub.f32 %v4966, %v4967
    %v4969 = vand.u32 %v4968, 4294901760
    %4970 = vmatpush1.msra.mxu0 %v4969
    %4971 = vmatprep.subr.mxu0 0.0
    %v4972 = vand.u32 %v4846, 4294901760
    %v4973 = vsub.f32 %v4846, %v4972
    %v4974 = vand.u32 %v4973, 4294901760
    %v4975 = vsub.f32 %v4973, %v4974
    %v4976 = vand.u32 %v4975, 4294901760
    %4977 = vmatpush1.msra.mxu0 %v4976
    %4978 = vmatprep.subr.mxu0 0.0
    %v4979 = vand.u32 %v4847, 4294901760
    %v4980 = vsub.f32 %v4847, %v4979
    %v4981 = vand.u32 %v4980, 4294901760
    %v4982 = vsub.f32 %v4980, %v4981
    %v4983 = vand.u32 %v4982, 4294901760
    %4984 = vmatpush1.msra.mxu0 %v4983
    %4985 = vmatprep.subr.mxu0 0.0
    %v4986 = vand.u32 %v4848, 4294901760
    %v4987 = vsub.f32 %v4848, %v4986
    %v4988 = vand.u32 %v4987, 4294901760
    %v4989 = vsub.f32 %v4987, %v4988
    %v4990 = vand.u32 %v4989, 4294901760
    %4991 = vmatpush1.msra.mxu0 %v4990
    %4992 = vmatprep.subr.mxu0 0.0
    %v4993 = vand.u32 %v4849, 4294901760
    %v4994 = vsub.f32 %v4849, %v4993
    %v4995 = vand.u32 %v4994, 4294901760
    %v4996 = vsub.f32 %v4994, %v4995
    %v4997 = vand.u32 %v4996, 4294901760
    %4998 = vmatpush1.msra.mxu0 %v4997
    %4999 = vmatprep.subr.mxu0 0.0
    %5000 = vmatpush1.msra.mxu0 0.0
    %5001 = vmatprep.subr.mxu0 0.0
    %5002 = vmatpush1.msra.mxu0 0.0
    %5003 = vmatprep.subr.mxu0 0.0
    %5004 = vmatpush1.msra.mxu0 0.0
    %5005 = vmatprep.subr.mxu0 0.0
    %5006 = vmatpush1.msra.mxu0 0.0
    %5007 = vmatprep.subr.mxu0 0.0
    %5008 = vmatpush1.msra.mxu0 0.0
    %5009 = vmatprep.subr.mxu0 0.0
    %5010 = vmatpush1.msra.mxu0 0.0
    %5011 = vmatprep.subr.mxu0 0.0
    %5012 = vmatpush1.msra.mxu0 0.0
    %5013 = vmatprep.subr.mxu0 0.0
    %5014 = vmatpush1.msra.mxu0 0.0
    %5015 = vmatprep.subr.mxu0 0.0
    %5016 = vmatpush1.msra.mxu0 0.0
    %5017 = vmatprep.subr.mxu0 0.0
    %5018 = vmatpush1.msra.mxu0 0.0
    %5019 = vmatprep.subr.mxu0 0.0
    %5020 = vmatpush1.msra.mxu0 0.0
    %5021 = vmatprep.subr.mxu0 0.0
    %5022 = vmatpush1.msra.mxu0 0.0
    %5023 = vmatprep.subr.mxu0 0.0
    %5024 = vmatpush1.msra.mxu0 0.0
    %5025 = vmatprep.subr.mxu0 0.0
    %5026 = vmatpush1.msra.mxu0 0.0
    %5027 = vmatprep.subr.mxu0 0.0
    %5028 = vmatpush1.msra.mxu0 0.0
    %5029 = vmatprep.subr.mxu0 0.0
    %5030 = vmatpush1.msra.mxu0 0.0
    %5031 = vmatprep.subr.mxu0 0.0
    %5032 = vmatpush1.msra.mxu0 0.0
    %5033 = vmatprep.subr.mxu0 0.0
    %5034 = vmatpush1.msra.mxu0 0.0
    %5035 = vmatprep.subr.mxu0 0.0
    %5036 = vmatpush1.msra.mxu0 0.0
    %5037 = vmatprep.subr.mxu0 0.0
    %5038 = vmatpush1.msra.mxu0 0.0
    %5039 = vmatprep.subr.mxu0 0.0
    %5040 = vmatpush1.msra.mxu0 0.0
    %5041 = vmatprep.subr.mxu0 0.0
    %5042 = vmatpush1.msra.mxu0 0.0
    %5043 = vmatprep.subr.mxu0 0.0
    %5044 = vmatpush1.msra.mxu0 0.0
    %5045 = vmatprep.subr.mxu0 0.0
    %5046 = vmatpush1.msra.mxu0 0.0
    %5047 = vmatprep.mubr.f32.mxu0 0.0
    %v5048 = vand.u32 %v4858, 4294901760
    %5049 = vmatmul.mubr.f32.gmra.mrb[0].mxu0 %v5048
    %v5050 = vpop.f32.mrb[0].mxu0
    %v5051 = vadd.f32 %v4940, %v5050
    %v5052 = vpop.f32.mrb[0].mxu0
    %5053 = vdwg.mxu0
    %5054 = vmatprep.subr.mxu0 0.0
    %v5055 = vand.u32 %v4842, 4294901760
    %v5056 = vsub.f32 %v4842, %v5055
    %5057 = vmatpush1.msra.mxu0 %v5056
    %5058 = vmatprep.subr.mxu0 0.0
    %v5059 = vand.u32 %v4843, 4294901760
    %v5060 = vsub.f32 %v4843, %v5059
    %5061 = vmatpush1.msra.mxu0 %v5060
    %5062 = vmatprep.subr.mxu0 0.0
    %v5063 = vand.u32 %v4844, 4294901760
    %v5064 = vsub.f32 %v4844, %v5063
    %5065 = vmatpush1.msra.mxu0 %v5064
    %5066 = vmatprep.subr.mxu0 0.0
    %v5067 = vand.u32 %v4845, 4294901760
    %v5068 = vsub.f32 %v4845, %v5067
    %5069 = vmatpush1.msra.mxu0 %v5068
    %5070 = vmatprep.subr.mxu0 0.0
    %v5071 = vand.u32 %v4846, 4294901760
    %v5072 = vsub.f32 %v4846, %v5071
    %5073 = vmatpush1.msra.mxu0 %v5072
    %5074 = vmatprep.subr.mxu0 0.0
    %v5075 = vand.u32 %v4847, 4294901760
    %v5076 = vsub.f32 %v4847, %v5075
    %5077 = vmatpush1.msra.mxu0 %v5076
    %5078 = vmatprep.subr.mxu0 0.0
    %v5079 = vand.u32 %v4848, 4294901760
    %v5080 = vsub.f32 %v4848, %v5079
    %5081 = vmatpush1.msra.mxu0 %v5080
    %5082 = vmatprep.subr.mxu0 0.0
    %v5083 = vand.u32 %v4849, 4294901760
    %v5084 = vsub.f32 %v4849, %v5083
    %5085 = vmatpush1.msra.mxu0 %v5084
    %5086 = vmatprep.subr.mxu0 0.0
    %5087 = vmatpush1.msra.mxu0 0.0
    %5088 = vmatprep.subr.mxu0 0.0
    %5089 = vmatpush1.msra.mxu0 0.0
    %5090 = vmatprep.subr.mxu0 0.0
    %5091 = vmatpush1.msra.mxu0 0.0
    %5092 = vmatprep.subr.mxu0 0.0
    %5093 = vmatpush1.msra.mxu0 0.0
    %5094 = vmatprep.subr.mxu0 0.0
    %5095 = vmatpush1.msra.mxu0 0.0
    %5096 = vmatprep.subr.mxu0 0.0
    %5097 = vmatpush1.msra.mxu0 0.0
    %5098 = vmatprep.subr.mxu0 0.0
    %5099 = vmatpush1.msra.mxu0 0.0
    %5100 = vmatprep.subr.mxu0 0.0
    %5101 = vmatpush1.msra.mxu0 0.0
    %5102 = vmatprep.subr.mxu0 0.0
    %5103 = vmatpush1.msra.mxu0 0.0
    %5104 = vmatprep.subr.mxu0 0.0
    %5105 = vmatpush1.msra.mxu0 0.0
    %5106 = vmatprep.subr.mxu0 0.0
    %5107 = vmatpush1.msra.mxu0 0.0
    %5108 = vmatprep.subr.mxu0 0.0
    %5109 = vmatpush1.msra.mxu0 0.0
    %5110 = vmatprep.subr.mxu0 0.0
    %5111 = vmatpush1.msra.mxu0 0.0
    %5112 = vmatprep.subr.mxu0 0.0
    %5113 = vmatpush1.msra.mxu0 0.0
    %5114 = vmatprep.subr.mxu0 0.0
    %5115 = vmatpush1.msra.mxu0 0.0
    %5116 = vmatprep.subr.mxu0 0.0
    %5117 = vmatpush1.msra.mxu0 0.0
    %5118 = vmatprep.subr.mxu0 0.0
    %5119 = vmatpush1.msra.mxu0 0.0
    %5120 = vmatprep.subr.mxu0 0.0
    %5121 = vmatpush1.msra.mxu0 0.0
    %5122 = vmatprep.subr.mxu0 0.0
    %5123 = vmatpush1.msra.mxu0 0.0
    %5124 = vmatprep.subr.mxu0 0.0
    %5125 = vmatpush1.msra.mxu0 0.0
    %5126 = vmatprep.subr.mxu0 0.0
    %5127 = vmatpush1.msra.mxu0 0.0
    %5128 = vmatprep.subr.mxu0 0.0
    %5129 = vmatpush1.msra.mxu0 0.0
    %5130 = vmatprep.subr.mxu0 0.0
    %5131 = vmatpush1.msra.mxu0 0.0
    %5132 = vmatprep.subr.mxu0 0.0
    %5133 = vmatpush1.msra.mxu0 0.0
    %5134 = vmatprep.mubr.f32.mxu0 0.0
    %v5135 = vand.u32 %v4858, 4294901760
    %v5136 = vsub.f32 %v4858, %v5135
    %5137 = vmatmul.mubr.f32.gmra.mrb[0].mxu0 %v5136
    %v5138 = vpop.f32.mrb[0].mxu0
    %v5139 = vadd.f32 %v5051, %v5138
    %v5140 = vpop.f32.mrb[0].mxu0
    %5141 = vdwg.mxu0
    %5142 = vmatprep.subr.mxu0 0.0
    %v5143 = vand.u32 %v4842, 4294901760
    %5144 = vmatpush1.msra.mxu0 %v5143
    %5145 = vmatprep.subr.mxu0 0.0
    %v5146 = vand.u32 %v4843, 4294901760
    %5147 = vmatpush1.msra.mxu0 %v5146
    %5148 = vmatprep.subr.mxu0 0.0
    %v5149 = vand.u32 %v4844, 4294901760
    %5150 = vmatpush1.msra.mxu0 %v5149
    %5151 = vmatprep.subr.mxu0 0.0
    %v5152 = vand.u32 %v4845, 4294901760
    %5153 = vmatpush1.msra.mxu0 %v5152
    %5154 = vmatprep.subr.mxu0 0.0
    %v5155 = vand.u32 %v4846, 4294901760
    %5156 = vmatpush1.msra.mxu0 %v5155
    %5157 = vmatprep.subr.mxu0 0.0
    %v5158 = vand.u32 %v4847, 4294901760
    %5159 = vmatpush1.msra.mxu0 %v5158
    %5160 = vmatprep.subr.mxu0 0.0
    %v5161 = vand.u32 %v4848, 4294901760
    %5162 = vmatpush1.msra.mxu0 %v5161
    %5163 = vmatprep.subr.mxu0 0.0
    %v5164 = vand.u32 %v4849, 4294901760
    %5165 = vmatpush1.msra.mxu0 %v5164
    %5166 = vmatprep.subr.mxu0 0.0
    %5167 = vmatpush1.msra.mxu0 0.0
    %5168 = vmatprep.subr.mxu0 0.0
    %5169 = vmatpush1.msra.mxu0 0.0
    %5170 = vmatprep.subr.mxu0 0.0
    %5171 = vmatpush1.msra.mxu0 0.0
    %5172 = vmatprep.subr.mxu0 0.0
    %5173 = vmatpush1.msra.mxu0 0.0
    %5174 = vmatprep.subr.mxu0 0.0
    %5175 = vmatpush1.msra.mxu0 0.0
    %5176 = vmatprep.subr.mxu0 0.0
    %5177 = vmatpush1.msra.mxu0 0.0
    %5178 = vmatprep.subr.mxu0 0.0
    %5179 = vmatpush1.msra.mxu0 0.0
    %5180 = vmatprep.subr.mxu0 0.0
    %5181 = vmatpush1.msra.mxu0 0.0
    %5182 = vmatprep.subr.mxu0 0.0
    %5183 = vmatpush1.msra.mxu0 0.0
    %5184 = vmatprep.subr.mxu0 0.0
    %5185 = vmatpush1.msra.mxu0 0.0
    %5186 = vmatprep.subr.mxu0 0.0
    %5187 = vmatpush1.msra.mxu0 0.0
    %5188 = vmatprep.subr.mxu0 0.0
    %5189 = vmatpush1.msra.mxu0 0.0
    %5190 = vmatprep.subr.mxu0 0.0
    %5191 = vmatpush1.msra.mxu0 0.0
    %5192 = vmatprep.subr.mxu0 0.0
    %5193 = vmatpush1.msra.mxu0 0.0
    %5194 = vmatprep.subr.mxu0 0.0
    %5195 = vmatpush1.msra.mxu0 0.0
    %5196 = vmatprep.subr.mxu0 0.0
    %5197 = vmatpush1.msra.mxu0 0.0
    %5198 = vmatprep.subr.mxu0 0.0
    %5199 = vmatpush1.msra.mxu0 0.0
    %5200 = vmatprep.subr.mxu0 0.0
    %5201 = vmatpush1.msra.mxu0 0.0
    %5202 = vmatprep.subr.mxu0 0.0
    %5203 = vmatpush1.msra.mxu0 0.0
    %5204 = vmatprep.subr.mxu0 0.0
    %5205 = vmatpush1.msra.mxu0 0.0
    %5206 = vmatprep.subr.mxu0 0.0
    %5207 = vmatpush1.msra.mxu0 0.0
    %5208 = vmatprep.subr.mxu0 0.0
    %5209 = vmatpush1.msra.mxu0 0.0
    %5210 = vmatprep.subr.mxu0 0.0
    %5211 = vmatpush1.msra.mxu0 0.0
    %5212 = vmatprep.subr.mxu0 0.0
    %5213 = vmatpush1.msra.mxu0 0.0
    %5214 = vmatprep.mubr.f32.mxu0 0.0
    %v5215 = vand.u32 %v4858, 4294901760
    %v5216 = vsub.f32 %v4858, %v5215
    %v5217 = vand.u32 %v5216, 4294901760
    %5218 = vmatmul.mubr.f32.gmra.mrb[0].mxu0 %v5217
    %v5219 = vpop.f32.mrb[0].mxu0
    %v5220 = vadd.f32 %v5139, %v5219
    %v5221 = vpop.f32.mrb[0].mxu0
    %5222 = vdwg.mxu0
    %5223 = vmatprep.subr.mxu0 0.0
    %v5224 = vand.u32 %v4842, 4294901760
    %v5225 = vsub.f32 %v4842, %v5224
    %v5226 = vand.u32 %v5225, 4294901760
    %5227 = vmatpush1.msra.mxu0 %v5226
    %5228 = vmatprep.subr.mxu0 0.0
    %v5229 = vand.u32 %v4843, 4294901760
    %v5230 = vsub.f32 %v4843, %v5229
    %v5231 = vand.u32 %v5230, 4294901760
    %5232 = vmatpush1.msra.mxu0 %v5231
    %5233 = vmatprep.subr.mxu0 0.0
    %v5234 = vand.u32 %v4844, 4294901760
    %v5235 = vsub.f32 %v4844, %v5234
    %v5236 = vand.u32 %v5235, 4294901760
    %5237 = vmatpush1.msra.mxu0 %v5236
    %5238 = vmatprep.subr.mxu0 0.0
    %v5239 = vand.u32 %v4845, 4294901760
    %v5240 = vsub.f32 %v4845, %v5239
    %v5241 = vand.u32 %v5240, 4294901760
    %5242 = vmatpush1.msra.mxu0 %v5241
    %5243 = vmatprep.subr.mxu0 0.0
    %v5244 = vand.u32 %v4846, 4294901760
    %v5245 = vsub.f32 %v4846, %v5244
    %v5246 = vand.u32 %v5245, 4294901760
    %5247 = vmatpush1.msra.mxu0 %v5246
    %5248 = vmatprep.subr.mxu0 0.0
    %v5249 = vand.u32 %v4847, 4294901760
    %v5250 = vsub.f32 %v4847, %v5249
    %v5251 = vand.u32 %v5250, 4294901760
    %5252 = vmatpush1.msra.mxu0 %v5251
    %5253 = vmatprep.subr.mxu0 0.0
    %v5254 = vand.u32 %v4848, 4294901760
    %v5255 = vsub.f32 %v4848, %v5254
    %v5256 = vand.u32 %v5255, 4294901760
    %5257 = vmatpush1.msra.mxu0 %v5256
    %5258 = vmatprep.subr.mxu0 0.0
    %v5259 = vand.u32 %v4849, 4294901760
    %v5260 = vsub.f32 %v4849, %v5259
    %v5261 = vand.u32 %v5260, 4294901760
    %5262 = vmatpush1.msra.mxu0 %v5261
    %5263 = vmatprep.subr.mxu0 0.0
    %5264 = vmatpush1.msra.mxu0 0.0
    %5265 = vmatprep.subr.mxu0 0.0
    %5266 = vmatpush1.msra.mxu0 0.0
    %5267 = vmatprep.subr.mxu0 0.0
    %5268 = vmatpush1.msra.mxu0 0.0
    %5269 = vmatprep.subr.mxu0 0.0
    %5270 = vmatpush1.msra.mxu0 0.0
    %5271 = vmatprep.subr.mxu0 0.0
    %5272 = vmatpush1.msra.mxu0 0.0
    %5273 = vmatprep.subr.mxu0 0.0
    %5274 = vmatpush1.msra.mxu0 0.0
    %5275 = vmatprep.subr.mxu0 0.0
    %5276 = vmatpush1.msra.mxu0 0.0
    %5277 = vmatprep.subr.mxu0 0.0
    %5278 = vmatpush1.msra.mxu0 0.0
    %5279 = vmatprep.subr.mxu0 0.0
    %5280 = vmatpush1.msra.mxu0 0.0
    %5281 = vmatprep.subr.mxu0 0.0
    %5282 = vmatpush1.msra.mxu0 0.0
    %5283 = vmatprep.subr.mxu0 0.0
    %5284 = vmatpush1.msra.mxu0 0.0
    %5285 = vmatprep.subr.mxu0 0.0
    %5286 = vmatpush1.msra.mxu0 0.0
    %5287 = vmatprep.subr.mxu0 0.0
    %5288 = vmatpush1.msra.mxu0 0.0
    %5289 = vmatprep.subr.mxu0 0.0
    %5290 = vmatpush1.msra.mxu0 0.0
    %5291 = vmatprep.subr.mxu0 0.0
    %5292 = vmatpush1.msra.mxu0 0.0
    %5293 = vmatprep.subr.mxu0 0.0
    %5294 = vmatpush1.msra.mxu0 0.0
    %5295 = vmatprep.subr.mxu0 0.0
    %5296 = vmatpush1.msra.mxu0 0.0
    %5297 = vmatprep.subr.mxu0 0.0
    %5298 = vmatpush1.msra.mxu0 0.0
    %5299 = vmatprep.subr.mxu0 0.0
    %5300 = vmatpush1.msra.mxu0 0.0
    %5301 = vmatprep.subr.mxu0 0.0
    %5302 = vmatpush1.msra.mxu0 0.0
    %5303 = vmatprep.subr.mxu0 0.0
    %5304 = vmatpush1.msra.mxu0 0.0
    %5305 = vmatprep.subr.mxu0 0.0
    %5306 = vmatpush1.msra.mxu0 0.0
    %5307 = vmatprep.subr.mxu0 0.0
    %5308 = vmatpush1.msra.mxu0 0.0
    %5309 = vmatprep.subr.mxu0 0.0
    %5310 = vmatpush1.msra.mxu0 0.0
    %5311 = vmatprep.mubr.f32.mxu0 0.0
    %v5312 = vand.u32 %v4858, 4294901760
    %5313 = vmatmul.mubr.f32.gmra.mrb[0].mxu0 %v5312
    %v5314 = vpop.f32.mrb[0].mxu0
    %v5315 = vadd.f32 %v5220, %v5314
    %v5316 = vpop.f32.mrb[0].mxu0
    %5317 = vdwg.mxu0
    %5318 = vmatprep.subr.mxu0 0.0
    %v5319 = vand.u32 %v4842, 4294901760
    %5320 = vmatpush1.msra.mxu0 %v5319
    %5321 = vmatprep.subr.mxu0 0.0
    %v5322 = vand.u32 %v4843, 4294901760
    %5323 = vmatpush1.msra.mxu0 %v5322
    %5324 = vmatprep.subr.mxu0 0.0
    %v5325 = vand.u32 %v4844, 4294901760
    %5326 = vmatpush1.msra.mxu0 %v5325
    %5327 = vmatprep.subr.mxu0 0.0
    %v5328 = vand.u32 %v4845, 4294901760
    %5329 = vmatpush1.msra.mxu0 %v5328
    %5330 = vmatprep.subr.mxu0 0.0
    %v5331 = vand.u32 %v4846, 4294901760
    %5332 = vmatpush1.msra.mxu0 %v5331
    %5333 = vmatprep.subr.mxu0 0.0
    %v5334 = vand.u32 %v4847, 4294901760
    %5335 = vmatpush1.msra.mxu0 %v5334
    %5336 = vmatprep.subr.mxu0 0.0
    %v5337 = vand.u32 %v4848, 4294901760
    %5338 = vmatpush1.msra.mxu0 %v5337
    %5339 = vmatprep.subr.mxu0 0.0
    %v5340 = vand.u32 %v4849, 4294901760
    %5341 = vmatpush1.msra.mxu0 %v5340
    %5342 = vmatprep.subr.mxu0 0.0
    %5343 = vmatpush1.msra.mxu0 0.0
    %5344 = vmatprep.subr.mxu0 0.0
    %5345 = vmatpush1.msra.mxu0 0.0
    %5346 = vmatprep.subr.mxu0 0.0
    %5347 = vmatpush1.msra.mxu0 0.0
    %5348 = vmatprep.subr.mxu0 0.0
    %5349 = vmatpush1.msra.mxu0 0.0
    %5350 = vmatprep.subr.mxu0 0.0
    %5351 = vmatpush1.msra.mxu0 0.0
    %5352 = vmatprep.subr.mxu0 0.0
    %5353 = vmatpush1.msra.mxu0 0.0
    %5354 = vmatprep.subr.mxu0 0.0
    %5355 = vmatpush1.msra.mxu0 0.0
    %5356 = vmatprep.subr.mxu0 0.0
    %5357 = vmatpush1.msra.mxu0 0.0
    %5358 = vmatprep.subr.mxu0 0.0
    %5359 = vmatpush1.msra.mxu0 0.0
    %5360 = vmatprep.subr.mxu0 0.0
    %5361 = vmatpush1.msra.mxu0 0.0
    %5362 = vmatprep.subr.mxu0 0.0
    %5363 = vmatpush1.msra.mxu0 0.0
    %5364 = vmatprep.subr.mxu0 0.0
    %5365 = vmatpush1.msra.mxu0 0.0
    %5366 = vmatprep.subr.mxu0 0.0
    %5367 = vmatpush1.msra.mxu0 0.0
    %5368 = vmatprep.subr.mxu0 0.0
    %5369 = vmatpush1.msra.mxu0 0.0
    %5370 = vmatprep.subr.mxu0 0.0
    %5371 = vmatpush1.msra.mxu0 0.0
    %5372 = vmatprep.subr.mxu0 0.0
    %5373 = vmatpush1.msra.mxu0 0.0
    %5374 = vmatprep.subr.mxu0 0.0
    %5375 = vmatpush1.msra.mxu0 0.0
    %5376 = vmatprep.subr.mxu0 0.0
    %5377 = vmatpush1.msra.mxu0 0.0
    %5378 = vmatprep.subr.mxu0 0.0
    %5379 = vmatpush1.msra.mxu0 0.0
    %5380 = vmatprep.subr.mxu0 0.0
    %5381 = vmatpush1.msra.mxu0 0.0
    %5382 = vmatprep.subr.mxu0 0.0
    %5383 = vmatpush1.msra.mxu0 0.0
    %5384 = vmatprep.subr.mxu0 0.0
    %5385 = vmatpush1.msra.mxu0 0.0
    %5386 = vmatprep.subr.mxu0 0.0
    %5387 = vmatpush1.msra.mxu0 0.0
    %5388 = vmatprep.subr.mxu0 0.0
    %5389 = vmatpush1.msra.mxu0 0.0
    %5390 = vmatprep.mubr.f32.mxu0 0.0
    %v5391 = vand.u32 %v4858, 4294901760
    %5392 = vmatmul.mubr.f32.gmra.mrb[0].mxu0 %v5391
    %v5393 = vpop.f32.mrb[0].mxu0
    %v5394 = vadd.f32 %v5315, %v5393
    %v5395 = vpop.f32.mrb[0].mxu0
    %5396 = vdwg.mxu0
    %vm5397 = vcmask 9216
    %5398 = vst.msk [vmem:[#allocation5] sm:$0x3] %vm5397, %v5394
    // Predicated region
    $region42: #{doc_model_forward.1} parent=1 // pred_check
      _
    $region43: #{doc_model_forward.1} parent=1 // pred_check_branch
      %5400 = sbr.rel (0) target = $region45
    $region44: #{doc_model_forward.1} parent=1 // pred_region
      %s5402 = ssub.s32 32, 32
      %5403 = vsyncadd [#allocation4], %s5402
      %s5405 = sshll.u32 [#allocation5], 4
      %s5406 = int_to_ptr.vmem [resolvable:$true] %s5405
      %5408 = dma.vmem_to_hbm [thread:$0]  %s5406, 32, %s9, [#allocation4]
    $region45: #{doc_model_forward.1} parent=1 // pred_fallthru
      _
    // Predicated region
    $region46: #{doc_model_forward.1} parent=1 // pred_check
      _
    $region47: #{doc_model_forward.1} parent=1 // pred_check_branch
      %5410 = sbr.rel (0) target = $region49
    $region48: #{doc_model_forward.1} parent=1 // pred_region
      %5411 = dma.done [#allocation4], 32
    $region49: #{doc_model_forward.1} parent=1 // pred_fallthru
      _
    %5412 = vsyncpa [#allocation3], 1
    %5413 = vsyncpa [#allocation4], 1

</llo_original>
